<compile_context>
chip_gen: v5e
topology: v5e:2x2
jax: 0.10.0
libtpu: 0.0.40
codegen_flags: <defaults>
</compile_context>

<pallas_src>
import functools

import jax
import jax.numpy as jnp
from jax import lax
from jax.experimental import pallas as pl
from jax.experimental.pallas import tpu as pltpu

# -------- model hyperparameters (consistent with the PyTorch module) --------
N_EMBD = 384                       # n_embd
NUM_HEADS = 6
HEAD_SIZE = N_EMBD // NUM_HEADS    # 64
BLOCK_SIZE = 256                   # causal-mask buffer size (T <= BLOCK_SIZE)


def _mha_kernel(x_ref, wqkv_ref, wpT_ref, bp_ref, o_ref, qkv_ref, cat_ref,
                *, num_heads, head_size):
    """One grid step = one tile of B_TILE full sequences.

    x_ref    : (B_TILE, T, C)     input tokens (f32)
    wqkv_ref : (C, 3*C)           fused [q heads | k heads | v heads], bf16,
                                  with 1/sqrt(C) folded into the q columns
    wpT_ref  : (C, C)             proj.weight.T (input-major, bf16)
    bp_ref   : (1, C)             proj.bias (f32)
    o_ref    : (B_TILE, T, C)     output (f32)
    qkv_ref  : (B_TILE*T, 3*C)    bf16 VMEM scratch holding the fused QKV result
    cat_ref  : (B_TILE*T, C)      bf16 VMEM scratch holding concatenated head outputs
    """
    bt, T, C = x_ref.shape
    hs = head_size
    rows = bt * T

    # Fused QKV projection: one lane-dense (rows, C) x (C, 3C) bf16 matmul,
    # f32 MXU accumulation, result parked in a VMEM scratch ref.
    x2d = x_ref[...].reshape(rows, C).astype(jnp.bfloat16)
    qkv_ref[...] = jnp.dot(x2d, wqkv_ref[...],
                           preferred_element_type=jnp.float32).astype(jnp.bfloat16)

    # Causal mask built once per grid step (hoisted out of the head loop).
    row_id = lax.broadcasted_iota(jnp.int32, (T, T), 0)
    col_id = lax.broadcasted_iota(jnp.int32, (T, T), 1)
    causal = (col_id <= row_id)[None, :, :]          # (1, T, T)
    neg_big = jnp.float32(-1e30)                     # finite mask value (avoids inf math)

    def attend(h):
        # Per-head slices are reads from the bf16 scratch ref (bounded live ranges).
        # The 1/sqrt(C) scale is already folded into the q weight columns.
        q = qkv_ref[:, h * hs:(h + 1) * hs].reshape(bt, T, hs)               # bf16
        k = qkv_ref[:, C + h * hs:C + (h + 1) * hs].reshape(bt, T, hs)       # bf16
        v = qkv_ref[:, 2 * C + h * hs:2 * C + (h + 1) * hs].reshape(bt, T, hs)

        wei = jnp.einsum('btd,bsd->bts', q, k,
                         preferred_element_type=jnp.float32)                 # f32 scores
        wei = jnp.where(causal, wei, neg_big)
        wei = wei - jnp.max(wei, axis=-1, keepdims=True)
        p = jnp.exp(wei)
        p = p * pl.reciprocal(jnp.sum(p, axis=-1, keepdims=True), approx=True)
        return jnp.einsum('bts,bsd->btd', p.astype(jnp.bfloat16), v,
                          preferred_element_type=jnp.float32)                # (bt, T, hs) f32

    # Heads processed in pairs: one lane-dense, 128-wide, 128-aligned store per
    # pair instead of two masked 64-wide stores at odd-64 lane offsets.
    n_pairs, rem = divmod(num_heads, 2)
    for pr in range(n_pairs):
        h0, h1 = 2 * pr, 2 * pr + 1
        out_pair = jnp.concatenate([attend(h0), attend(h1)], axis=-1)        # (bt, T, 2*hs)
        cat_ref[:, h0 * hs:(h1 + 1) * hs] = (
            out_pair.reshape(rows, 2 * hs).astype(jnp.bfloat16))
    if rem:                                           # odd head count fallback
        h = num_heads - 1
        cat_ref[:, h * hs:(h + 1) * hs] = attend(h).reshape(rows, hs).astype(jnp.bfloat16)

    # Output projection on the whole slab: cat @ Wp.T + b (bf16 x bf16, f32 accum).
    o2d = jnp.dot(cat_ref[...], wpT_ref[...],
                  preferred_element_type=jnp.float32) + bp_ref[...]
    o_ref[...] = o2d.reshape(bt, T, C)


def _vmem_capacity_bytes():
    """Per-core VMEM capacity; conservative fallback if the query fails."""
    try:
        return int(pltpu.get_tpu_info().vmem_capacity_bytes)
    except Exception:
        return 64 * 1024 * 1024        # v7x per-TC size (smallest of the targets)


def _pick_b_tile(B, T, C, vmem_bytes):
    """VMEM-budget-derived batch tile with >=2 grid steps when B allows it."""
    per_seq = (2 * T * C * 4           # x tile, f32, double-buffered
               + 2 * T * C * 4         # out tile, f32, double-buffered
               + T * 3 * C * 2         # qkv scratch, bf16
               + T * C * 2             # cat scratch, bf16
               + 4 * T * T * 4)        # (T, T) f32 score/prob temporaries (headroom)
    weights = 2 * (C * 3 * C + C * C) * 2 + C * 4     # double-buffered bf16 weights + bias
    budget = int(vmem_bytes * 0.6) - weights
    bt = max(1, min(B, budget // max(per_seq, 1)))
    if B >= 2:
        bt = min(bt, B // 2)           # grid >= 2: both v7x TensorCores get work
    bt = max(1, bt)
    while B % bt:
        bt -= 1
    return bt


def multi_head_attention(x, wq, wk, wv, wp, bp, *, b_tile=None):
    """x: (B, T, C); wq/wk/wv: (H, C, hs); wp: (C, C) [out, in]; bp: (C,)."""
    B, T, C = x.shape
    H, _, hs = wq.shape
    assert H * hs == C

    vmem_bytes = _vmem_capacity_bytes()
    if b_tile is None:
        b_tile = _pick_b_tile(B, T, C, vmem_bytes)
    assert B % b_tile == 0

    # Fuse QKV weights into (C, 3*C): [q heads | k heads | v heads], input-major.
    # The module scales scores by C**-0.5 (n_embd, matching the PyTorch code);
    # fold it into the q columns so the kernel never scales the (T, T) scores.
    scale = C ** (-0.5)

    def _stack(w):                 # (H, C, hs) -> (C, H*hs)
        return jnp.transpose(w, (1, 0, 2)).reshape(C, H * hs)

    wqkv = jnp.concatenate([_stack(wq) * scale, _stack(wk), _stack(wv)], axis=1)
    wqkv = wqkv.astype(jnp.bfloat16)
    wpT = wp.T.astype(jnp.bfloat16)   # input-major so the kernel does cat @ wpT
    bp2 = bp.reshape(1, C).astype(jnp.float32)

    kernel = functools.partial(_mha_kernel, num_heads=H, head_size=hs)

    grid_spec = pltpu.PrefetchScalarGridSpec(
        num_scalar_prefetch=0,
        grid=(B // b_tile,),
        in_specs=[
            pl.BlockSpec((b_tile, T, C), lambda b: (b, 0, 0)),    # x batch tile
            pl.BlockSpec((C, 3 * C), lambda b: (0, 0)),           # fused QKV weight (bf16, resident)
            pl.BlockSpec((C, C), lambda b: (0, 0)),               # proj weight (bf16, pre-transposed)
            pl.BlockSpec((1, C), lambda b: (0, 0)),               # proj bias
        ],
        out_specs=pl.BlockSpec((b_tile, T, C), lambda b: (b, 0, 0)),
        scratch_shapes=[
            pltpu.VMEM((b_tile * T, 3 * C), jnp.bfloat16),        # fused QKV result
            pltpu.VMEM((b_tile * T, C), jnp.bfloat16),            # concatenated head outputs
        ],
    )

    vmem_limit = max(32 * 1024 * 1024,
                     min(int(0.75 * vmem_bytes), 96 * 1024 * 1024))

    return pl.pallas_call(
        kernel,
        out_shape=jax.ShapeDtypeStruct((B, T, C), jnp.float32),
        grid_spec=grid_spec,
        compiler_params=pltpu.CompilerParams(
            dimension_semantics=("parallel",),        # megacore / 2-TC sharding over batch tiles
            vmem_limit_bytes=vmem_limit),
    )(x, wqkv, wpT, bp2)


def _reference(x, wq, wk, wv, wp, bp):
    """Pure-JAX f32 reference reproducing the PyTorch forward (eval mode)."""
    B, T, C = x.shape
    H = wq.shape[0]
    scale = C ** (-0.5)
    causal = jnp.tril(jnp.ones((T, T), dtype=bool))
    outs = []
    for h in range(H):
        q = x @ wq[h]
        k = x @ wk[h]
        v = x @ wv[h]
        wei = (q @ jnp.swapaxes(k, -2, -1)) * scale
        wei = jnp.where(causal, wei, -jnp.inf)
        wei = jax.nn.softmax(wei, axis=-1)
        outs.append(wei @ v)
    cat = jnp.concatenate(outs, axis=-1)
    return cat @ wp.T + bp


if __name__ == "__main__":
    key = jax.random.PRNGKey(0)
    B, T = 2, 16
    assert T <= BLOCK_SIZE

    kx, kq, kk, kv, kp, kb = jax.random.split(key, 6)
    x = jax.random.normal(kx, (B, T, N_EMBD), dtype=jnp.float32)

    # deterministic parameter init (stand-in for nn.Linear init)
    s = 1.0 / (N_EMBD ** 0.5)
    wq = jax.random.uniform(kq, (NUM_HEADS, N_EMBD, HEAD_SIZE), jnp.float32, -s, s)
    wk = jax.random.uniform(kk, (NUM_HEADS, N_EMBD, HEAD_SIZE), jnp.float32, -s, s)
    wv = jax.random.uniform(kv, (NUM_HEADS, N_EMBD, HEAD_SIZE), jnp.float32, -s, s)
    wp = jax.random.uniform(kp, (N_EMBD, N_EMBD), jnp.float32, -s, s)
    bp = jax.random.uniform(kb, (N_EMBD,), jnp.float32, -s, s)

    out = multi_head_attention(x, wq, wk, wv, wp, bp)
    out = jax.block_until_ready(out)

    ref = _reference(x, wq, wk, wv, wp, bp)
    assert out.shape == (B, T, N_EMBD)
    # tolerance accounts for bf16 MXU operands (f32 accumulation) and the
    # approx (EUP) reciprocal in the softmax denominator
    assert jnp.allclose(out, ref, atol=2e-2, rtol=2e-2), "mismatch vs reference"

    print("KERNEL_OK")
</pallas_src>

<mosaic_0001>
module attributes {stable_mosaic.version = 11 : i64} {
  func.func @_mha_kernel(%arg0: i32, %arg1: memref<1x16x384xf32, #tpu.memory_space<vmem>>, %arg2: memref<384x1152xbf16, #tpu.memory_space<vmem>>, %arg3: memref<384x384xbf16, #tpu.memory_space<vmem>>, %arg4: memref<1x384xf32, #tpu.memory_space<vmem>>, %arg5: memref<1x16x384xf32, #tpu.memory_space<vmem>>, %arg6: memref<16x1152xbf16, #tpu.memory_space<vmem>>, %arg7: memref<16x384xbf16, #tpu.memory_space<vmem>>) attributes {dimension_semantics = [#tpu.dimension_semantics<parallel>], iteration_bounds = array<i64: 2>, scalar_prefetch = 0 : i64, scratch_operands = 2 : i64, tpu.core_type = #tpu.core_type<tc>, window_params = [{transform_indices = @transform_0, window_bounds = array<i64: 1, 16, 384>}, {pipeline_mode = #tpu.pipeline_mode<synchronous>, transform_indices = @transform_1, window_bounds = array<i64: 384, 1152>}, {pipeline_mode = #tpu.pipeline_mode<synchronous>, transform_indices = @transform_2, window_bounds = array<i64: 384, 384>}, {pipeline_mode = #tpu.pipeline_mode<synchronous>, transform_indices = @transform_3, window_bounds = array<i64: 1, 384>}, {transform_indices = @transform_4, window_bounds = array<i64: 1, 16, 384>}]} {
    %c0 = arith.constant 0 : index
    %c0_0 = arith.constant 0 : index
    %c0_1 = arith.constant 0 : index
    %0 = vector.load %arg1[%c0, %c0_0, %c0_1] : memref<1x16x384xf32, #tpu.memory_space<vmem>>, vector<1x16x384xf32>
    %1 = vector.shape_cast %0 : vector<1x16x384xf32> to vector<16x384xf32>
    %2 = arith.truncf %1 : vector<16x384xf32> to vector<16x384xbf16>
    %c0_2 = arith.constant 0 : index
    %c0_3 = arith.constant 0 : index
    %3 = vector.load %arg2[%c0_2, %c0_3] : memref<384x1152xbf16, #tpu.memory_space<vmem>>, vector<384x1152xbf16>
    %cst = arith.constant dense<0.000000e+00> : vector<16x1152xf32>
    %4 = tpu.matmul %2, %3, %cst {dimension_numbers = #tpu.dot_dimension_numbers<[1], [0], [0], [1], [0, 0, 1, 1], [], []>} : vector<16x384xbf16>, vector<384x1152xbf16>, vector<16x1152xf32> -> vector<16x1152xf32>
    %5 = arith.truncf %4 : vector<16x1152xf32> to vector<16x1152xbf16>
    %c0_4 = arith.constant 0 : index
    %c0_5 = arith.constant 0 : index
    %6 = vector.load %arg6[%c0_4, %c0_5] : memref<16x1152xbf16, #tpu.memory_space<vmem>>, vector<16x1152xbf16>
    tpu.vector_store %arg6[%c0_4, %c0_5], %5 {strides = array<i32>} : memref<16x1152xbf16, #tpu.memory_space<vmem>>, vector<16x1152xbf16>,
    %7 = tpu.iota {dimensions = array<i32: 0>} : vector<16x16xi32>
    %8 = tpu.iota {dimensions = array<i32: 1>} : vector<16x16xi32>
    %9 = arith.cmpi sle, %8, %7 : vector<16x16xi32>
    %10 = vector.shape_cast %9 : vector<16x16xi1> to vector<1x16x16xi1>
    %c0_6 = arith.constant 0 : index
    %c0_7 = arith.constant 0 : index
    %11 = vector.load %arg6[%c0_6, %c0_7] : memref<16x1152xbf16, #tpu.memory_space<vmem>>, vector<16x64xbf16>
    %12 = vector.shape_cast %11 : vector<16x64xbf16> to vector<1x16x64xbf16>
    %c0_8 = arith.constant 0 : index
    %c384 = arith.constant 384 : index
    %13 = vector.load %arg6[%c0_8, %c384] : memref<16x1152xbf16, #tpu.memory_space<vmem>>, vector<16x64xbf16>
    %14 = vector.shape_cast %13 : vector<16x64xbf16> to vector<1x16x64xbf16>
    %c0_9 = arith.constant 0 : index
    %c768 = arith.constant 768 : index
    %15 = vector.load %arg6[%c0_9, %c768] : memref<16x1152xbf16, #tpu.memory_space<vmem>>, vector<16x64xbf16>
    %16 = vector.shape_cast %15 : vector<16x64xbf16> to vector<1x16x64xbf16>
    "tpu.trace_start"() <{level = 10 : i32, message = "btd,bsd->bts"}> : () -> ()
    %cst_10 = arith.constant dense<0.000000e+00> : vector<1x16x16xf32>
    %17 = tpu.matmul %12, %14, %cst_10 {dimension_numbers = #tpu.dot_dimension_numbers<[2], [2], [1], [1], [0, 0, 0, 1, 1, 1], [0], [0]>} : vector<1x16x64xbf16>, vector<1x16x64xbf16>, vector<1x16x16xf32> -> vector<1x16x16xf32>
    %cst_11 = arith.constant -1.000000e+30 : f32
    "tpu.trace_stop"() : () -> ()
    %18 = vector.broadcast %cst_11 : f32 to vector<1x16x16xf32>
    %19 = arith.select %10, %17, %18 : vector<1x16x16xi1>, vector<1x16x16xf32>
    %cst_12 = arith.constant dense<0xFF800000> : vector<1x16xf32>
    %20 = vector.multi_reduction <maximumf>, %19, %cst_12 [2] : vector<1x16x16xf32> to vector<1x16xf32>
    %21 = vector.shape_cast %20 : vector<1x16xf32> to vector<1x16x1xf32>
    %22 = vector.broadcast %21 : vector<1x16x1xf32> to vector<1x16x16xf32>
    %23 = arith.subf %19, %22 : vector<1x16x16xf32>
    %24 = math.exp %23 : vector<1x16x16xf32>
    %cst_13 = arith.constant dense<0.000000e+00> : vector<1x16xf32>
    %25 = vector.multi_reduction <add>, %24, %cst_13 [2] : vector<1x16x16xf32> to vector<1x16xf32>
    %26 = vector.shape_cast %25 : vector<1x16xf32> to vector<1x16x1xf32>
    %27 = tpu.reciprocal %26 {approx = true} : vector<1x16x1xf32> -> vector<1x16x1xf32>
    %28 = vector.broadcast %27 : vector<1x16x1xf32> to vector<1x16x16xf32>
    %29 = arith.mulf %24, %28 : vector<1x16x16xf32>
    %30 = arith.truncf %29 : vector<1x16x16xf32> to vector<1x16x16xbf16>
    "tpu.trace_start"() <{level = 10 : i32, message = "bts,bsd->btd"}> : () -> ()
    %cst_14 = arith.constant dense<0.000000e+00> : vector<1x16x64xf32>
    %31 = tpu.matmul %30, %16, %cst_14 {dimension_numbers = #tpu.dot_dimension_numbers<[2], [1], [1], [2], [0, 0, 0, 1, 1, 2], [0], [0]>} : vector<1x16x16xbf16>, vector<1x16x64xbf16>, vector<1x16x64xf32> -> vector<1x16x64xf32>
    "tpu.trace_stop"() : () -> ()
    %c0_15 = arith.constant 0 : index
    %c64 = arith.constant 64 : index
    %32 = vector.load %arg6[%c0_15, %c64] : memref<16x1152xbf16, #tpu.memory_space<vmem>>, vector<16x64xbf16>
    %33 = vector.shape_cast %32 : vector<16x64xbf16> to vector<1x16x64xbf16>
    %c0_16 = arith.constant 0 : index
    %c448 = arith.constant 448 : index
    %34 = vector.load %arg6[%c0_16, %c448] : memref<16x1152xbf16, #tpu.memory_space<vmem>>, vector<16x64xbf16>
    %35 = vector.shape_cast %34 : vector<16x64xbf16> to vector<1x16x64xbf16>
    %c0_17 = arith.constant 0 : index
    %c832 = arith.constant 832 : index
    %36 = vector.load %arg6[%c0_17, %c832] : memref<16x1152xbf16, #tpu.memory_space<vmem>>, vector<16x64xbf16>
    %37 = vector.shape_cast %36 : vector<16x64xbf16> to vector<1x16x64xbf16>
    "tpu.trace_start"() <{level = 10 : i32, message = "btd,bsd->bts"}> : () -> ()
    %cst_18 = arith.constant dense<0.000000e+00> : vector<1x16x16xf32>
    %38 = tpu.matmul %33, %35, %cst_18 {dimension_numbers = #tpu.dot_dimension_numbers<[2], [2], [1], [1], [0, 0, 0, 1, 1, 1], [0], [0]>} : vector<1x16x64xbf16>, vector<1x16x64xbf16>, vector<1x16x16xf32> -> vector<1x16x16xf32>
    %cst_19 = arith.constant -1.000000e+30 : f32
    "tpu.trace_stop"() : () -> ()
    %39 = vector.broadcast %cst_19 : f32 to vector<1x16x16xf32>
    %40 = arith.select %10, %38, %39 : vector<1x16x16xi1>, vector<1x16x16xf32>
    %cst_20 = arith.constant dense<0xFF800000> : vector<1x16xf32>
    %41 = vector.multi_reduction <maximumf>, %40, %cst_20 [2] : vector<1x16x16xf32> to vector<1x16xf32>
    %42 = vector.shape_cast %41 : vector<1x16xf32> to vector<1x16x1xf32>
    %43 = vector.broadcast %42 : vector<1x16x1xf32> to vector<1x16x16xf32>
    %44 = arith.subf %40, %43 : vector<1x16x16xf32>
    %45 = math.exp %44 : vector<1x16x16xf32>
    %cst_21 = arith.constant dense<0.000000e+00> : vector<1x16xf32>
    %46 = vector.multi_reduction <add>, %45, %cst_21 [2] : vector<1x16x16xf32> to vector<1x16xf32>
    %47 = vector.shape_cast %46 : vector<1x16xf32> to vector<1x16x1xf32>
    %48 = tpu.reciprocal %47 {approx = true} : vector<1x16x1xf32> -> vector<1x16x1xf32>
    %49 = vector.broadcast %48 : vector<1x16x1xf32> to vector<1x16x16xf32>
    %50 = arith.mulf %45, %49 : vector<1x16x16xf32>
    %51 = arith.truncf %50 : vector<1x16x16xf32> to vector<1x16x16xbf16>
    "tpu.trace_start"() <{level = 10 : i32, message = "bts,bsd->btd"}> : () -> ()
    %cst_22 = arith.constant dense<0.000000e+00> : vector<1x16x64xf32>
    %52 = tpu.matmul %51, %37, %cst_22 {dimension_numbers = #tpu.dot_dimension_numbers<[2], [1], [1], [2], [0, 0, 0, 1, 1, 2], [0], [0]>} : vector<1x16x16xbf16>, vector<1x16x64xbf16>, vector<1x16x64xf32> -> vector<1x16x64xf32>
    "tpu.trace_stop"() : () -> ()
    %53 = tpu.concatenate %31, %52 in 2 : vector<1x16x64xf32>, vector<1x16x64xf32> -> vector<1x16x128xf32>
    %54 = vector.shape_cast %53 : vector<1x16x128xf32> to vector<16x128xf32>
    %55 = arith.truncf %54 : vector<16x128xf32> to vector<16x128xbf16>
    %c0_23 = arith.constant 0 : index
    %c0_24 = arith.constant 0 : index
    %56 = vector.load %arg7[%c0_23, %c0_24] : memref<16x384xbf16, #tpu.memory_space<vmem>>, vector<16x128xbf16>
    tpu.vector_store %arg7[%c0_23, %c0_24], %55 {strides = array<i32>} : memref<16x384xbf16, #tpu.memory_space<vmem>>, vector<16x128xbf16>,
    %c0_25 = arith.constant 0 : index
    %c128 = arith.constant 128 : index
    %57 = vector.load %arg6[%c0_25, %c128] : memref<16x1152xbf16, #tpu.memory_space<vmem>>, vector<16x64xbf16>
    %58 = vector.shape_cast %57 : vector<16x64xbf16> to vector<1x16x64xbf16>
    %c0_26 = arith.constant 0 : index
    %c512 = arith.constant 512 : index
    %59 = vector.load %arg6[%c0_26, %c512] : memref<16x1152xbf16, #tpu.memory_space<vmem>>, vector<16x64xbf16>
    %60 = vector.shape_cast %59 : vector<16x64xbf16> to vector<1x16x64xbf16>
    %c0_27 = arith.constant 0 : index
    %c896 = arith.constant 896 : index
    %61 = vector.load %arg6[%c0_27, %c896] : memref<16x1152xbf16, #tpu.memory_space<vmem>>, vector<16x64xbf16>
    %62 = vector.shape_cast %61 : vector<16x64xbf16> to vector<1x16x64xbf16>
    "tpu.trace_start"() <{level = 10 : i32, message = "btd,bsd->bts"}> : () -> ()
    %cst_28 = arith.constant dense<0.000000e+00> : vector<1x16x16xf32>
    %63 = tpu.matmul %58, %60, %cst_28 {dimension_numbers = #tpu.dot_dimension_numbers<[2], [2], [1], [1], [0, 0, 0, 1, 1, 1], [0], [0]>} : vector<1x16x64xbf16>, vector<1x16x64xbf16>, vector<1x16x16xf32> -> vector<1x16x16xf32>
    %cst_29 = arith.constant -1.000000e+30 : f32
    "tpu.trace_stop"() : () -> ()
    %64 = vector.broadcast %cst_29 : f32 to vector<1x16x16xf32>
    %65 = arith.select %10, %63, %64 : vector<1x16x16xi1>, vector<1x16x16xf32>
    %cst_30 = arith.constant dense<0xFF800000> : vector<1x16xf32>
    %66 = vector.multi_reduction <maximumf>, %65, %cst_30 [2] : vector<1x16x16xf32> to vector<1x16xf32>
    %67 = vector.shape_cast %66 : vector<1x16xf32> to vector<1x16x1xf32>
    %68 = vector.broadcast %67 : vector<1x16x1xf32> to vector<1x16x16xf32>
    %69 = arith.subf %65, %68 : vector<1x16x16xf32>
    %70 = math.exp %69 : vector<1x16x16xf32>
    %cst_31 = arith.constant dense<0.000000e+00> : vector<1x16xf32>
    %71 = vector.multi_reduction <add>, %70, %cst_31 [2] : vector<1x16x16xf32> to vector<1x16xf32>
    %72 = vector.shape_cast %71 : vector<1x16xf32> to vector<1x16x1xf32>
    %73 = tpu.reciprocal %72 {approx = true} : vector<1x16x1xf32> -> vector<1x16x1xf32>
    %74 = vector.broadcast %73 : vector<1x16x1xf32> to vector<1x16x16xf32>
    %75 = arith.mulf %70, %74 : vector<1x16x16xf32>
    %76 = arith.truncf %75 : vector<1x16x16xf32> to vector<1x16x16xbf16>
    "tpu.trace_start"() <{level = 10 : i32, message = "bts,bsd->btd"}> : () -> ()
    %cst_32 = arith.constant dense<0.000000e+00> : vector<1x16x64xf32>
    %77 = tpu.matmul %76, %62, %cst_32 {dimension_numbers = #tpu.dot_dimension_numbers<[2], [1], [1], [2], [0, 0, 0, 1, 1, 2], [0], [0]>} : vector<1x16x16xbf16>, vector<1x16x64xbf16>, vector<1x16x64xf32> -> vector<1x16x64xf32>
    "tpu.trace_stop"() : () -> ()
    %c0_33 = arith.constant 0 : index
    %c192 = arith.constant 192 : index
    %78 = vector.load %arg6[%c0_33, %c192] : memref<16x1152xbf16, #tpu.memory_space<vmem>>, vector<16x64xbf16>
    %79 = vector.shape_cast %78 : vector<16x64xbf16> to vector<1x16x64xbf16>
    %c0_34 = arith.constant 0 : index
    %c576 = arith.constant 576 : index
    %80 = vector.load %arg6[%c0_34, %c576] : memref<16x1152xbf16, #tpu.memory_space<vmem>>, vector<16x64xbf16>
    %81 = vector.shape_cast %80 : vector<16x64xbf16> to vector<1x16x64xbf16>
    %c0_35 = arith.constant 0 : index
    %c960 = arith.constant 960 : index
    %82 = vector.load %arg6[%c0_35, %c960] : memref<16x1152xbf16, #tpu.memory_space<vmem>>, vector<16x64xbf16>
    %83 = vector.shape_cast %82 : vector<16x64xbf16> to vector<1x16x64xbf16>
    "tpu.trace_start"() <{level = 10 : i32, message = "btd,bsd->bts"}> : () -> ()
    %cst_36 = arith.constant dense<0.000000e+00> : vector<1x16x16xf32>
    %84 = tpu.matmul %79, %81, %cst_36 {dimension_numbers = #tpu.dot_dimension_numbers<[2], [2], [1], [1], [0, 0, 0, 1, 1, 1], [0], [0]>} : vector<1x16x64xbf16>, vector<1x16x64xbf16>, vector<1x16x16xf32> -> vector<1x16x16xf32>
    %cst_37 = arith.constant -1.000000e+30 : f32
    "tpu.trace_stop"() : () -> ()
    %85 = vector.broadcast %cst_37 : f32 to vector<1x16x16xf32>
    %86 = arith.select %10, %84, %85 : vector<1x16x16xi1>, vector<1x16x16xf32>
    %cst_38 = arith.constant dense<0xFF800000> : vector<1x16xf32>
    %87 = vector.multi_reduction <maximumf>, %86, %cst_38 [2] : vector<1x16x16xf32> to vector<1x16xf32>
    %88 = vector.shape_cast %87 : vector<1x16xf32> to vector<1x16x1xf32>
    %89 = vector.broadcast %88 : vector<1x16x1xf32> to vector<1x16x16xf32>
    %90 = arith.subf %86, %89 : vector<1x16x16xf32>
    %91 = math.exp %90 : vector<1x16x16xf32>
    %cst_39 = arith.constant dense<0.000000e+00> : vector<1x16xf32>
    %92 = vector.multi_reduction <add>, %91, %cst_39 [2] : vector<1x16x16xf32> to vector<1x16xf32>
    %93 = vector.shape_cast %92 : vector<1x16xf32> to vector<1x16x1xf32>
    %94 = tpu.reciprocal %93 {approx = true} : vector<1x16x1xf32> -> vector<1x16x1xf32>
    %95 = vector.broadcast %94 : vector<1x16x1xf32> to vector<1x16x16xf32>
    %96 = arith.mulf %91, %95 : vector<1x16x16xf32>
    %97 = arith.truncf %96 : vector<1x16x16xf32> to vector<1x16x16xbf16>
    "tpu.trace_start"() <{level = 10 : i32, message = "bts,bsd->btd"}> : () -> ()
    %cst_40 = arith.constant dense<0.000000e+00> : vector<1x16x64xf32>
    %98 = tpu.matmul %97, %83, %cst_40 {dimension_numbers = #tpu.dot_dimension_numbers<[2], [1], [1], [2], [0, 0, 0, 1, 1, 2], [0], [0]>} : vector<1x16x16xbf16>, vector<1x16x64xbf16>, vector<1x16x64xf32> -> vector<1x16x64xf32>
    "tpu.trace_stop"() : () -> ()
    %99 = tpu.concatenate %77, %98 in 2 : vector<1x16x64xf32>, vector<1x16x64xf32> -> vector<1x16x128xf32>
    %100 = vector.shape_cast %99 : vector<1x16x128xf32> to vector<16x128xf32>
    %101 = arith.truncf %100 : vector<16x128xf32> to vector<16x128xbf16>
    %c0_41 = arith.constant 0 : index
    %c128_42 = arith.constant 128 : index
    %102 = vector.load %arg7[%c0_41, %c128_42] : memref<16x384xbf16, #tpu.memory_space<vmem>>, vector<16x128xbf16>
    tpu.vector_store %arg7[%c0_41, %c128_42], %101 {strides = array<i32>} : memref<16x384xbf16, #tpu.memory_space<vmem>>, vector<16x128xbf16>,
    %c0_43 = arith.constant 0 : index
    %c256 = arith.constant 256 : index
    %103 = vector.load %arg6[%c0_43, %c256] : memref<16x1152xbf16, #tpu.memory_space<vmem>>, vector<16x64xbf16>
    %104 = vector.shape_cast %103 : vector<16x64xbf16> to vector<1x16x64xbf16>
    %c0_44 = arith.constant 0 : index
    %c640 = arith.constant 640 : index
    %105 = vector.load %arg6[%c0_44, %c640] : memref<16x1152xbf16, #tpu.memory_space<vmem>>, vector<16x64xbf16>
    %106 = vector.shape_cast %105 : vector<16x64xbf16> to vector<1x16x64xbf16>
    %c0_45 = arith.constant 0 : index
    %c1024 = arith.constant 1024 : index
    %107 = vector.load %arg6[%c0_45, %c1024] : memref<16x1152xbf16, #tpu.memory_space<vmem>>, vector<16x64xbf16>
    %108 = vector.shape_cast %107 : vector<16x64xbf16> to vector<1x16x64xbf16>
    "tpu.trace_start"() <{level = 10 : i32, message = "btd,bsd->bts"}> : () -> ()
    %cst_46 = arith.constant dense<0.000000e+00> : vector<1x16x16xf32>
    %109 = tpu.matmul %104, %106, %cst_46 {dimension_numbers = #tpu.dot_dimension_numbers<[2], [2], [1], [1], [0, 0, 0, 1, 1, 1], [0], [0]>} : vector<1x16x64xbf16>, vector<1x16x64xbf16>, vector<1x16x16xf32> -> vector<1x16x16xf32>
    %cst_47 = arith.constant -1.000000e+30 : f32
    "tpu.trace_stop"() : () -> ()
    %110 = vector.broadcast %cst_47 : f32 to vector<1x16x16xf32>
    %111 = arith.select %10, %109, %110 : vector<1x16x16xi1>, vector<1x16x16xf32>
    %cst_48 = arith.constant dense<0xFF800000> : vector<1x16xf32>
    %112 = vector.multi_reduction <maximumf>, %111, %cst_48 [2] : vector<1x16x16xf32> to vector<1x16xf32>
    %113 = vector.shape_cast %112 : vector<1x16xf32> to vector<1x16x1xf32>
    %114 = vector.broadcast %113 : vector<1x16x1xf32> to vector<1x16x16xf32>
    %115 = arith.subf %111, %114 : vector<1x16x16xf32>
    %116 = math.exp %115 : vector<1x16x16xf32>
    %cst_49 = arith.constant dense<0.000000e+00> : vector<1x16xf32>
    %117 = vector.multi_reduction <add>, %116, %cst_49 [2] : vector<1x16x16xf32> to vector<1x16xf32>
    %118 = vector.shape_cast %117 : vector<1x16xf32> to vector<1x16x1xf32>
    %119 = tpu.reciprocal %118 {approx = true} : vector<1x16x1xf32> -> vector<1x16x1xf32>
    %120 = vector.broadcast %119 : vector<1x16x1xf32> to vector<1x16x16xf32>
    %121 = arith.mulf %116, %120 : vector<1x16x16xf32>
    %122 = arith.truncf %121 : vector<1x16x16xf32> to vector<1x16x16xbf16>
    "tpu.trace_start"() <{level = 10 : i32, message = "bts,bsd->btd"}> : () -> ()
    %cst_50 = arith.constant dense<0.000000e+00> : vector<1x16x64xf32>
    %123 = tpu.matmul %122, %108, %cst_50 {dimension_numbers = #tpu.dot_dimension_numbers<[2], [1], [1], [2], [0, 0, 0, 1, 1, 2], [0], [0]>} : vector<1x16x16xbf16>, vector<1x16x64xbf16>, vector<1x16x64xf32> -> vector<1x16x64xf32>
    "tpu.trace_stop"() : () -> ()
    %c0_51 = arith.constant 0 : index
    %c320 = arith.constant 320 : index
    %124 = vector.load %arg6[%c0_51, %c320] : memref<16x1152xbf16, #tpu.memory_space<vmem>>, vector<16x64xbf16>
    %125 = vector.shape_cast %124 : vector<16x64xbf16> to vector<1x16x64xbf16>
    %c0_52 = arith.constant 0 : index
    %c704 = arith.constant 704 : index
    %126 = vector.load %arg6[%c0_52, %c704] : memref<16x1152xbf16, #tpu.memory_space<vmem>>, vector<16x64xbf16>
    %127 = vector.shape_cast %126 : vector<16x64xbf16> to vector<1x16x64xbf16>
    %c0_53 = arith.constant 0 : index
    %c1088 = arith.constant 1088 : index
    %128 = vector.load %arg6[%c0_53, %c1088] : memref<16x1152xbf16, #tpu.memory_space<vmem>>, vector<16x64xbf16>
    %129 = vector.shape_cast %128 : vector<16x64xbf16> to vector<1x16x64xbf16>
    "tpu.trace_start"() <{level = 10 : i32, message = "btd,bsd->bts"}> : () -> ()
    %cst_54 = arith.constant dense<0.000000e+00> : vector<1x16x16xf32>
    %130 = tpu.matmul %125, %127, %cst_54 {dimension_numbers = #tpu.dot_dimension_numbers<[2], [2], [1], [1], [0, 0, 0, 1, 1, 1], [0], [0]>} : vector<1x16x64xbf16>, vector<1x16x64xbf16>, vector<1x16x16xf32> -> vector<1x16x16xf32>
    %cst_55 = arith.constant -1.000000e+30 : f32
    "tpu.trace_stop"() : () -> ()
    %131 = vector.broadcast %cst_55 : f32 to vector<1x16x16xf32>
    %132 = arith.select %10, %130, %131 : vector<1x16x16xi1>, vector<1x16x16xf32>
    %cst_56 = arith.constant dense<0xFF800000> : vector<1x16xf32>
    %133 = vector.multi_reduction <maximumf>, %132, %cst_56 [2] : vector<1x16x16xf32> to vector<1x16xf32>
    %134 = vector.shape_cast %133 : vector<1x16xf32> to vector<1x16x1xf32>
    %135 = vector.broadcast %134 : vector<1x16x1xf32> to vector<1x16x16xf32>
    %136 = arith.subf %132, %135 : vector<1x16x16xf32>
    %137 = math.exp %136 : vector<1x16x16xf32>
    %cst_57 = arith.constant dense<0.000000e+00> : vector<1x16xf32>
    %138 = vector.multi_reduction <add>, %137, %cst_57 [2] : vector<1x16x16xf32> to vector<1x16xf32>
    %139 = vector.shape_cast %138 : vector<1x16xf32> to vector<1x16x1xf32>
    %140 = tpu.reciprocal %139 {approx = true} : vector<1x16x1xf32> -> vector<1x16x1xf32>
    %141 = vector.broadcast %140 : vector<1x16x1xf32> to vector<1x16x16xf32>
    %142 = arith.mulf %137, %141 : vector<1x16x16xf32>
    %143 = arith.truncf %142 : vector<1x16x16xf32> to vector<1x16x16xbf16>
    "tpu.trace_start"() <{level = 10 : i32, message = "bts,bsd->btd"}> : () -> ()
    %cst_58 = arith.constant dense<0.000000e+00> : vector<1x16x64xf32>
    %144 = tpu.matmul %143, %129, %cst_58 {dimension_numbers = #tpu.dot_dimension_numbers<[2], [1], [1], [2], [0, 0, 0, 1, 1, 2], [0], [0]>} : vector<1x16x16xbf16>, vector<1x16x64xbf16>, vector<1x16x64xf32> -> vector<1x16x64xf32>
    "tpu.trace_stop"() : () -> ()
    %145 = tpu.concatenate %123, %144 in 2 : vector<1x16x64xf32>, vector<1x16x64xf32> -> vector<1x16x128xf32>
    %146 = vector.shape_cast %145 : vector<1x16x128xf32> to vector<16x128xf32>
    %147 = arith.truncf %146 : vector<16x128xf32> to vector<16x128xbf16>
    %c0_59 = arith.constant 0 : index
    %c256_60 = arith.constant 256 : index
    %148 = vector.load %arg7[%c0_59, %c256_60] : memref<16x384xbf16, #tpu.memory_space<vmem>>, vector<16x128xbf16>
    tpu.vector_store %arg7[%c0_59, %c256_60], %147 {strides = array<i32>} : memref<16x384xbf16, #tpu.memory_space<vmem>>, vector<16x128xbf16>,
    %c0_61 = arith.constant 0 : index
    %c0_62 = arith.constant 0 : index
    %149 = vector.load %arg7[%c0_61, %c0_62] : memref<16x384xbf16, #tpu.memory_space<vmem>>, vector<16x384xbf16>
    %c0_63 = arith.constant 0 : index
    %c0_64 = arith.constant 0 : index
    %150 = vector.load %arg3[%c0_63, %c0_64] : memref<384x384xbf16, #tpu.memory_space<vmem>>, vector<384x384xbf16>
    %cst_65 = arith.constant dense<0.000000e+00> : vector<16x384xf32>
    %151 = tpu.matmul %149, %150, %cst_65 {dimension_numbers = #tpu.dot_dimension_numbers<[1], [0], [0], [1], [0, 0, 1, 1], [], []>} : vector<16x384xbf16>, vector<384x384xbf16>, vector<16x384xf32> -> vector<16x384xf32>
    %c0_66 = arith.constant 0 : index
    %c0_67 = arith.constant 0 : index
    %152 = vector.load %arg4[%c0_66, %c0_67] : memref<1x384xf32, #tpu.memory_space<vmem>>, vector<1x384xf32>
    %153 = vector.broadcast %152 : vector<1x384xf32> to vector<16x384xf32>
    %154 = arith.addf %151, %153 : vector<16x384xf32>
    %155 = vector.shape_cast %154 : vector<16x384xf32> to vector<1x16x384xf32>
    %c0_68 = arith.constant 0 : index
    %c0_69 = arith.constant 0 : index
    %c0_70 = arith.constant 0 : index
    %156 = vector.load %arg5[%c0_68, %c0_69, %c0_70] : memref<1x16x384xf32, #tpu.memory_space<vmem>>, vector<1x16x384xf32>
    tpu.vector_store %arg5[%c0_68, %c0_69, %c0_70], %155 {strides = array<i32>} : memref<1x16x384xf32, #tpu.memory_space<vmem>>, vector<1x16x384xf32>,
    return
  }
  func.func @transform_0(%arg0: i32) -> (i32, i32, i32) {
    %c0_i32 = arith.constant 0 : i32
    %c0_i32_0 = arith.constant 0 : i32
    %c0_i32_1 = arith.constant 0 : i32
    return %arg0, %c0_i32, %c0_i32_0 : i32, i32, i32
  }
  func.func @transform_1(%arg0: i32) -> (i32, i32) {
    %c0_i32 = arith.constant 0 : i32
    %c0_i32_0 = arith.constant 0 : i32
    %c0_i32_1 = arith.constant 0 : i32
    return %c0_i32, %c0_i32_0 : i32, i32
  }
  func.func @transform_2(%arg0: i32) -> (i32, i32) {
    %c0_i32 = arith.constant 0 : i32
    %c0_i32_0 = arith.constant 0 : i32
    %c0_i32_1 = arith.constant 0 : i32
    return %c0_i32, %c0_i32_0 : i32, i32
  }
  func.func @transform_3(%arg0: i32) -> (i32, i32) {
    %c0_i32 = arith.constant 0 : i32
    %c0_i32_0 = arith.constant 0 : i32
    %c0_i32_1 = arith.constant 0 : i32
    return %c0_i32, %c0_i32_0 : i32, i32
  }
  func.func @transform_4(%arg0: i32) -> (i32, i32, i32) {
    %c0_i32 = arith.constant 0 : i32
    %c0_i32_0 = arith.constant 0 : i32
    %c0_i32_1 = arith.constant 0 : i32
    return %arg0, %c0_i32, %c0_i32_0 : i32, i32, i32
  }
}

</mosaic_0001>

<llo_original>
// kernel: tpu_custom_call.1
$region0: #{tpu_custom_call.1}
  #allocation0 [shape = 'u32[]', space=smem, size = 0x4, offset = 0x4, fixed_abs, tag = 'smem constant byte address 0x4 - core index']
  #allocation1 [shape = 'u32[72,128]{1,0:T(1,128)}', space=vmem, size = 0x9000, scoped, tag = 'internal scratch']
  #allocation2 [shape = 'bf16[16,1152]{1,0:T(8,128)(2,1)}', space=vmem, size = 0x9000, scoped, tag = 'scratch operand']
  #allocation3 [shape = 'bf16[16,384]{1,0:T(8,128)(2,1)}', space=vmem, size = 0x3000, scoped, tag = 'scratch operand']
  %s0 = inlined_call_operand.hbm [shape: f32[2,16,384], index: 0, kind: input, shape index: {}]
  %s1 = inlined_call_operand.hbm [shape: bf16[384,1152], index: 1, kind: input, shape index: {}]
  %s2 = inlined_call_operand.hbm [shape: bf16[384,384], index: 2, kind: input, shape index: {}]
  %s3 = inlined_call_operand.hbm [shape: f32[1,384], index: 3, kind: input, shape index: {}]
  %s4 = inlined_call_operand.hbm [shape: f32[2,16,384], index: 4, kind: output, shape index: {}]
  %s5 = sld [smem:[#allocation0]]
  $region65: #{tpu_custom_call.1} parent=0
    _
  %s7 = ssub.s32 1, %s5
  %s8 = scalar_select 0, %s7, %s5
  $region1: #{tpu_custom_call.1} parent=0
    #allocation4 [shape = 'u8[49152]{0}', space=vmem, size = 0xc000, scoped, tag = 'input window, operand 0']
    #allocation5 [shape = 's32[2]{0}', space=sflag, size = 0x8, scoped, tag = 'scoped memory for tpu_custom_call.1']
    #allocation6 [shape = 's32[2]{0}', space=sflag, size = 0x8, scoped, tag = 'scoped memory for tpu_custom_call.1']
    #allocation7 [shape = 'u8[884736]{0}', space=vmem, size = 0xd8000, scoped, tag = 'input window, operand 1, single buffered']
    #allocation8 [shape = 's32[1]{0}', space=sflag, size = 0x4, scoped, tag = 'scoped memory for tpu_custom_call.1']
    #allocation9 [shape = 'u8[294912]{0}', space=vmem, size = 0x48000, scoped, tag = 'input window, operand 2, single buffered']
    #allocation10 [shape = 'u8[1536]{0}', space=vmem, size = 0x800, scoped, tag = 'input window, operand 3, single buffered']
    #allocation11 [shape = 's32[1]{0}', space=sflag, size = 0x4, scoped, tag = 'scoped memory for tpu_custom_call.1']
    #allocation12 [shape = 'u8[49152]{0}', space=vmem, size = 0xc000, scoped, tag = 'output window, operand 0']
    %9 = vsyncpa [#allocation5], 0
    %s10 = scalar_lea.sflag [#allocation5], 1
    %11 = vsyncpa %s10, 0
    %12 = vsyncpa [#allocation8], 0
    %13 = vsyncpa [#allocation11], 0
    %14 = vsyncpa [#allocation6], 0
    %s15 = scalar_lea.sflag [#allocation6], 1
    %16 = vsyncpa %s15, 0
    loop: start=0, step=1, limit=4
    $region2: #{tpu_custom_call.1} parent=1 // loop_pre_header
      _
    $region3: #{tpu_custom_call.1} parent=1 // loop_header
      %s18 = sphi 0, %s22
      %p19 = scmp.ge.s32.totalorder %s18, 4
      %s28 = sphi 0, %s30
      %s31 = sphi 0, %s28
      %s32 = sphi 0, %s31
      %s48 = sphi 0, %s32
      %s52 = sphi 0, %s52
      %s54 = sphi 0, %s52
      %s55 = sphi 0, %s54
      %s69 = sphi 0, %s55
      %s73 = sphi 0, %s73
      %s75 = sphi 0, %s73
      %s76 = sphi 0, %s75
      %s90 = sphi 0, %s76
      %s94 = sphi 0, %s94
      %s96 = sphi 0, %s94
      %s97 = sphi 0, %s96
      %s111 = sphi 0, %s97
      %s117 = sphi 0, %s119
      %s120 = sphi 0, %s117
      %s121 = sphi 0, %s120
      %s137 = sphi 0, %s121
    $region4: #{tpu_custom_call.1} parent=1 // loop_header_branch
      %21 = sbr.rel (%p19) target = $region8
    $region5: #{tpu_custom_call.1} parent=1 // loop_body
      %s23 = ssub.s32 %s18, 1
      %s24 = ssub.s32 %s18, 2
      %s25 = sadd.s32 %s18, 1
      %s26 = ssub.s32 %s18, %s25
      %p27 = scmp.eq.s32.totalorder %s26, 0
      %s29 = sadd.s32 %s28, 1
      %s30 = scalar_select %p27, %s28, %s29
      %p33 = pneg %p27
      %p34 = scmp.eq.s32.totalorder %s18, 1
      %p35 = por %p33, %p34
      %p36 = scmp.ne.s32.totalorder %s28, %s31
      %p37 = scmp.eq.s32.totalorder %s18, 0
      %p38 = por %p36, %p37
      %p39 = scmp.ne.s32.totalorder %s28, %s31
      %p40 = scmp.eq.s32.totalorder %s23, 1
      %p41 = por %p39, %p40
      %p42 = scmp.ne.s32.totalorder %s31, %s32
      %p43 = scmp.eq.s32.totalorder %s23, 0
      %p44 = por %p42, %p43
      %p45 = scmp.ne.s32.totalorder %s31, %s32
      %p46 = scmp.eq.s32.totalorder %s24, 1
      %p47 = por %p45, %p46
      %p49 = scmp.ne.s32.totalorder %s32, %s48
      %p50 = scmp.eq.s32.totalorder %s24, 0
      %p51 = por %p49, %p50
      %s53 = sadd.s32 %s52, 1
      %p56 = scmp.eq.s32.totalorder %s18, 1
      %p57 = scmp.ne.s32.totalorder %s52, %s54
      %p58 = scmp.eq.s32.totalorder %s18, 0
      %p59 = por %p57, %p58
      %p60 = scmp.ne.s32.totalorder %s52, %s54
      %p61 = scmp.eq.s32.totalorder %s23, 1
      %p62 = por %p60, %p61
      %p63 = scmp.ne.s32.totalorder %s54, %s55
      %p64 = scmp.eq.s32.totalorder %s23, 0
      %p65 = por %p63, %p64
      %p66 = scmp.ne.s32.totalorder %s54, %s55
      %p67 = scmp.eq.s32.totalorder %s24, 1
      %p68 = por %p66, %p67
      %p70 = scmp.ne.s32.totalorder %s55, %s69
      %p71 = scmp.eq.s32.totalorder %s24, 0
      %p72 = por %p70, %p71
      %s74 = sadd.s32 %s73, 1
      %p77 = scmp.eq.s32.totalorder %s18, 1
      %p78 = scmp.ne.s32.totalorder %s73, %s75
      %p79 = scmp.eq.s32.totalorder %s18, 0
      %p80 = por %p78, %p79
      %p81 = scmp.ne.s32.totalorder %s73, %s75
      %p82 = scmp.eq.s32.totalorder %s23, 1
      %p83 = por %p81, %p82
      %p84 = scmp.ne.s32.totalorder %s75, %s76
      %p85 = scmp.eq.s32.totalorder %s23, 0
      %p86 = por %p84, %p85
      %p87 = scmp.ne.s32.totalorder %s75, %s76
      %p88 = scmp.eq.s32.totalorder %s24, 1
      %p89 = por %p87, %p88
      %p91 = scmp.ne.s32.totalorder %s76, %s90
      %p92 = scmp.eq.s32.totalorder %s24, 0
      %p93 = por %p91, %p92
      %s95 = sadd.s32 %s94, 1
      %p98 = scmp.eq.s32.totalorder %s18, 1
      %p99 = scmp.ne.s32.totalorder %s94, %s96
      %p100 = scmp.eq.s32.totalorder %s18, 0
      %p101 = por %p99, %p100
      %p102 = scmp.ne.s32.totalorder %s94, %s96
      %p103 = scmp.eq.s32.totalorder %s23, 1
      %p104 = por %p102, %p103
      %p105 = scmp.ne.s32.totalorder %s96, %s97
      %p106 = scmp.eq.s32.totalorder %s23, 0
      %p107 = por %p105, %p106
      %p108 = scmp.ne.s32.totalorder %s96, %s97
      %p109 = scmp.eq.s32.totalorder %s24, 1
      %p110 = por %p108, %p109
      %p112 = scmp.ne.s32.totalorder %s97, %s111
      %p113 = scmp.eq.s32.totalorder %s24, 0
      %p114 = por %p112, %p113
      %s115 = ssub.s32 %s18, %s25
      %p116 = scmp.eq.s32.totalorder %s115, 0
      %s118 = sadd.s32 %s117, 1
      %s119 = scalar_select %p116, %s117, %s118
      %p122 = pneg %p116
      %p123 = scmp.eq.s32.totalorder %s18, 1
      %p124 = por %p122, %p123
      %p125 = scmp.ne.s32.totalorder %s117, %s120
      %p126 = scmp.eq.s32.totalorder %s18, 0
      %p127 = por %p125, %p126
      %p128 = scmp.ne.s32.totalorder %s117, %s120
      %p129 = scmp.eq.s32.totalorder %s23, 1
      %p130 = por %p128, %p129
      %p131 = scmp.ne.s32.totalorder %s120, %s121
      %p132 = scmp.eq.s32.totalorder %s23, 0
      %p133 = por %p131, %p132
      %p134 = scmp.ne.s32.totalorder %s120, %s121
      %p135 = scmp.eq.s32.totalorder %s24, 1
      %p136 = por %p134, %p135
      %p138 = scmp.ne.s32.totalorder %s121, %s137
      %p139 = scmp.eq.s32.totalorder %s24, 0
      %p140 = por %p138, %p139
      %p141 = scmp.le.s32.totalorder 1, %s18
      %p142 = scmp.lt.s32.totalorder %s18, 3
      %p143 = pnand %p141, %p142
      %p144 = pneg %p143
      // Predicated region
      $region9: #{tpu_custom_call.1} parent=5 // pred_check
        _
      $region10: #{tpu_custom_call.1} parent=5 // pred_check_branch
        %146 = sbr.rel (%p143) target = $region12
      $region11: #{tpu_custom_call.1} parent=5 // pred_region
        %s147 = ssub.s32 %s18, 1
        // Predicated region
        $region13: #{tpu_custom_call.1} parent=11 // pred_check
          %p148 = pneg %p65
        $region14: #{tpu_custom_call.1} parent=11 // pred_check_branch
          %150 = sbr.rel (%p148) target = $region16
        $region15: #{tpu_custom_call.1} parent=11 // pred_region
          %152 = vsyncadd [#allocation8], 0
          %s153 = sshll.u32 %s1, 4
          %s154 = int_to_ptr.hbm [resolvable:$true] %s153
          %s155 = sshll.u32 [#allocation7], 4
          %s156 = int_to_ptr.vmem [resolvable:$true] %s155
          %161 = dma.hbm_to_vmem [thread:$0]  %s154, 27648, %s156, [#allocation8], 576, 576, 36
        $region16: #{tpu_custom_call.1} parent=11 // pred_fallthru
          _
        // Predicated region
        $region17: #{tpu_custom_call.1} parent=11 // pred_check
          %p162 = pneg %p86
        $region18: #{tpu_custom_call.1} parent=11 // pred_check_branch
          %164 = sbr.rel (%p162) target = $region20
        $region19: #{tpu_custom_call.1} parent=11 // pred_region
          %166 = vsyncadd [#allocation8], 0
          %s167 = sshll.u32 %s2, 4
          %s168 = int_to_ptr.hbm [resolvable:$true] %s167
          %s169 = sshll.u32 [#allocation9], 4
          %s170 = int_to_ptr.vmem [resolvable:$true] %s169
          %175 = dma.hbm_to_vmem [thread:$0]  %s168, 9216, %s170, [#allocation8], 192, 192, 12
        $region20: #{tpu_custom_call.1} parent=11 // pred_fallthru
          _
        // Predicated region
        $region21: #{tpu_custom_call.1} parent=11 // pred_check
          %p176 = pneg %p107
        $region22: #{tpu_custom_call.1} parent=11 // pred_check_branch
          %178 = sbr.rel (%p176) target = $region24
        $region23: #{tpu_custom_call.1} parent=11 // pred_region
          %180 = vsyncadd [#allocation11], 0
          %s182 = sshll.u32 %s3, 4
          %s183 = int_to_ptr.hbm [resolvable:$true] %s182
          %s184 = sshll.u32 [#allocation10], 4
          %s185 = int_to_ptr.vmem [resolvable:$true] %s184
          %187 = dma.hbm_to_vmem [thread:$0]  %s183, 48, %s185, [#allocation11]
        $region24: #{tpu_custom_call.1} parent=11 // pred_fallthru
          _
      $region12: #{tpu_custom_call.1} parent=5 // pred_fallthru
        _
      %p188 = scmp.lt.s32.totalorder %s18, 2
      // Predicated region
      $region25: #{tpu_custom_call.1} parent=5 // pred_check
        %p189 = pneg %p188
      $region26: #{tpu_custom_call.1} parent=5 // pred_check_branch
        %191 = sbr.rel (%p189) target = $region28
      $region27: #{tpu_custom_call.1} parent=5 // pred_region
        // Predicated region
        $region29: #{tpu_custom_call.1} parent=27 // pred_check
          %p192 = pneg %p38
        $region30: #{tpu_custom_call.1} parent=27 // pred_check_branch
          %194 = sbr.rel (%p192) target = $region32
        $region31: #{tpu_custom_call.1} parent=27 // pred_region
          %s195 = sand.u32 %s28, 1
          %s196 = scalar_lea.sflag [#allocation5], %s195
          %s197 = sand.u32 %s28, 1
          %s198 = smul.addr %s197, 48
          %s199 = scalar_lea.vmem [#allocation4], %s198
          %201 = vsyncadd %s196, 0
          %s202 = smul.addr %s18, 6
          %s203 = smul.addr %s202, 8
          %s204 = scalar_lea.hbm %s0, %s203
          %s205 = sshll.u32 %s204, 4
          %s206 = int_to_ptr.hbm [resolvable:$true] %s205
          %s207 = sshll.u32 %s199, 4
          %s208 = int_to_ptr.vmem [resolvable:$true] %s207
          %213 = dma.hbm_to_vmem [thread:$0]  %s206, 768, %s208, %s196, 384, 384, 24
        $region32: #{tpu_custom_call.1} parent=27 // pred_fallthru
          _
      $region28: #{tpu_custom_call.1} parent=5 // pred_fallthru
        _
      %p214 = scmp.le.s32.totalorder 1, %s18
      %p215 = scmp.lt.s32.totalorder %s18, 3
      %p216 = pnand %p214, %p215
      %p217 = pneg %p216
      // Predicated region
      $region33: #{tpu_custom_call.1} parent=5 // pred_check
        _
      $region34: #{tpu_custom_call.1} parent=5 // pred_check_branch
        %219 = sbr.rel (%p216) target = $region36
      $region35: #{tpu_custom_call.1} parent=5 // pred_region
        %s220 = ssub.s32 %s18, 1
        %s221 = sand.u32 %s31, 1
        %s222 = scalar_lea.sflag [#allocation5], %s221
        %s223 = sand.u32 %s31, 1
        %s224 = smul.addr %s223, 48
        %s225 = scalar_lea.vmem [#allocation4], %s224
        // Predicated region
        $region37: #{tpu_custom_call.1} parent=35 // pred_check
          %p226 = pneg %p44
        $region38: #{tpu_custom_call.1} parent=35 // pred_check_branch
          %228 = sbr.rel (%p226) target = $region40
        $region39: #{tpu_custom_call.1} parent=35 // pred_region
          %230 = dma.done %s222, 768
        $region40: #{tpu_custom_call.1} parent=35 // pred_fallthru
          _
        // Predicated region
        $region41: #{tpu_custom_call.1} parent=35 // pred_check
          %p231 = pneg %p65
        $region42: #{tpu_custom_call.1} parent=35 // pred_check_branch
          %233 = sbr.rel (%p231) target = $region44
        $region43: #{tpu_custom_call.1} parent=35 // pred_region
          %235 = dma.done [#allocation8], 27648
        $region44: #{tpu_custom_call.1} parent=35 // pred_fallthru
          _
        // Predicated region
        $region45: #{tpu_custom_call.1} parent=35 // pred_check
          %p236 = pneg %p86
        $region46: #{tpu_custom_call.1} parent=35 // pred_check_branch
          %238 = sbr.rel (%p236) target = $region48
        $region47: #{tpu_custom_call.1} parent=35 // pred_region
          %240 = dma.done [#allocation8], 9216
        $region48: #{tpu_custom_call.1} parent=35 // pred_fallthru
          _
        // Predicated region
        $region49: #{tpu_custom_call.1} parent=35 // pred_check
          %p241 = pneg %p107
        $region50: #{tpu_custom_call.1} parent=35 // pred_check_branch
          %243 = sbr.rel (%p241) target = $region52
        $region51: #{tpu_custom_call.1} parent=35 // pred_region
          %245 = dma.done [#allocation11], 48
        $region52: #{tpu_custom_call.1} parent=35 // pred_fallthru
          _
        %s246 = sand.u32 %s31, 1
        %s247 = scalar_lea.sflag [#allocation5], %s246
        %s248 = sand.u32 %s31, 1
        %s249 = smul.addr %s248, 48
        %s250 = scalar_lea.vmem [#allocation4], %s249
        %p251 = pneg %p44
        %p252 = pneg %p41
        %p253 = pneg %p65
        %p254 = pneg %p62
        %p255 = pneg %p86
        %p256 = pneg %p83
        %p257 = pneg %p107
        %p258 = pneg %p104
        %p259 = pneg %p133
        %p260 = pneg %p130
        %s261 = sand.u32 %s120, 1
        %s262 = scalar_lea.sflag [#allocation6], %s261
        %s263 = sand.u32 %s120, 1
        %s264 = smul.addr %s263, 48
        %s265 = scalar_lea.vmem [#allocation12], %s264
        %v267 = vld [vmem:[%s225] sm:$0xff]
        %v268 = vld [vmem:[%s225 + $0x8] sm:$0xff]
        %v269 = vld [vmem:[%s225 + $0x10] sm:$0xff]
        %v270 = vld [vmem:[%s225 + $0x18] sm:$0xff]
        %v271 = vld [vmem:[%s225 + $0x20] sm:$0xff]
        %v272 = vld [vmem:[%s225 + $0x28] sm:$0xff]
        %v273 = vpack.c.bf16 %v270, %v267
        %v274 = vpack.c.bf16 %v271, %v268
        %v275 = vpack.c.bf16 %v272, %v269
        %v276 = vld [vmem:[#allocation7] sm:$0xff]
        %v277 = vld [vmem:[#allocation7 + $0x8] sm:$0xff]
        %v278 = vld [vmem:[#allocation7 + $0x10] sm:$0xff]
        %v279 = vld [vmem:[#allocation7 + $0x18] sm:$0xff]
        %v280 = vld [vmem:[#allocation7 + $0x20] sm:$0xf]
        %v281 = vld [vmem:[#allocation7 + $0x24] sm:$0xff]
        %v282 = vld [vmem:[#allocation7 + $0x2c] sm:$0xff]
        %v283 = vld [vmem:[#allocation7 + $0x34] sm:$0xff]
        %v284 = vld [vmem:[#allocation7 + $0x3c] sm:$0xff]
        %v285 = vld [vmem:[#allocation7 + $0x44] sm:$0xf]
        %v286 = vld [vmem:[#allocation7 + $0x48] sm:$0xff]
        %v287 = vld [vmem:[#allocation7 + $0x50] sm:$0xff]
        %v288 = vld [vmem:[#allocation7 + $0x58] sm:$0xff]
        %v289 = vld [vmem:[#allocation7 + $0x60] sm:$0xff]
        %v290 = vld [vmem:[#allocation7 + $0x68] sm:$0xf]
        %v291 = vld [vmem:[#allocation7 + $0x6c] sm:$0xff]
        %v292 = vld [vmem:[#allocation7 + $0x74] sm:$0xff]
        %v293 = vld [vmem:[#allocation7 + $0x7c] sm:$0xff]
        %v294 = vld [vmem:[#allocation7 + $0x84] sm:$0xff]
        %v295 = vld [vmem:[#allocation7 + $0x8c] sm:$0xf]
        %v296 = vld [vmem:[#allocation7 + $0x90] sm:$0xff]
        %v297 = vld [vmem:[#allocation7 + $0x98] sm:$0xff]
        %v298 = vld [vmem:[#allocation7 + $0xa0] sm:$0xff]
        %v299 = vld [vmem:[#allocation7 + $0xa8] sm:$0xff]
        %v300 = vld [vmem:[#allocation7 + $0xb0] sm:$0xf]
        %v301 = vld [vmem:[#allocation7 + $0xb4] sm:$0xff]
        %v302 = vld [vmem:[#allocation7 + $0xbc] sm:$0xff]
        %v303 = vld [vmem:[#allocation7 + $0xc4] sm:$0xff]
        %v304 = vld [vmem:[#allocation7 + $0xcc] sm:$0xff]
        %v305 = vld [vmem:[#allocation7 + $0xd4] sm:$0xf]
        %v306 = vld [vmem:[#allocation7 + $0xd8] sm:$0xff]
        %v307 = vld [vmem:[#allocation7 + $0xe0] sm:$0xff]
        %v308 = vld [vmem:[#allocation7 + $0xe8] sm:$0xff]
        %v309 = vld [vmem:[#allocation7 + $0xf0] sm:$0xff]
        %v310 = vld [vmem:[#allocation7 + $0xf8] sm:$0xf]
        %v311 = vld [vmem:[#allocation7 + $0xfc] sm:$0xff]
        %v312 = vld [vmem:[#allocation7 + $0x104] sm:$0xff]
        %v313 = vld [vmem:[#allocation7 + $0x10c] sm:$0xff]
        %v314 = vld [vmem:[#allocation7 + $0x114] sm:$0xff]
        %v315 = vld [vmem:[#allocation7 + $0x11c] sm:$0xf]
        %v316 = vld [vmem:[#allocation7 + $0x120] sm:$0xff]
        %v317 = vld [vmem:[#allocation7 + $0x128] sm:$0xff]
        %v318 = vld [vmem:[#allocation7 + $0x130] sm:$0xff]
        %v319 = vld [vmem:[#allocation7 + $0x138] sm:$0xff]
        %v320 = vld [vmem:[#allocation7 + $0x140] sm:$0xf]
        %v321 = vld [vmem:[#allocation7 + $0x144] sm:$0xff]
        %v322 = vld [vmem:[#allocation7 + $0x14c] sm:$0xff]
        %v323 = vld [vmem:[#allocation7 + $0x154] sm:$0xff]
        %v324 = vld [vmem:[#allocation7 + $0x15c] sm:$0xff]
        %v325 = vld [vmem:[#allocation7 + $0x164] sm:$0xf]
        %v326 = vld [vmem:[#allocation7 + $0x168] sm:$0xff]
        %v327 = vld [vmem:[#allocation7 + $0x170] sm:$0xff]
        %v328 = vld [vmem:[#allocation7 + $0x178] sm:$0xff]
        %v329 = vld [vmem:[#allocation7 + $0x180] sm:$0xff]
        %v330 = vld [vmem:[#allocation7 + $0x188] sm:$0xf]
        %v331 = vld [vmem:[#allocation7 + $0x18c] sm:$0xff]
        %v332 = vld [vmem:[#allocation7 + $0x194] sm:$0xff]
        %v333 = vld [vmem:[#allocation7 + $0x19c] sm:$0xff]
        %v334 = vld [vmem:[#allocation7 + $0x1a4] sm:$0xff]
        %v335 = vld [vmem:[#allocation7 + $0x1ac] sm:$0xf]
        %v336 = vld [vmem:[#allocation7 + $0x1b0] sm:$0xff]
        %v337 = vld [vmem:[#allocation7 + $0x1b8] sm:$0xff]
        %v338 = vld [vmem:[#allocation7 + $0x1c0] sm:$0xff]
        %v339 = vld [vmem:[#allocation7 + $0x1c8] sm:$0xff]
        %v340 = vld [vmem:[#allocation7 + $0x1d0] sm:$0xf]
        %v341 = vld [vmem:[#allocation7 + $0x1d4] sm:$0xff]
        %v342 = vld [vmem:[#allocation7 + $0x1dc] sm:$0xff]
        %v343 = vld [vmem:[#allocation7 + $0x1e4] sm:$0xff]
        %v344 = vld [vmem:[#allocation7 + $0x1ec] sm:$0xff]
        %v345 = vld [vmem:[#allocation7 + $0x1f4] sm:$0xf]
        %v346 = vld [vmem:[#allocation7 + $0x1f8] sm:$0xff]
        %v347 = vld [vmem:[#allocation7 + $0x200] sm:$0xff]
        %v348 = vld [vmem:[#allocation7 + $0x208] sm:$0xff]
        %v349 = vld [vmem:[#allocation7 + $0x210] sm:$0xff]
        %v350 = vld [vmem:[#allocation7 + $0x218] sm:$0xf]
        %v351 = vld [vmem:[#allocation7 + $0x21c] sm:$0xff]
        %v352 = vld [vmem:[#allocation7 + $0x224] sm:$0xff]
        %v353 = vld [vmem:[#allocation7 + $0x22c] sm:$0xff]
        %v354 = vld [vmem:[#allocation7 + $0x234] sm:$0xff]
        %v355 = vld [vmem:[#allocation7 + $0x23c] sm:$0xf]
        %v356 = vld [vmem:[#allocation7 + $0x240] sm:$0xff]
        %v357 = vld [vmem:[#allocation7 + $0x248] sm:$0xff]
        %v358 = vld [vmem:[#allocation7 + $0x250] sm:$0xff]
        %v359 = vld [vmem:[#allocation7 + $0x258] sm:$0xff]
        %v360 = vld [vmem:[#allocation7 + $0x260] sm:$0xf]
        %v361 = vld [vmem:[#allocation7 + $0x264] sm:$0xff]
        %v362 = vld [vmem:[#allocation7 + $0x26c] sm:$0xff]
        %v363 = vld [vmem:[#allocation7 + $0x274] sm:$0xff]
        %v364 = vld [vmem:[#allocation7 + $0x27c] sm:$0xff]
        %v365 = vld [vmem:[#allocation7 + $0x284] sm:$0xf]
        %v366 = vld [vmem:[#allocation7 + $0x288] sm:$0xff]
        %v367 = vld [vmem:[#allocation7 + $0x290] sm:$0xff]
        %v368 = vld [vmem:[#allocation7 + $0x298] sm:$0xff]
        %v369 = vld [vmem:[#allocation7 + $0x2a0] sm:$0xff]
        %v370 = vld [vmem:[#allocation7 + $0x2a8] sm:$0xf]
        %v371 = vld [vmem:[#allocation7 + $0x2ac] sm:$0xff]
        %v372 = vld [vmem:[#allocation7 + $0x2b4] sm:$0xff]
        %v373 = vld [vmem:[#allocation7 + $0x2bc] sm:$0xff]
        %v374 = vld [vmem:[#allocation7 + $0x2c4] sm:$0xff]
        %v375 = vld [vmem:[#allocation7 + $0x2cc] sm:$0xf]
        %v376 = vld [vmem:[#allocation7 + $0x2d0] sm:$0xff]
        %v377 = vld [vmem:[#allocation7 + $0x2d8] sm:$0xff]
        %v378 = vld [vmem:[#allocation7 + $0x2e0] sm:$0xff]
        %v379 = vld [vmem:[#allocation7 + $0x2e8] sm:$0xff]
        %v380 = vld [vmem:[#allocation7 + $0x2f0] sm:$0xf]
        %v381 = vld [vmem:[#allocation7 + $0x2f4] sm:$0xff]
        %v382 = vld [vmem:[#allocation7 + $0x2fc] sm:$0xff]
        %v383 = vld [vmem:[#allocation7 + $0x304] sm:$0xff]
        %v384 = vld [vmem:[#allocation7 + $0x30c] sm:$0xff]
        %v385 = vld [vmem:[#allocation7 + $0x314] sm:$0xf]
        %v386 = vld [vmem:[#allocation7 + $0x318] sm:$0xff]
        %v387 = vld [vmem:[#allocation7 + $0x320] sm:$0xff]
        %v388 = vld [vmem:[#allocation7 + $0x328] sm:$0xff]
        %v389 = vld [vmem:[#allocation7 + $0x330] sm:$0xff]
        %v390 = vld [vmem:[#allocation7 + $0x338] sm:$0xf]
        %v391 = vld [vmem:[#allocation7 + $0x33c] sm:$0xff]
        %v392 = vld [vmem:[#allocation7 + $0x344] sm:$0xff]
        %v393 = vld [vmem:[#allocation7 + $0x34c] sm:$0xff]
        %v394 = vld [vmem:[#allocation7 + $0x354] sm:$0xff]
        %v395 = vld [vmem:[#allocation7 + $0x35c] sm:$0xf]
        %v396 = vld [vmem:[#allocation7 + $0x360] sm:$0xff]
        %v397 = vld [vmem:[#allocation7 + $0x368] sm:$0xff]
        %v398 = vld [vmem:[#allocation7 + $0x370] sm:$0xff]
        %v399 = vld [vmem:[#allocation7 + $0x378] sm:$0xff]
        %v400 = vld [vmem:[#allocation7 + $0x380] sm:$0xf]
        %v401 = vld [vmem:[#allocation7 + $0x384] sm:$0xff]
        %v402 = vld [vmem:[#allocation7 + $0x38c] sm:$0xff]
        %v403 = vld [vmem:[#allocation7 + $0x394] sm:$0xff]
        %v404 = vld [vmem:[#allocation7 + $0x39c] sm:$0xff]
        %v405 = vld [vmem:[#allocation7 + $0x3a4] sm:$0xf]
        %v406 = vld [vmem:[#allocation7 + $0x3a8] sm:$0xff]
        %v407 = vld [vmem:[#allocation7 + $0x3b0] sm:$0xff]
        %v408 = vld [vmem:[#allocation7 + $0x3b8] sm:$0xff]
        %v409 = vld [vmem:[#allocation7 + $0x3c0] sm:$0xff]
        %v410 = vld [vmem:[#allocation7 + $0x3c8] sm:$0xf]
        %v411 = vld [vmem:[#allocation7 + $0x3cc] sm:$0xff]
        %v412 = vld [vmem:[#allocation7 + $0x3d4] sm:$0xff]
        %v413 = vld [vmem:[#allocation7 + $0x3dc] sm:$0xff]
        %v414 = vld [vmem:[#allocation7 + $0x3e4] sm:$0xff]
        %v415 = vld [vmem:[#allocation7 + $0x3ec] sm:$0xf]
        %v416 = vld [vmem:[#allocation7 + $0x3f0] sm:$0xff]
        %v417 = vld [vmem:[#allocation7 + $0x3f8] sm:$0xff]
        %v418 = vld [vmem:[#allocation7 + $0x400] sm:$0xff]
        %v419 = vld [vmem:[#allocation7 + $0x408] sm:$0xff]
        %v420 = vld [vmem:[#allocation7 + $0x410] sm:$0xf]
        %v421 = vld [vmem:[#allocation7 + $0x414] sm:$0xff]
        %v422 = vld [vmem:[#allocation7 + $0x41c] sm:$0xff]
        %v423 = vld [vmem:[#allocation7 + $0x424] sm:$0xff]
        %v424 = vld [vmem:[#allocation7 + $0x42c] sm:$0xff]
        %v425 = vld [vmem:[#allocation7 + $0x434] sm:$0xf]
        %v426 = vld [vmem:[#allocation7 + $0x438] sm:$0xff]
        %v427 = vld [vmem:[#allocation7 + $0x440] sm:$0xff]
        %v428 = vld [vmem:[#allocation7 + $0x448] sm:$0xff]
        %v429 = vld [vmem:[#allocation7 + $0x450] sm:$0xff]
        %v430 = vld [vmem:[#allocation7 + $0x458] sm:$0xf]
        %v431 = vld [vmem:[#allocation7 + $0x45c] sm:$0xff]
        %v432 = vld [vmem:[#allocation7 + $0x464] sm:$0xff]
        %v433 = vld [vmem:[#allocation7 + $0x46c] sm:$0xff]
        %v434 = vld [vmem:[#allocation7 + $0x474] sm:$0xff]
        %v435 = vld [vmem:[#allocation7 + $0x47c] sm:$0xf]
        %v436 = vld [vmem:[#allocation7 + $0x480] sm:$0xff]
        %v437 = vld [vmem:[#allocation7 + $0x488] sm:$0xff]
        %v438 = vld [vmem:[#allocation7 + $0x490] sm:$0xff]
        %v439 = vld [vmem:[#allocation7 + $0x498] sm:$0xff]
        %v440 = vld [vmem:[#allocation7 + $0x4a0] sm:$0xf]
        %v441 = vld [vmem:[#allocation7 + $0x4a4] sm:$0xff]
        %v442 = vld [vmem:[#allocation7 + $0x4ac] sm:$0xff]
        %v443 = vld [vmem:[#allocation7 + $0x4b4] sm:$0xff]
        %v444 = vld [vmem:[#allocation7 + $0x4bc] sm:$0xff]
        %v445 = vld [vmem:[#allocation7 + $0x4c4] sm:$0xf]
        %v446 = vld [vmem:[#allocation7 + $0x4c8] sm:$0xff]
        %v447 = vld [vmem:[#allocation7 + $0x4d0] sm:$0xff]
        %v448 = vld [vmem:[#allocation7 + $0x4d8] sm:$0xff]
        %v449 = vld [vmem:[#allocation7 + $0x4e0] sm:$0xff]
        %v450 = vld [vmem:[#allocation7 + $0x4e8] sm:$0xf]
        %v451 = vld [vmem:[#allocation7 + $0x4ec] sm:$0xff]
        %v452 = vld [vmem:[#allocation7 + $0x4f4] sm:$0xff]
        %v453 = vld [vmem:[#allocation7 + $0x4fc] sm:$0xff]
        %v454 = vld [vmem:[#allocation7 + $0x504] sm:$0xff]
        %v455 = vld [vmem:[#allocation7 + $0x50c] sm:$0xf]
        %v456 = vld [vmem:[#allocation7 + $0x510] sm:$0xff]
        %v457 = vld [vmem:[#allocation7 + $0x518] sm:$0xff]
        %v458 = vld [vmem:[#allocation7 + $0x520] sm:$0xff]
        %v459 = vld [vmem:[#allocation7 + $0x528] sm:$0xff]
        %v460 = vld [vmem:[#allocation7 + $0x530] sm:$0xf]
        %v461 = vld [vmem:[#allocation7 + $0x534] sm:$0xff]
        %v462 = vld [vmem:[#allocation7 + $0x53c] sm:$0xff]
        %v463 = vld [vmem:[#allocation7 + $0x544] sm:$0xff]
        %v464 = vld [vmem:[#allocation7 + $0x54c] sm:$0xff]
        %v465 = vld [vmem:[#allocation7 + $0x554] sm:$0xf]
        %v466 = vld [vmem:[#allocation7 + $0x558] sm:$0xff]
        %v467 = vld [vmem:[#allocation7 + $0x560] sm:$0xff]
        %v468 = vld [vmem:[#allocation7 + $0x568] sm:$0xff]
        %v469 = vld [vmem:[#allocation7 + $0x570] sm:$0xff]
        %v470 = vld [vmem:[#allocation7 + $0x578] sm:$0xf]
        %v471 = vld [vmem:[#allocation7 + $0x57c] sm:$0xff]
        %v472 = vld [vmem:[#allocation7 + $0x584] sm:$0xff]
        %v473 = vld [vmem:[#allocation7 + $0x58c] sm:$0xff]
        %v474 = vld [vmem:[#allocation7 + $0x594] sm:$0xff]
        %v475 = vld [vmem:[#allocation7 + $0x59c] sm:$0xf]
        %v476 = vld [vmem:[#allocation7 + $0x5a0] sm:$0xff]
        %v477 = vld [vmem:[#allocation7 + $0x5a8] sm:$0xff]
        %v478 = vld [vmem:[#allocation7 + $0x5b0] sm:$0xff]
        %v479 = vld [vmem:[#allocation7 + $0x5b8] sm:$0xff]
        %v480 = vld [vmem:[#allocation7 + $0x5c0] sm:$0xf]
        %v481 = vld [vmem:[#allocation7 + $0x5c4] sm:$0xff]
        %v482 = vld [vmem:[#allocation7 + $0x5cc] sm:$0xff]
        %v483 = vld [vmem:[#allocation7 + $0x5d4] sm:$0xff]
        %v484 = vld [vmem:[#allocation7 + $0x5dc] sm:$0xff]
        %v485 = vld [vmem:[#allocation7 + $0x5e4] sm:$0xf]
        %v486 = vld [vmem:[#allocation7 + $0x5e8] sm:$0xff]
        %v487 = vld [vmem:[#allocation7 + $0x5f0] sm:$0xff]
        %v488 = vld [vmem:[#allocation7 + $0x5f8] sm:$0xff]
        %v489 = vld [vmem:[#allocation7 + $0x600] sm:$0xff]
        %v490 = vld [vmem:[#allocation7 + $0x608] sm:$0xf]
        %v491 = vld [vmem:[#allocation7 + $0x60c] sm:$0xff]
        %v492 = vld [vmem:[#allocation7 + $0x614] sm:$0xff]
        %v493 = vld [vmem:[#allocation7 + $0x61c] sm:$0xff]
        %v494 = vld [vmem:[#allocation7 + $0x624] sm:$0xff]
        %v495 = vld [vmem:[#allocation7 + $0x62c] sm:$0xf]
        %v496 = vld [vmem:[#allocation7 + $0x630] sm:$0xff]
        %v497 = vld [vmem:[#allocation7 + $0x638] sm:$0xff]
        %v498 = vld [vmem:[#allocation7 + $0x640] sm:$0xff]
        %v499 = vld [vmem:[#allocation7 + $0x648] sm:$0xff]
        %v500 = vld [vmem:[#allocation7 + $0x650] sm:$0xf]
        %v501 = vld [vmem:[#allocation7 + $0x654] sm:$0xff]
        %v502 = vld [vmem:[#allocation7 + $0x65c] sm:$0xff]
        %v503 = vld [vmem:[#allocation7 + $0x664] sm:$0xff]
        %v504 = vld [vmem:[#allocation7 + $0x66c] sm:$0xff]
        %v505 = vld [vmem:[#allocation7 + $0x674] sm:$0xf]
        %v506 = vld [vmem:[#allocation7 + $0x678] sm:$0xff]
        %v507 = vld [vmem:[#allocation7 + $0x680] sm:$0xff]
        %v508 = vld [vmem:[#allocation7 + $0x688] sm:$0xff]
        %v509 = vld [vmem:[#allocation7 + $0x690] sm:$0xff]
        %v510 = vld [vmem:[#allocation7 + $0x698] sm:$0xf]
        %v511 = vld [vmem:[#allocation7 + $0x69c] sm:$0xff]
        %v512 = vld [vmem:[#allocation7 + $0x6a4] sm:$0xff]
        %v513 = vld [vmem:[#allocation7 + $0x6ac] sm:$0xff]
        %v514 = vld [vmem:[#allocation7 + $0x6b4] sm:$0xff]
        %v515 = vld [vmem:[#allocation7 + $0x6bc] sm:$0xf]
        %v756 = vunpack.c.l.b16 %v276
        %v757 = vunpack.c.h.b16 %v276
        %v758 = vunpack.c.l.b16 %v277
        %v759 = vunpack.c.h.b16 %v277
        %v760 = vunpack.c.l.b16 %v278
        %v761 = vunpack.c.h.b16 %v278
        %v762 = vunpack.c.l.b16 %v279
        %v763 = vunpack.c.h.b16 %v279
        %v764 = vunpack.c.l.b16 %v280
        %v765 = vunpack.c.l.b16 %v281
        %v766 = vunpack.c.h.b16 %v281
        %v767 = vunpack.c.l.b16 %v282
        %v768 = vunpack.c.h.b16 %v282
        %v769 = vunpack.c.l.b16 %v283
        %v770 = vunpack.c.h.b16 %v283
        %v771 = vunpack.c.l.b16 %v284
        %v772 = vunpack.c.h.b16 %v284
        %v773 = vunpack.c.l.b16 %v285
        %v774 = vunpack.c.l.b16 %v286
        %v775 = vunpack.c.h.b16 %v286
        %v776 = vunpack.c.l.b16 %v287
        %v777 = vunpack.c.h.b16 %v287
        %v778 = vunpack.c.l.b16 %v288
        %v779 = vunpack.c.h.b16 %v288
        %v780 = vunpack.c.l.b16 %v289
        %v781 = vunpack.c.h.b16 %v289
        %v782 = vunpack.c.l.b16 %v290
        %v783 = vunpack.c.l.b16 %v291
        %v784 = vunpack.c.h.b16 %v291
        %v785 = vunpack.c.l.b16 %v292
        %v786 = vunpack.c.h.b16 %v292
        %v787 = vunpack.c.l.b16 %v293
        %v788 = vunpack.c.h.b16 %v293
        %v789 = vunpack.c.l.b16 %v294
        %v790 = vunpack.c.h.b16 %v294
        %v791 = vunpack.c.l.b16 %v295
        %v792 = vunpack.c.l.b16 %v296
        %v793 = vunpack.c.h.b16 %v296
        %v794 = vunpack.c.l.b16 %v297
        %v795 = vunpack.c.h.b16 %v297
        %v796 = vunpack.c.l.b16 %v298
        %v797 = vunpack.c.h.b16 %v298
        %v798 = vunpack.c.l.b16 %v299
        %v799 = vunpack.c.h.b16 %v299
        %v800 = vunpack.c.l.b16 %v300
        %v801 = vunpack.c.l.b16 %v301
        %v802 = vunpack.c.h.b16 %v301
        %v803 = vunpack.c.l.b16 %v302
        %v804 = vunpack.c.h.b16 %v302
        %v805 = vunpack.c.l.b16 %v303
        %v806 = vunpack.c.h.b16 %v303
        %v807 = vunpack.c.l.b16 %v304
        %v808 = vunpack.c.h.b16 %v304
        %v809 = vunpack.c.l.b16 %v305
        %v810 = vunpack.c.l.b16 %v306
        %v811 = vunpack.c.h.b16 %v306
        %v812 = vunpack.c.l.b16 %v307
        %v813 = vunpack.c.h.b16 %v307
        %v814 = vunpack.c.l.b16 %v308
        %v815 = vunpack.c.h.b16 %v308
        %v816 = vunpack.c.l.b16 %v309
        %v817 = vunpack.c.h.b16 %v309
        %v818 = vunpack.c.l.b16 %v310
        %v819 = vunpack.c.l.b16 %v311
        %v820 = vunpack.c.h.b16 %v311
        %v821 = vunpack.c.l.b16 %v312
        %v822 = vunpack.c.h.b16 %v312
        %v823 = vunpack.c.l.b16 %v313
        %v824 = vunpack.c.h.b16 %v313
        %v825 = vunpack.c.l.b16 %v314
        %v826 = vunpack.c.h.b16 %v314
        %v827 = vunpack.c.l.b16 %v315
        %v828 = vunpack.c.l.b16 %v316
        %v829 = vunpack.c.h.b16 %v316
        %v830 = vunpack.c.l.b16 %v317
        %v831 = vunpack.c.h.b16 %v317
        %v832 = vunpack.c.l.b16 %v318
        %v833 = vunpack.c.h.b16 %v318
        %v834 = vunpack.c.l.b16 %v319
        %v835 = vunpack.c.h.b16 %v319
        %v836 = vunpack.c.l.b16 %v320
        %v837 = vunpack.c.l.b16 %v321
        %v838 = vunpack.c.h.b16 %v321
        %v839 = vunpack.c.l.b16 %v322
        %v840 = vunpack.c.h.b16 %v322
        %v841 = vunpack.c.l.b16 %v323
        %v842 = vunpack.c.h.b16 %v323
        %v843 = vunpack.c.l.b16 %v324
        %v844 = vunpack.c.h.b16 %v324
        %v845 = vunpack.c.l.b16 %v325
        %v846 = vunpack.c.l.b16 %v326
        %v847 = vunpack.c.h.b16 %v326
        %v848 = vunpack.c.l.b16 %v327
        %v849 = vunpack.c.h.b16 %v327
        %v850 = vunpack.c.l.b16 %v328
        %v851 = vunpack.c.h.b16 %v328
        %v852 = vunpack.c.l.b16 %v329
        %v853 = vunpack.c.h.b16 %v329
        %v854 = vunpack.c.l.b16 %v330
        %v855 = vunpack.c.l.b16 %v331
        %v856 = vunpack.c.h.b16 %v331
        %v857 = vunpack.c.l.b16 %v332
        %v858 = vunpack.c.h.b16 %v332
        %v859 = vunpack.c.l.b16 %v333
        %v860 = vunpack.c.h.b16 %v333
        %v861 = vunpack.c.l.b16 %v334
        %v862 = vunpack.c.h.b16 %v334
        %v863 = vunpack.c.l.b16 %v335
        %v864 = vunpack.c.l.b16 %v336
        %v865 = vunpack.c.h.b16 %v336
        %v866 = vunpack.c.l.b16 %v337
        %v867 = vunpack.c.h.b16 %v337
        %v868 = vunpack.c.l.b16 %v338
        %v869 = vunpack.c.h.b16 %v338
        %v870 = vunpack.c.l.b16 %v339
        %v871 = vunpack.c.h.b16 %v339
        %v872 = vunpack.c.l.b16 %v340
        %v873 = vunpack.c.l.b16 %v341
        %v874 = vunpack.c.h.b16 %v341
        %v875 = vunpack.c.l.b16 %v342
        %v876 = vunpack.c.h.b16 %v342
        %v877 = vunpack.c.l.b16 %v343
        %v878 = vunpack.c.h.b16 %v343
        %v879 = vunpack.c.l.b16 %v344
        %v880 = vunpack.c.h.b16 %v344
        %v881 = vunpack.c.l.b16 %v345
        %v882 = vunpack.c.l.b16 %v346
        %v883 = vunpack.c.h.b16 %v346
        %v884 = vunpack.c.l.b16 %v347
        %v885 = vunpack.c.h.b16 %v347
        %v886 = vunpack.c.l.b16 %v348
        %v887 = vunpack.c.h.b16 %v348
        %v888 = vunpack.c.l.b16 %v349
        %v889 = vunpack.c.h.b16 %v349
        %v890 = vunpack.c.l.b16 %v350
        %v891 = vunpack.c.l.b16 %v351
        %v892 = vunpack.c.h.b16 %v351
        %v893 = vunpack.c.l.b16 %v352
        %v894 = vunpack.c.h.b16 %v352
        %v895 = vunpack.c.l.b16 %v353
        %v896 = vunpack.c.h.b16 %v353
        %v897 = vunpack.c.l.b16 %v354
        %v898 = vunpack.c.h.b16 %v354
        %v899 = vunpack.c.l.b16 %v355
        %v900 = vunpack.c.l.b16 %v356
        %v901 = vunpack.c.h.b16 %v356
        %v902 = vunpack.c.l.b16 %v357
        %v903 = vunpack.c.h.b16 %v357
        %v904 = vunpack.c.l.b16 %v358
        %v905 = vunpack.c.h.b16 %v358
        %v906 = vunpack.c.l.b16 %v359
        %v907 = vunpack.c.h.b16 %v359
        %v908 = vunpack.c.l.b16 %v360
        %v909 = vunpack.c.l.b16 %v361
        %v910 = vunpack.c.h.b16 %v361
        %v911 = vunpack.c.l.b16 %v362
        %v912 = vunpack.c.h.b16 %v362
        %v913 = vunpack.c.l.b16 %v363
        %v914 = vunpack.c.h.b16 %v363
        %v915 = vunpack.c.l.b16 %v364
        %v916 = vunpack.c.h.b16 %v364
        %v917 = vunpack.c.l.b16 %v365
        %v918 = vunpack.c.l.b16 %v366
        %v919 = vunpack.c.h.b16 %v366
        %v920 = vunpack.c.l.b16 %v367
        %v921 = vunpack.c.h.b16 %v367
        %v922 = vunpack.c.l.b16 %v368
        %v923 = vunpack.c.h.b16 %v368
        %v924 = vunpack.c.l.b16 %v369
        %v925 = vunpack.c.h.b16 %v369
        %v926 = vunpack.c.l.b16 %v370
        %v927 = vunpack.c.l.b16 %v371
        %v928 = vunpack.c.h.b16 %v371
        %v929 = vunpack.c.l.b16 %v372
        %v930 = vunpack.c.h.b16 %v372
        %v931 = vunpack.c.l.b16 %v373
        %v932 = vunpack.c.h.b16 %v373
        %v933 = vunpack.c.l.b16 %v374
        %v934 = vunpack.c.h.b16 %v374
        %v935 = vunpack.c.l.b16 %v375
        %v936 = vunpack.c.l.b16 %v376
        %v937 = vunpack.c.h.b16 %v376
        %v938 = vunpack.c.l.b16 %v377
        %v939 = vunpack.c.h.b16 %v377
        %v940 = vunpack.c.l.b16 %v378
        %v941 = vunpack.c.h.b16 %v378
        %v942 = vunpack.c.l.b16 %v379
        %v943 = vunpack.c.h.b16 %v379
        %v944 = vunpack.c.l.b16 %v380
        %v945 = vunpack.c.l.b16 %v381
        %v946 = vunpack.c.h.b16 %v381
        %v947 = vunpack.c.l.b16 %v382
        %v948 = vunpack.c.h.b16 %v382
        %v949 = vunpack.c.l.b16 %v383
        %v950 = vunpack.c.h.b16 %v383
        %v951 = vunpack.c.l.b16 %v384
        %v952 = vunpack.c.h.b16 %v384
        %v953 = vunpack.c.l.b16 %v385
        %v954 = vunpack.c.l.b16 %v386
        %v955 = vunpack.c.h.b16 %v386
        %v956 = vunpack.c.l.b16 %v387
        %v957 = vunpack.c.h.b16 %v387
        %v958 = vunpack.c.l.b16 %v388
        %v959 = vunpack.c.h.b16 %v388
        %v960 = vunpack.c.l.b16 %v389
        %v961 = vunpack.c.h.b16 %v389
        %v962 = vunpack.c.l.b16 %v390
        %v963 = vunpack.c.l.b16 %v391
        %v964 = vunpack.c.h.b16 %v391
        %v965 = vunpack.c.l.b16 %v392
        %v966 = vunpack.c.h.b16 %v392
        %v967 = vunpack.c.l.b16 %v393
        %v968 = vunpack.c.h.b16 %v393
        %v969 = vunpack.c.l.b16 %v394
        %v970 = vunpack.c.h.b16 %v394
        %v971 = vunpack.c.l.b16 %v395
        %v972 = vunpack.c.l.b16 %v396
        %v973 = vunpack.c.h.b16 %v396
        %v974 = vunpack.c.l.b16 %v397
        %v975 = vunpack.c.h.b16 %v397
        %v976 = vunpack.c.l.b16 %v398
        %v977 = vunpack.c.h.b16 %v398
        %v978 = vunpack.c.l.b16 %v399
        %v979 = vunpack.c.h.b16 %v399
        %v980 = vunpack.c.l.b16 %v400
        %v981 = vunpack.c.l.b16 %v401
        %v982 = vunpack.c.h.b16 %v401
        %v983 = vunpack.c.l.b16 %v402
        %v984 = vunpack.c.h.b16 %v402
        %v985 = vunpack.c.l.b16 %v403
        %v986 = vunpack.c.h.b16 %v403
        %v987 = vunpack.c.l.b16 %v404
        %v988 = vunpack.c.h.b16 %v404
        %v989 = vunpack.c.l.b16 %v405
        %v990 = vunpack.c.l.b16 %v406
        %v991 = vunpack.c.h.b16 %v406
        %v992 = vunpack.c.l.b16 %v407
        %v993 = vunpack.c.h.b16 %v407
        %v994 = vunpack.c.l.b16 %v408
        %v995 = vunpack.c.h.b16 %v408
        %v996 = vunpack.c.l.b16 %v409
        %v997 = vunpack.c.h.b16 %v409
        %v998 = vunpack.c.l.b16 %v410
        %v999 = vunpack.c.l.b16 %v411
        %v1000 = vunpack.c.h.b16 %v411
        %v1001 = vunpack.c.l.b16 %v412
        %v1002 = vunpack.c.h.b16 %v412
        %v1003 = vunpack.c.l.b16 %v413
        %v1004 = vunpack.c.h.b16 %v413
        %v1005 = vunpack.c.l.b16 %v414
        %v1006 = vunpack.c.h.b16 %v414
        %v1007 = vunpack.c.l.b16 %v415
        %v1008 = vunpack.c.l.b16 %v416
        %v1009 = vunpack.c.h.b16 %v416
        %v1010 = vunpack.c.l.b16 %v417
        %v1011 = vunpack.c.h.b16 %v417
        %v1012 = vunpack.c.l.b16 %v418
        %v1013 = vunpack.c.h.b16 %v418
        %v1014 = vunpack.c.l.b16 %v419
        %v1015 = vunpack.c.h.b16 %v419
        %v1016 = vunpack.c.l.b16 %v420
        %v1017 = vunpack.c.l.b16 %v421
        %v1018 = vunpack.c.h.b16 %v421
        %v1019 = vunpack.c.l.b16 %v422
        %v1020 = vunpack.c.h.b16 %v422
        %v1021 = vunpack.c.l.b16 %v423
        %v1022 = vunpack.c.h.b16 %v423
        %v1023 = vunpack.c.l.b16 %v424
        %v1024 = vunpack.c.h.b16 %v424
        %v1025 = vunpack.c.l.b16 %v425
        %v1026 = vunpack.c.l.b16 %v426
        %v1027 = vunpack.c.h.b16 %v426
        %v1028 = vunpack.c.l.b16 %v427
        %v1029 = vunpack.c.h.b16 %v427
        %v1030 = vunpack.c.l.b16 %v428
        %v1031 = vunpack.c.h.b16 %v428
        %v1032 = vunpack.c.l.b16 %v429
        %v1033 = vunpack.c.h.b16 %v429
        %v1034 = vunpack.c.l.b16 %v430
        %v1035 = vunpack.c.l.b16 %v431
        %v1036 = vunpack.c.h.b16 %v431
        %v1037 = vunpack.c.l.b16 %v432
        %v1038 = vunpack.c.h.b16 %v432
        %v1039 = vunpack.c.l.b16 %v433
        %v1040 = vunpack.c.h.b16 %v433
        %v1041 = vunpack.c.l.b16 %v434
        %v1042 = vunpack.c.h.b16 %v434
        %v1043 = vunpack.c.l.b16 %v435
        %v1044 = vunpack.c.l.b16 %v436
        %v1045 = vunpack.c.h.b16 %v436
        %v1046 = vunpack.c.l.b16 %v437
        %v1047 = vunpack.c.h.b16 %v437
        %v1048 = vunpack.c.l.b16 %v438
        %v1049 = vunpack.c.h.b16 %v438
        %v1050 = vunpack.c.l.b16 %v439
        %v1051 = vunpack.c.h.b16 %v439
        %v1052 = vunpack.c.l.b16 %v440
        %v1053 = vunpack.c.l.b16 %v441
        %v1054 = vunpack.c.h.b16 %v441
        %v1055 = vunpack.c.l.b16 %v442
        %v1056 = vunpack.c.h.b16 %v442
        %v1057 = vunpack.c.l.b16 %v443
        %v1058 = vunpack.c.h.b16 %v443
        %v1059 = vunpack.c.l.b16 %v444
        %v1060 = vunpack.c.h.b16 %v444
        %v1061 = vunpack.c.l.b16 %v445
        %v1062 = vunpack.c.l.b16 %v446
        %v1063 = vunpack.c.h.b16 %v446
        %v1064 = vunpack.c.l.b16 %v447
        %v1065 = vunpack.c.h.b16 %v447
        %v1066 = vunpack.c.l.b16 %v448
        %v1067 = vunpack.c.h.b16 %v448
        %v1068 = vunpack.c.l.b16 %v449
        %v1069 = vunpack.c.h.b16 %v449
        %v1070 = vunpack.c.l.b16 %v450
        %v1071 = vunpack.c.l.b16 %v451
        %v1072 = vunpack.c.h.b16 %v451
        %v1073 = vunpack.c.l.b16 %v452
        %v1074 = vunpack.c.h.b16 %v452
        %v1075 = vunpack.c.l.b16 %v453
        %v1076 = vunpack.c.h.b16 %v453
        %v1077 = vunpack.c.l.b16 %v454
        %v1078 = vunpack.c.h.b16 %v454
        %v1079 = vunpack.c.l.b16 %v455
        %v1080 = vunpack.c.l.b16 %v456
        %v1081 = vunpack.c.h.b16 %v456
        %v1082 = vunpack.c.l.b16 %v457
        %v1083 = vunpack.c.h.b16 %v457
        %v1084 = vunpack.c.l.b16 %v458
        %v1085 = vunpack.c.h.b16 %v458
        %v1086 = vunpack.c.l.b16 %v459
        %v1087 = vunpack.c.h.b16 %v459
        %v1088 = vunpack.c.l.b16 %v460
        %v1089 = vunpack.c.l.b16 %v461
        %v1090 = vunpack.c.h.b16 %v461
        %v1091 = vunpack.c.l.b16 %v462
        %v1092 = vunpack.c.h.b16 %v462
        %v1093 = vunpack.c.l.b16 %v463
        %v1094 = vunpack.c.h.b16 %v463
        %v1095 = vunpack.c.l.b16 %v464
        %v1096 = vunpack.c.h.b16 %v464
        %v1097 = vunpack.c.l.b16 %v465
        %v1098 = vunpack.c.l.b16 %v466
        %v1099 = vunpack.c.h.b16 %v466
        %v1100 = vunpack.c.l.b16 %v467
        %v1101 = vunpack.c.h.b16 %v467
        %v1102 = vunpack.c.l.b16 %v468
        %v1103 = vunpack.c.h.b16 %v468
        %v1104 = vunpack.c.l.b16 %v469
        %v1105 = vunpack.c.h.b16 %v469
        %v1106 = vunpack.c.l.b16 %v470
        %v1107 = vunpack.c.l.b16 %v471
        %v1108 = vunpack.c.h.b16 %v471
        %v1109 = vunpack.c.l.b16 %v472
        %v1110 = vunpack.c.h.b16 %v472
        %v1111 = vunpack.c.l.b16 %v473
        %v1112 = vunpack.c.h.b16 %v473
        %v1113 = vunpack.c.l.b16 %v474
        %v1114 = vunpack.c.h.b16 %v474
        %v1115 = vunpack.c.l.b16 %v475
        %v1116 = vunpack.c.l.b16 %v476
        %v1117 = vunpack.c.h.b16 %v476
        %v1118 = vunpack.c.l.b16 %v477
        %v1119 = vunpack.c.h.b16 %v477
        %v1120 = vunpack.c.l.b16 %v478
        %v1121 = vunpack.c.h.b16 %v478
        %v1122 = vunpack.c.l.b16 %v479
        %v1123 = vunpack.c.h.b16 %v479
        %v1124 = vunpack.c.l.b16 %v480
        %v1125 = vunpack.c.l.b16 %v481
        %v1126 = vunpack.c.h.b16 %v481
        %v1127 = vunpack.c.l.b16 %v482
        %v1128 = vunpack.c.h.b16 %v482
        %v1129 = vunpack.c.l.b16 %v483
        %v1130 = vunpack.c.h.b16 %v483
        %v1131 = vunpack.c.l.b16 %v484
        %v1132 = vunpack.c.h.b16 %v484
        %v1133 = vunpack.c.l.b16 %v485
        %v1134 = vunpack.c.l.b16 %v486
        %v1135 = vunpack.c.h.b16 %v486
        %v1136 = vunpack.c.l.b16 %v487
        %v1137 = vunpack.c.h.b16 %v487
        %v1138 = vunpack.c.l.b16 %v488
        %v1139 = vunpack.c.h.b16 %v488
        %v1140 = vunpack.c.l.b16 %v489
        %v1141 = vunpack.c.h.b16 %v489
        %v1142 = vunpack.c.l.b16 %v490
        %v1143 = vunpack.c.l.b16 %v491
        %v1144 = vunpack.c.h.b16 %v491
        %v1145 = vunpack.c.l.b16 %v492
        %v1146 = vunpack.c.h.b16 %v492
        %v1147 = vunpack.c.l.b16 %v493
        %v1148 = vunpack.c.h.b16 %v493
        %v1149 = vunpack.c.l.b16 %v494
        %v1150 = vunpack.c.h.b16 %v494
        %v1151 = vunpack.c.l.b16 %v495
        %v1152 = vunpack.c.l.b16 %v496
        %v1153 = vunpack.c.h.b16 %v496
        %v1154 = vunpack.c.l.b16 %v497
        %v1155 = vunpack.c.h.b16 %v497
        %v1156 = vunpack.c.l.b16 %v498
        %v1157 = vunpack.c.h.b16 %v498
        %v1158 = vunpack.c.l.b16 %v499
        %v1159 = vunpack.c.h.b16 %v499
        %v1160 = vunpack.c.l.b16 %v500
        %v1161 = vunpack.c.l.b16 %v501
        %v1162 = vunpack.c.h.b16 %v501
        %v1163 = vunpack.c.l.b16 %v502
        %v1164 = vunpack.c.h.b16 %v502
        %v1165 = vunpack.c.l.b16 %v503
        %v1166 = vunpack.c.h.b16 %v503
        %v1167 = vunpack.c.l.b16 %v504
        %v1168 = vunpack.c.h.b16 %v504
        %v1169 = vunpack.c.l.b16 %v505
        %v1170 = vunpack.c.l.b16 %v506
        %v1171 = vunpack.c.h.b16 %v506
        %v1172 = vunpack.c.l.b16 %v507
        %v1173 = vunpack.c.h.b16 %v507
        %v1174 = vunpack.c.l.b16 %v508
        %v1175 = vunpack.c.h.b16 %v508
        %v1176 = vunpack.c.l.b16 %v509
        %v1177 = vunpack.c.h.b16 %v509
        %v1178 = vunpack.c.l.b16 %v510
        %v1179 = vunpack.c.l.b16 %v511
        %v1180 = vunpack.c.h.b16 %v511
        %v1181 = vunpack.c.l.b16 %v512
        %v1182 = vunpack.c.h.b16 %v512
        %v1183 = vunpack.c.l.b16 %v513
        %v1184 = vunpack.c.h.b16 %v513
        %v1185 = vunpack.c.l.b16 %v514
        %v1186 = vunpack.c.h.b16 %v514
        %v1187 = vunpack.c.l.b16 %v515
        %v1188 = vpack.c.b16 %v765, %v756
        %v1189 = vpack.c.b16 %v766, %v757
        %v1190 = vpack.c.b16 %v767, %v758
        %v1191 = vpack.c.b16 %v768, %v759
        %v1192 = vpack.c.b16 %v769, %v760
        %v1193 = vpack.c.b16 %v770, %v761
        %v1194 = vpack.c.b16 %v771, %v762
        %v1195 = vpack.c.b16 %v772, %v763
        %v1196 = vpack.c.b16 %v773, %v764
        %v1197 = vpack.c.b16 %v783, %v774
        %v1198 = vpack.c.b16 %v784, %v775
        %v1199 = vpack.c.b16 %v785, %v776
        %v1200 = vpack.c.b16 %v786, %v777
        %v1201 = vpack.c.b16 %v787, %v778
        %v1202 = vpack.c.b16 %v788, %v779
        %v1203 = vpack.c.b16 %v789, %v780
        %v1204 = vpack.c.b16 %v790, %v781
        %v1205 = vpack.c.b16 %v791, %v782
        %v1206 = vpack.c.b16 %v801, %v792
        %v1207 = vpack.c.b16 %v802, %v793
        %v1208 = vpack.c.b16 %v803, %v794
        %v1209 = vpack.c.b16 %v804, %v795
        %v1210 = vpack.c.b16 %v805, %v796
        %v1211 = vpack.c.b16 %v806, %v797
        %v1212 = vpack.c.b16 %v807, %v798
        %v1213 = vpack.c.b16 %v808, %v799
        %v1214 = vpack.c.b16 %v809, %v800
        %v1215 = vpack.c.b16 %v819, %v810
        %v1216 = vpack.c.b16 %v820, %v811
        %v1217 = vpack.c.b16 %v821, %v812
        %v1218 = vpack.c.b16 %v822, %v813
        %v1219 = vpack.c.b16 %v823, %v814
        %v1220 = vpack.c.b16 %v824, %v815
        %v1221 = vpack.c.b16 %v825, %v816
        %v1222 = vpack.c.b16 %v826, %v817
        %v1223 = vpack.c.b16 %v827, %v818
        %v1224 = vpack.c.b16 %v837, %v828
        %v1225 = vpack.c.b16 %v838, %v829
        %v1226 = vpack.c.b16 %v839, %v830
        %v1227 = vpack.c.b16 %v840, %v831
        %v1228 = vpack.c.b16 %v841, %v832
        %v1229 = vpack.c.b16 %v842, %v833
        %v1230 = vpack.c.b16 %v843, %v834
        %v1231 = vpack.c.b16 %v844, %v835
        %v1232 = vpack.c.b16 %v845, %v836
        %v1233 = vpack.c.b16 %v855, %v846
        %v1234 = vpack.c.b16 %v856, %v847
        %v1235 = vpack.c.b16 %v857, %v848
        %v1236 = vpack.c.b16 %v858, %v849
        %v1237 = vpack.c.b16 %v859, %v850
        %v1238 = vpack.c.b16 %v860, %v851
        %v1239 = vpack.c.b16 %v861, %v852
        %v1240 = vpack.c.b16 %v862, %v853
        %v1241 = vpack.c.b16 %v863, %v854
        %v1242 = vpack.c.b16 %v873, %v864
        %v1243 = vpack.c.b16 %v874, %v865
        %v1244 = vpack.c.b16 %v875, %v866
        %v1245 = vpack.c.b16 %v876, %v867
        %v1246 = vpack.c.b16 %v877, %v868
        %v1247 = vpack.c.b16 %v878, %v869
        %v1248 = vpack.c.b16 %v879, %v870
        %v1249 = vpack.c.b16 %v880, %v871
        %v1250 = vpack.c.b16 %v881, %v872
        %v1251 = vpack.c.b16 %v891, %v882
        %v1252 = vpack.c.b16 %v892, %v883
        %v1253 = vpack.c.b16 %v893, %v884
        %v1254 = vpack.c.b16 %v894, %v885
        %v1255 = vpack.c.b16 %v895, %v886
        %v1256 = vpack.c.b16 %v896, %v887
        %v1257 = vpack.c.b16 %v897, %v888
        %v1258 = vpack.c.b16 %v898, %v889
        %v1259 = vpack.c.b16 %v899, %v890
        %v1260 = vpack.c.b16 %v909, %v900
        %v1261 = vpack.c.b16 %v910, %v901
        %v1262 = vpack.c.b16 %v911, %v902
        %v1263 = vpack.c.b16 %v912, %v903
        %v1264 = vpack.c.b16 %v913, %v904
        %v1265 = vpack.c.b16 %v914, %v905
        %v1266 = vpack.c.b16 %v915, %v906
        %v1267 = vpack.c.b16 %v916, %v907
        %v1268 = vpack.c.b16 %v917, %v908
        %v1269 = vpack.c.b16 %v927, %v918
        %v1270 = vpack.c.b16 %v928, %v919
        %v1271 = vpack.c.b16 %v929, %v920
        %v1272 = vpack.c.b16 %v930, %v921
        %v1273 = vpack.c.b16 %v931, %v922
        %v1274 = vpack.c.b16 %v932, %v923
        %v1275 = vpack.c.b16 %v933, %v924
        %v1276 = vpack.c.b16 %v934, %v925
        %v1277 = vpack.c.b16 %v935, %v926
        %v1278 = vpack.c.b16 %v945, %v936
        %v1279 = vpack.c.b16 %v946, %v937
        %v1280 = vpack.c.b16 %v947, %v938
        %v1281 = vpack.c.b16 %v948, %v939
        %v1282 = vpack.c.b16 %v949, %v940
        %v1283 = vpack.c.b16 %v950, %v941
        %v1284 = vpack.c.b16 %v951, %v942
        %v1285 = vpack.c.b16 %v952, %v943
        %v1286 = vpack.c.b16 %v953, %v944
        %v1287 = vpack.c.b16 %v963, %v954
        %v1288 = vpack.c.b16 %v964, %v955
        %v1289 = vpack.c.b16 %v965, %v956
        %v1290 = vpack.c.b16 %v966, %v957
        %v1291 = vpack.c.b16 %v967, %v958
        %v1292 = vpack.c.b16 %v968, %v959
        %v1293 = vpack.c.b16 %v969, %v960
        %v1294 = vpack.c.b16 %v970, %v961
        %v1295 = vpack.c.b16 %v971, %v962
        %v1296 = vpack.c.b16 %v981, %v972
        %v1297 = vpack.c.b16 %v982, %v973
        %v1298 = vpack.c.b16 %v983, %v974
        %v1299 = vpack.c.b16 %v984, %v975
        %v1300 = vpack.c.b16 %v985, %v976
        %v1301 = vpack.c.b16 %v986, %v977
        %v1302 = vpack.c.b16 %v987, %v978
        %v1303 = vpack.c.b16 %v988, %v979
        %v1304 = vpack.c.b16 %v989, %v980
        %v1305 = vpack.c.b16 %v999, %v990
        %v1306 = vpack.c.b16 %v1000, %v991
        %v1307 = vpack.c.b16 %v1001, %v992
        %v1308 = vpack.c.b16 %v1002, %v993
        %v1309 = vpack.c.b16 %v1003, %v994
        %v1310 = vpack.c.b16 %v1004, %v995
        %v1311 = vpack.c.b16 %v1005, %v996
        %v1312 = vpack.c.b16 %v1006, %v997
        %v1313 = vpack.c.b16 %v1007, %v998
        %v1314 = vpack.c.b16 %v1017, %v1008
        %v1315 = vpack.c.b16 %v1018, %v1009
        %v1316 = vpack.c.b16 %v1019, %v1010
        %v1317 = vpack.c.b16 %v1020, %v1011
        %v1318 = vpack.c.b16 %v1021, %v1012
        %v1319 = vpack.c.b16 %v1022, %v1013
        %v1320 = vpack.c.b16 %v1023, %v1014
        %v1321 = vpack.c.b16 %v1024, %v1015
        %v1322 = vpack.c.b16 %v1025, %v1016
        %v1323 = vpack.c.b16 %v1035, %v1026
        %v1324 = vpack.c.b16 %v1036, %v1027
        %v1325 = vpack.c.b16 %v1037, %v1028
        %v1326 = vpack.c.b16 %v1038, %v1029
        %v1327 = vpack.c.b16 %v1039, %v1030
        %v1328 = vpack.c.b16 %v1040, %v1031
        %v1329 = vpack.c.b16 %v1041, %v1032
        %v1330 = vpack.c.b16 %v1042, %v1033
        %v1331 = vpack.c.b16 %v1043, %v1034
        %v1332 = vpack.c.b16 %v1053, %v1044
        %v1333 = vpack.c.b16 %v1054, %v1045
        %v1334 = vpack.c.b16 %v1055, %v1046
        %v1335 = vpack.c.b16 %v1056, %v1047
        %v1336 = vpack.c.b16 %v1057, %v1048
        %v1337 = vpack.c.b16 %v1058, %v1049
        %v1338 = vpack.c.b16 %v1059, %v1050
        %v1339 = vpack.c.b16 %v1060, %v1051
        %v1340 = vpack.c.b16 %v1061, %v1052
        %v1341 = vpack.c.b16 %v1071, %v1062
        %v1342 = vpack.c.b16 %v1072, %v1063
        %v1343 = vpack.c.b16 %v1073, %v1064
        %v1344 = vpack.c.b16 %v1074, %v1065
        %v1345 = vpack.c.b16 %v1075, %v1066
        %v1346 = vpack.c.b16 %v1076, %v1067
        %v1347 = vpack.c.b16 %v1077, %v1068
        %v1348 = vpack.c.b16 %v1078, %v1069
        %v1349 = vpack.c.b16 %v1079, %v1070
        %v1350 = vpack.c.b16 %v1089, %v1080
        %v1351 = vpack.c.b16 %v1090, %v1081
        %v1352 = vpack.c.b16 %v1091, %v1082
        %v1353 = vpack.c.b16 %v1092, %v1083
        %v1354 = vpack.c.b16 %v1093, %v1084
        %v1355 = vpack.c.b16 %v1094, %v1085
        %v1356 = vpack.c.b16 %v1095, %v1086
        %v1357 = vpack.c.b16 %v1096, %v1087
        %v1358 = vpack.c.b16 %v1097, %v1088
        %v1359 = vpack.c.b16 %v1107, %v1098
        %v1360 = vpack.c.b16 %v1108, %v1099
        %v1361 = vpack.c.b16 %v1109, %v1100
        %v1362 = vpack.c.b16 %v1110, %v1101
        %v1363 = vpack.c.b16 %v1111, %v1102
        %v1364 = vpack.c.b16 %v1112, %v1103
        %v1365 = vpack.c.b16 %v1113, %v1104
        %v1366 = vpack.c.b16 %v1114, %v1105
        %v1367 = vpack.c.b16 %v1115, %v1106
        %v1368 = vpack.c.b16 %v1125, %v1116
        %v1369 = vpack.c.b16 %v1126, %v1117
        %v1370 = vpack.c.b16 %v1127, %v1118
        %v1371 = vpack.c.b16 %v1128, %v1119
        %v1372 = vpack.c.b16 %v1129, %v1120
        %v1373 = vpack.c.b16 %v1130, %v1121
        %v1374 = vpack.c.b16 %v1131, %v1122
        %v1375 = vpack.c.b16 %v1132, %v1123
        %v1376 = vpack.c.b16 %v1133, %v1124
        %v1377 = vpack.c.b16 %v1143, %v1134
        %v1378 = vpack.c.b16 %v1144, %v1135
        %v1379 = vpack.c.b16 %v1145, %v1136
        %v1380 = vpack.c.b16 %v1146, %v1137
        %v1381 = vpack.c.b16 %v1147, %v1138
        %v1382 = vpack.c.b16 %v1148, %v1139
        %v1383 = vpack.c.b16 %v1149, %v1140
        %v1384 = vpack.c.b16 %v1150, %v1141
        %v1385 = vpack.c.b16 %v1151, %v1142
        %v1386 = vpack.c.b16 %v1161, %v1152
        %v1387 = vpack.c.b16 %v1162, %v1153
        %v1388 = vpack.c.b16 %v1163, %v1154
        %v1389 = vpack.c.b16 %v1164, %v1155
        %v1390 = vpack.c.b16 %v1165, %v1156
        %v1391 = vpack.c.b16 %v1166, %v1157
        %v1392 = vpack.c.b16 %v1167, %v1158
        %v1393 = vpack.c.b16 %v1168, %v1159
        %v1394 = vpack.c.b16 %v1169, %v1160
        %v1395 = vpack.c.b16 %v1179, %v1170
        %v1396 = vpack.c.b16 %v1180, %v1171
        %v1397 = vpack.c.b16 %v1181, %v1172
        %v1398 = vpack.c.b16 %v1182, %v1173
        %v1399 = vpack.c.b16 %v1183, %v1174
        %v1400 = vpack.c.b16 %v1184, %v1175
        %v1401 = vpack.c.b16 %v1185, %v1176
        %v1402 = vpack.c.b16 %v1186, %v1177
        %v1403 = vpack.c.b16 %v1187, %v1178
        %1620 = vmatpush.bf16.msra.mxu0 %v1251
        %1621 = vmatpush.bf16.msra.mxu0 %v1242
        %1622 = vmatpush.bf16.msra.mxu0 %v1233
        %1623 = vmatpush.bf16.msra.mxu0 %v1224
        %1624 = vmatpush.bf16.msra.mxu0 %v1215
        %1625 = vmatpush.bf16.msra.mxu0 %v1206
        %1626 = vmatpush.bf16.msra.mxu0 %v1197
        %1627 = vmatpush.bf16.msra.mxu0 %v1188
        %1628 = vmatmul.bf16.gmra.mxu0 %v273
        %v1629 = vpop.f32.mrf.mxu0
        %v1630 = vadd.f32 0.0, %v1629
        %v1631 = vpop.f32.mrf.mxu0
        %v1632 = vadd.f32 0.0, %v1631
        %1633 = vdwg.mxu0
        %1634 = vmatpush.bf16.msra.mxu0 %v1323
        %1635 = vmatpush.bf16.msra.mxu0 %v1314
        %1636 = vmatpush.bf16.msra.mxu0 %v1305
        %1637 = vmatpush.bf16.msra.mxu0 %v1296
        %1638 = vmatpush.bf16.msra.mxu0 %v1287
        %1639 = vmatpush.bf16.msra.mxu0 %v1278
        %1640 = vmatpush.bf16.msra.mxu0 %v1269
        %1641 = vmatpush.bf16.msra.mxu0 %v1260
        %1642 = vmatmul.bf16.gmra.mxu0 %v274
        %v1643 = vpop.f32.mrf.mxu0
        %v1644 = vadd.f32 %v1630, %v1643
        %v1645 = vpop.f32.mrf.mxu0
        %v1646 = vadd.f32 %v1632, %v1645
        %1647 = vdwg.mxu0
        %1648 = vmatpush.bf16.msra.mxu0 %v1395
        %1649 = vmatpush.bf16.msra.mxu0 %v1386
        %1650 = vmatpush.bf16.msra.mxu0 %v1377
        %1651 = vmatpush.bf16.msra.mxu0 %v1368
        %1652 = vmatpush.bf16.msra.mxu0 %v1359
        %1653 = vmatpush.bf16.msra.mxu0 %v1350
        %1654 = vmatpush.bf16.msra.mxu0 %v1341
        %1655 = vmatpush.bf16.msra.mxu0 %v1332
        %1656 = vmatmul.bf16.gmra.mxu0 %v275
        %v1657 = vpop.f32.mrf.mxu0
        %v1658 = vadd.f32 %v1644, %v1657
        %v1659 = vpop.f32.mrf.mxu0
        %v1660 = vadd.f32 %v1646, %v1659
        %1661 = vdwg.mxu0
        %1662 = vmatpush.bf16.msra.mxu0 %v1252
        %1663 = vmatpush.bf16.msra.mxu0 %v1243
        %1664 = vmatpush.bf16.msra.mxu0 %v1234
        %1665 = vmatpush.bf16.msra.mxu0 %v1225
        %1666 = vmatpush.bf16.msra.mxu0 %v1216
        %1667 = vmatpush.bf16.msra.mxu0 %v1207
        %1668 = vmatpush.bf16.msra.mxu0 %v1198
        %1669 = vmatpush.bf16.msra.mxu0 %v1189
        %1670 = vmatmul.bf16.gmra.mxu0 %v273
        %v1671 = vpop.f32.mrf.mxu0
        %v1672 = vadd.f32 0.0, %v1671
        %v1673 = vpop.f32.mrf.mxu0
        %v1674 = vadd.f32 0.0, %v1673
        %1675 = vdwg.mxu0
        %1676 = vmatpush.bf16.msra.mxu0 %v1324
        %1677 = vmatpush.bf16.msra.mxu0 %v1315
        %1678 = vmatpush.bf16.msra.mxu0 %v1306
        %1679 = vmatpush.bf16.msra.mxu0 %v1297
        %1680 = vmatpush.bf16.msra.mxu0 %v1288
        %1681 = vmatpush.bf16.msra.mxu0 %v1279
        %1682 = vmatpush.bf16.msra.mxu0 %v1270
        %1683 = vmatpush.bf16.msra.mxu0 %v1261
        %1684 = vmatmul.bf16.gmra.mxu0 %v274
        %v1685 = vpop.f32.mrf.mxu0
        %v1686 = vadd.f32 %v1672, %v1685
        %v1687 = vpop.f32.mrf.mxu0
        %v1688 = vadd.f32 %v1674, %v1687
        %1689 = vdwg.mxu0
        %1690 = vmatpush.bf16.msra.mxu0 %v1396
        %1691 = vmatpush.bf16.msra.mxu0 %v1387
        %1692 = vmatpush.bf16.msra.mxu0 %v1378
        %1693 = vmatpush.bf16.msra.mxu0 %v1369
        %1694 = vmatpush.bf16.msra.mxu0 %v1360
        %1695 = vmatpush.bf16.msra.mxu0 %v1351
        %1696 = vmatpush.bf16.msra.mxu0 %v1342
        %1697 = vmatpush.bf16.msra.mxu0 %v1333
        %1698 = vmatmul.bf16.gmra.mxu0 %v275
        %v1699 = vpop.f32.mrf.mxu0
        %v1700 = vadd.f32 %v1686, %v1699
        %v1701 = vpop.f32.mrf.mxu0
        %v1702 = vadd.f32 %v1688, %v1701
        %1703 = vdwg.mxu0
        %1704 = vmatpush.bf16.msra.mxu0 %v1253
        %1705 = vmatpush.bf16.msra.mxu0 %v1244
        %1706 = vmatpush.bf16.msra.mxu0 %v1235
        %1707 = vmatpush.bf16.msra.mxu0 %v1226
        %1708 = vmatpush.bf16.msra.mxu0 %v1217
        %1709 = vmatpush.bf16.msra.mxu0 %v1208
        %1710 = vmatpush.bf16.msra.mxu0 %v1199
        %1711 = vmatpush.bf16.msra.mxu0 %v1190
        %1712 = vmatmul.bf16.gmra.mxu0 %v273
        %v1713 = vpop.f32.mrf.mxu0
        %v1714 = vadd.f32 0.0, %v1713
        %v1715 = vpop.f32.mrf.mxu0
        %v1716 = vadd.f32 0.0, %v1715
        %1717 = vdwg.mxu0
        %1718 = vmatpush.bf16.msra.mxu0 %v1325
        %1719 = vmatpush.bf16.msra.mxu0 %v1316
        %1720 = vmatpush.bf16.msra.mxu0 %v1307
        %1721 = vmatpush.bf16.msra.mxu0 %v1298
        %1722 = vmatpush.bf16.msra.mxu0 %v1289
        %1723 = vmatpush.bf16.msra.mxu0 %v1280
        %1724 = vmatpush.bf16.msra.mxu0 %v1271
        %1725 = vmatpush.bf16.msra.mxu0 %v1262
        %1726 = vmatmul.bf16.gmra.mxu0 %v274
        %v1727 = vpop.f32.mrf.mxu0
        %v1728 = vadd.f32 %v1714, %v1727
        %v1729 = vpop.f32.mrf.mxu0
        %v1730 = vadd.f32 %v1716, %v1729
        %1731 = vdwg.mxu0
        %1732 = vmatpush.bf16.msra.mxu0 %v1397
        %1733 = vmatpush.bf16.msra.mxu0 %v1388
        %1734 = vmatpush.bf16.msra.mxu0 %v1379
        %1735 = vmatpush.bf16.msra.mxu0 %v1370
        %1736 = vmatpush.bf16.msra.mxu0 %v1361
        %1737 = vmatpush.bf16.msra.mxu0 %v1352
        %1738 = vmatpush.bf16.msra.mxu0 %v1343
        %1739 = vmatpush.bf16.msra.mxu0 %v1334
        %1740 = vmatmul.bf16.gmra.mxu0 %v275
        %v1741 = vpop.f32.mrf.mxu0
        %v1742 = vadd.f32 %v1728, %v1741
        %v1743 = vpop.f32.mrf.mxu0
        %v1744 = vadd.f32 %v1730, %v1743
        %1745 = vdwg.mxu0
        %1746 = vmatpush.bf16.msra.mxu0 %v1254
        %1747 = vmatpush.bf16.msra.mxu0 %v1245
        %1748 = vmatpush.bf16.msra.mxu0 %v1236
        %1749 = vmatpush.bf16.msra.mxu0 %v1227
        %1750 = vmatpush.bf16.msra.mxu0 %v1218
        %1751 = vmatpush.bf16.msra.mxu0 %v1209
        %1752 = vmatpush.bf16.msra.mxu0 %v1200
        %1753 = vmatpush.bf16.msra.mxu0 %v1191
        %1754 = vmatmul.bf16.gmra.mxu0 %v273
        %v1755 = vpop.f32.mrf.mxu0
        %v1756 = vadd.f32 0.0, %v1755
        %v1757 = vpop.f32.mrf.mxu0
        %v1758 = vadd.f32 0.0, %v1757
        %1759 = vdwg.mxu0
        %1760 = vmatpush.bf16.msra.mxu0 %v1326
        %1761 = vmatpush.bf16.msra.mxu0 %v1317
        %1762 = vmatpush.bf16.msra.mxu0 %v1308
        %1763 = vmatpush.bf16.msra.mxu0 %v1299
        %1764 = vmatpush.bf16.msra.mxu0 %v1290
        %1765 = vmatpush.bf16.msra.mxu0 %v1281
        %1766 = vmatpush.bf16.msra.mxu0 %v1272
        %1767 = vmatpush.bf16.msra.mxu0 %v1263
        %1768 = vmatmul.bf16.gmra.mxu0 %v274
        %v1769 = vpop.f32.mrf.mxu0
        %v1770 = vadd.f32 %v1756, %v1769
        %v1771 = vpop.f32.mrf.mxu0
        %v1772 = vadd.f32 %v1758, %v1771
        %1773 = vdwg.mxu0
        %1774 = vmatpush.bf16.msra.mxu0 %v1398
        %1775 = vmatpush.bf16.msra.mxu0 %v1389
        %1776 = vmatpush.bf16.msra.mxu0 %v1380
        %1777 = vmatpush.bf16.msra.mxu0 %v1371
        %1778 = vmatpush.bf16.msra.mxu0 %v1362
        %1779 = vmatpush.bf16.msra.mxu0 %v1353
        %1780 = vmatpush.bf16.msra.mxu0 %v1344
        %1781 = vmatpush.bf16.msra.mxu0 %v1335
        %1782 = vmatmul.bf16.gmra.mxu0 %v275
        %v1783 = vpop.f32.mrf.mxu0
        %v1784 = vadd.f32 %v1770, %v1783
        %v1785 = vpop.f32.mrf.mxu0
        %v1786 = vadd.f32 %v1772, %v1785
        %1787 = vdwg.mxu0
        %1788 = vmatpush.bf16.msra.mxu0 %v1255
        %1789 = vmatpush.bf16.msra.mxu0 %v1246
        %1790 = vmatpush.bf16.msra.mxu0 %v1237
        %1791 = vmatpush.bf16.msra.mxu0 %v1228
        %1792 = vmatpush.bf16.msra.mxu0 %v1219
        %1793 = vmatpush.bf16.msra.mxu0 %v1210
        %1794 = vmatpush.bf16.msra.mxu0 %v1201
        %1795 = vmatpush.bf16.msra.mxu0 %v1192
        %1796 = vmatmul.bf16.gmra.mxu0 %v273
        %v1797 = vpop.f32.mrf.mxu0
        %v1798 = vadd.f32 0.0, %v1797
        %v1799 = vpop.f32.mrf.mxu0
        %v1800 = vadd.f32 0.0, %v1799
        %1801 = vdwg.mxu0
        %1802 = vmatpush.bf16.msra.mxu0 %v1327
        %1803 = vmatpush.bf16.msra.mxu0 %v1318
        %1804 = vmatpush.bf16.msra.mxu0 %v1309
        %1805 = vmatpush.bf16.msra.mxu0 %v1300
        %1806 = vmatpush.bf16.msra.mxu0 %v1291
        %1807 = vmatpush.bf16.msra.mxu0 %v1282
        %1808 = vmatpush.bf16.msra.mxu0 %v1273
        %1809 = vmatpush.bf16.msra.mxu0 %v1264
        %1810 = vmatmul.bf16.gmra.mxu0 %v274
        %v1811 = vpop.f32.mrf.mxu0
        %v1812 = vadd.f32 %v1798, %v1811
        %v1813 = vpop.f32.mrf.mxu0
        %v1814 = vadd.f32 %v1800, %v1813
        %1815 = vdwg.mxu0
        %1816 = vmatpush.bf16.msra.mxu0 %v1399
        %1817 = vmatpush.bf16.msra.mxu0 %v1390
        %1818 = vmatpush.bf16.msra.mxu0 %v1381
        %1819 = vmatpush.bf16.msra.mxu0 %v1372
        %1820 = vmatpush.bf16.msra.mxu0 %v1363
        %1821 = vmatpush.bf16.msra.mxu0 %v1354
        %1822 = vmatpush.bf16.msra.mxu0 %v1345
        %1823 = vmatpush.bf16.msra.mxu0 %v1336
        %1824 = vmatmul.bf16.gmra.mxu0 %v275
        %v1825 = vpop.f32.mrf.mxu0
        %v1826 = vadd.f32 %v1812, %v1825
        %v1827 = vpop.f32.mrf.mxu0
        %v1828 = vadd.f32 %v1814, %v1827
        %1829 = vdwg.mxu0
        %1830 = vmatpush.bf16.msra.mxu0 %v1256
        %1831 = vmatpush.bf16.msra.mxu0 %v1247
        %1832 = vmatpush.bf16.msra.mxu0 %v1238
        %1833 = vmatpush.bf16.msra.mxu0 %v1229
        %1834 = vmatpush.bf16.msra.mxu0 %v1220
        %1835 = vmatpush.bf16.msra.mxu0 %v1211
        %1836 = vmatpush.bf16.msra.mxu0 %v1202
        %1837 = vmatpush.bf16.msra.mxu0 %v1193
        %1838 = vmatmul.bf16.gmra.mxu0 %v273
        %v1839 = vpop.f32.mrf.mxu0
        %v1840 = vadd.f32 0.0, %v1839
        %v1841 = vpop.f32.mrf.mxu0
        %v1842 = vadd.f32 0.0, %v1841
        %1843 = vdwg.mxu0
        %1844 = vmatpush.bf16.msra.mxu0 %v1328
        %1845 = vmatpush.bf16.msra.mxu0 %v1319
        %1846 = vmatpush.bf16.msra.mxu0 %v1310
        %1847 = vmatpush.bf16.msra.mxu0 %v1301
        %1848 = vmatpush.bf16.msra.mxu0 %v1292
        %1849 = vmatpush.bf16.msra.mxu0 %v1283
        %1850 = vmatpush.bf16.msra.mxu0 %v1274
        %1851 = vmatpush.bf16.msra.mxu0 %v1265
        %1852 = vmatmul.bf16.gmra.mxu0 %v274
        %v1853 = vpop.f32.mrf.mxu0
        %v1854 = vadd.f32 %v1840, %v1853
        %v1855 = vpop.f32.mrf.mxu0
        %v1856 = vadd.f32 %v1842, %v1855
        %1857 = vdwg.mxu0
        %1858 = vmatpush.bf16.msra.mxu0 %v1400
        %1859 = vmatpush.bf16.msra.mxu0 %v1391
        %1860 = vmatpush.bf16.msra.mxu0 %v1382
        %1861 = vmatpush.bf16.msra.mxu0 %v1373
        %1862 = vmatpush.bf16.msra.mxu0 %v1364
        %1863 = vmatpush.bf16.msra.mxu0 %v1355
        %1864 = vmatpush.bf16.msra.mxu0 %v1346
        %1865 = vmatpush.bf16.msra.mxu0 %v1337
        %1866 = vmatmul.bf16.gmra.mxu0 %v275
        %v1867 = vpop.f32.mrf.mxu0
        %v1868 = vadd.f32 %v1854, %v1867
        %v1869 = vpop.f32.mrf.mxu0
        %v1870 = vadd.f32 %v1856, %v1869
        %1871 = vdwg.mxu0
        %1872 = vmatpush.bf16.msra.mxu0 %v1257
        %1873 = vmatpush.bf16.msra.mxu0 %v1248
        %1874 = vmatpush.bf16.msra.mxu0 %v1239
        %1875 = vmatpush.bf16.msra.mxu0 %v1230
        %1876 = vmatpush.bf16.msra.mxu0 %v1221
        %1877 = vmatpush.bf16.msra.mxu0 %v1212
        %1878 = vmatpush.bf16.msra.mxu0 %v1203
        %1879 = vmatpush.bf16.msra.mxu0 %v1194
        %1880 = vmatmul.bf16.gmra.mxu0 %v273
        %v1881 = vpop.f32.mrf.mxu0
        %v1882 = vadd.f32 0.0, %v1881
        %v1883 = vpop.f32.mrf.mxu0
        %v1884 = vadd.f32 0.0, %v1883
        %1885 = vdwg.mxu0
        %1886 = vmatpush.bf16.msra.mxu0 %v1329
        %1887 = vmatpush.bf16.msra.mxu0 %v1320
        %1888 = vmatpush.bf16.msra.mxu0 %v1311
        %1889 = vmatpush.bf16.msra.mxu0 %v1302
        %1890 = vmatpush.bf16.msra.mxu0 %v1293
        %1891 = vmatpush.bf16.msra.mxu0 %v1284
        %1892 = vmatpush.bf16.msra.mxu0 %v1275
        %1893 = vmatpush.bf16.msra.mxu0 %v1266
        %1894 = vmatmul.bf16.gmra.mxu0 %v274
        %v1895 = vpop.f32.mrf.mxu0
        %v1896 = vadd.f32 %v1882, %v1895
        %v1897 = vpop.f32.mrf.mxu0
        %v1898 = vadd.f32 %v1884, %v1897
        %1899 = vdwg.mxu0
        %1900 = vmatpush.bf16.msra.mxu0 %v1401
        %1901 = vmatpush.bf16.msra.mxu0 %v1392
        %1902 = vmatpush.bf16.msra.mxu0 %v1383
        %1903 = vmatpush.bf16.msra.mxu0 %v1374
        %1904 = vmatpush.bf16.msra.mxu0 %v1365
        %1905 = vmatpush.bf16.msra.mxu0 %v1356
        %1906 = vmatpush.bf16.msra.mxu0 %v1347
        %1907 = vmatpush.bf16.msra.mxu0 %v1338
        %1908 = vmatmul.bf16.gmra.mxu0 %v275
        %v1909 = vpop.f32.mrf.mxu0
        %v1910 = vadd.f32 %v1896, %v1909
        %v1911 = vpop.f32.mrf.mxu0
        %v1912 = vadd.f32 %v1898, %v1911
        %1913 = vdwg.mxu0
        %1914 = vmatpush.bf16.msra.mxu0 %v1258
        %1915 = vmatpush.bf16.msra.mxu0 %v1249
        %1916 = vmatpush.bf16.msra.mxu0 %v1240
        %1917 = vmatpush.bf16.msra.mxu0 %v1231
        %1918 = vmatpush.bf16.msra.mxu0 %v1222
        %1919 = vmatpush.bf16.msra.mxu0 %v1213
        %1920 = vmatpush.bf16.msra.mxu0 %v1204
        %1921 = vmatpush.bf16.msra.mxu0 %v1195
        %1922 = vmatmul.bf16.gmra.mxu0 %v273
        %v1923 = vpop.f32.mrf.mxu0
        %v1924 = vadd.f32 0.0, %v1923
        %v1925 = vpop.f32.mrf.mxu0
        %v1926 = vadd.f32 0.0, %v1925
        %1927 = vdwg.mxu0
        %1928 = vmatpush.bf16.msra.mxu0 %v1330
        %1929 = vmatpush.bf16.msra.mxu0 %v1321
        %1930 = vmatpush.bf16.msra.mxu0 %v1312
        %1931 = vmatpush.bf16.msra.mxu0 %v1303
        %1932 = vmatpush.bf16.msra.mxu0 %v1294
        %1933 = vmatpush.bf16.msra.mxu0 %v1285
        %1934 = vmatpush.bf16.msra.mxu0 %v1276
        %1935 = vmatpush.bf16.msra.mxu0 %v1267
        %1936 = vmatmul.bf16.gmra.mxu0 %v274
        %v1937 = vpop.f32.mrf.mxu0
        %v1938 = vadd.f32 %v1924, %v1937
        %v1939 = vpop.f32.mrf.mxu0
        %v1940 = vadd.f32 %v1926, %v1939
        %1941 = vdwg.mxu0
        %1942 = vmatpush.bf16.msra.mxu0 %v1402
        %1943 = vmatpush.bf16.msra.mxu0 %v1393
        %1944 = vmatpush.bf16.msra.mxu0 %v1384
        %1945 = vmatpush.bf16.msra.mxu0 %v1375
        %1946 = vmatpush.bf16.msra.mxu0 %v1366
        %1947 = vmatpush.bf16.msra.mxu0 %v1357
        %1948 = vmatpush.bf16.msra.mxu0 %v1348
        %1949 = vmatpush.bf16.msra.mxu0 %v1339
        %1950 = vmatmul.bf16.gmra.mxu0 %v275
        %v1951 = vpop.f32.mrf.mxu0
        %v1952 = vadd.f32 %v1938, %v1951
        %v1953 = vpop.f32.mrf.mxu0
        %v1954 = vadd.f32 %v1940, %v1953
        %1955 = vdwg.mxu0
        %1956 = vmatpush.bf16.msra.mxu0 %v1259
        %1957 = vmatpush.bf16.msra.mxu0 %v1250
        %1958 = vmatpush.bf16.msra.mxu0 %v1241
        %1959 = vmatpush.bf16.msra.mxu0 %v1232
        %1960 = vmatpush.bf16.msra.mxu0 %v1223
        %1961 = vmatpush.bf16.msra.mxu0 %v1214
        %1962 = vmatpush.bf16.msra.mxu0 %v1205
        %1963 = vmatpush.bf16.msra.mxu0 %v1196
        %1964 = vmatmul.bf16.gmra.mxu0 %v273
        %v1965 = vpop.f32.mrf.mxu0
        %v1966 = vadd.f32 0.0, %v1965
        %v1967 = vpop.f32.mrf.mxu0
        %v1968 = vadd.f32 0.0, %v1967
        %1969 = vdwg.mxu0
        %1970 = vmatpush.bf16.msra.mxu0 %v1331
        %1971 = vmatpush.bf16.msra.mxu0 %v1322
        %1972 = vmatpush.bf16.msra.mxu0 %v1313
        %1973 = vmatpush.bf16.msra.mxu0 %v1304
        %1974 = vmatpush.bf16.msra.mxu0 %v1295
        %1975 = vmatpush.bf16.msra.mxu0 %v1286
        %1976 = vmatpush.bf16.msra.mxu0 %v1277
        %1977 = vmatpush.bf16.msra.mxu0 %v1268
        %1978 = vmatmul.bf16.gmra.mxu0 %v274
        %v1979 = vpop.f32.mrf.mxu0
        %v1980 = vadd.f32 %v1966, %v1979
        %v1981 = vpop.f32.mrf.mxu0
        %v1982 = vadd.f32 %v1968, %v1981
        %1983 = vdwg.mxu0
        %1984 = vmatpush.bf16.msra.mxu0 %v1403
        %1985 = vmatpush.bf16.msra.mxu0 %v1394
        %1986 = vmatpush.bf16.msra.mxu0 %v1385
        %1987 = vmatpush.bf16.msra.mxu0 %v1376
        %1988 = vmatpush.bf16.msra.mxu0 %v1367
        %1989 = vmatpush.bf16.msra.mxu0 %v1358
        %1990 = vmatpush.bf16.msra.mxu0 %v1349
        %1991 = vmatpush.bf16.msra.mxu0 %v1340
        %1992 = vmatmul.bf16.gmra.mxu0 %v275
        %v1993 = vpop.f32.mrf.mxu0
        %v1994 = vadd.f32 %v1980, %v1993
        %v1995 = vpop.f32.mrf.mxu0
        %v1996 = vadd.f32 %v1982, %v1995
        %1997 = vdwg.mxu0
        %v1998 = vpack.c.bf16 %v1700, %v1658
        %v1999 = vpack.c.bf16 %v1784, %v1742
        %v2000 = vpack.c.bf16 %v1868, %v1826
        %v2001 = vpack.c.bf16 %v1952, %v1910
        %v2002 = vpack.c.bf16 %v1994, %v1994
        %v2003 = vpack.c.bf16 %v1702, %v1660
        %v2004 = vpack.c.bf16 %v1786, %v1744
        %v2005 = vpack.c.bf16 %v1870, %v1828
        %v2006 = vpack.c.bf16 %v1954, %v1912
        %v2007 = vpack.c.bf16 %v1996, %v1996
        %2008 = vst [vmem:[#allocation2] sm:$0xff] %v1998
        %2009 = vst [vmem:[#allocation2 + $0x8] sm:$0xff] %v1999
        %2010 = vst [vmem:[#allocation2 + $0x10] sm:$0xff] %v2000
        %2011 = vst [vmem:[#allocation2 + $0x18] sm:$0xff] %v2001
        %2012 = vst [vmem:[#allocation2 + $0x20] sm:$0xf] %v2002
        %2013 = vst [vmem:[#allocation2 + $0x24] sm:$0xff] %v2003
        %2014 = vst [vmem:[#allocation2 + $0x2c] sm:$0xff] %v2004
        %2015 = vst [vmem:[#allocation2 + $0x34] sm:$0xff] %v2005
        %2016 = vst [vmem:[#allocation2 + $0x3c] sm:$0xff] %v2006
        %2017 = vst [vmem:[#allocation2 + $0x44] sm:$0xf] %v2007
        %v2018 = vlaneseq
        %v2019 = vshrl.u32 %v2018, 7
        %v2020 = vadd.s32 %v2019, 8
        %v2021 = vlaneseq
        %v2022 = vand.u32 %v2021, 127
        %vm2023 = vcmp.le.s32.totalorder %v2022, %v2019
        %vm2024 = vcmp.le.s32.totalorder %v2022, %v2020
        %v2025 = vld [vmem:[#allocation2] sm:$0xf]
        %v2026 = vld [vmem:[#allocation2 + $0x24] sm:$0xf]
        %v2027 = vld [vmem:[#allocation2 + $0xc] sm:$0xf]
        %v2028 = vld [vmem:[#allocation2 + $0x30] sm:$0xf]
        %v2029 = vld [vmem:[#allocation2 + $0x18] sm:$0xf]
        %v2030 = vld [vmem:[#allocation2 + $0x3c] sm:$0xf]
        %v2033 = vunpack.c.l.b16 %v2025
        %v2034 = vunpack.c.l.b16 %v2026
        %v2035 = vpack.c.b16 %v2034, %v2033
        %v2038 = vunpack.c.l.b16 %v2027
        %v2039 = vunpack.c.l.b16 %v2028
        %v2040 = vpack.c.b16 %v2039, %v2038
        %vm2041 = vcmask 523264
        %v2043 = vsel %vm2041, %v2035, 0
        %v2046 = vsel %vm2041, %v2040, 0
        %2048 = vmatpush.bf16.xpose.msra.mxu0 0
        %2049 = vmatpush.bf16.xpose.msra.mxu0 0
        %2050 = vmatpush.bf16.xpose.msra.mxu0 0
        %2051 = vmatpush.bf16.xpose.msra.mxu0 0
        %2052 = vmatpush.bf16.xpose.msra.mxu0 0
        %2053 = vmatpush.bf16.xpose.msra.mxu0 0
        %2054 = vmatpush.bf16.xpose.msra.mxu0 0
        %2055 = vmatpush.bf16.xpose.msra.mxu0 %v2046
        %2056 = vmatmul.bf16.gmra.mxu0 %v2043
        %v2057 = vpop.f32.mrf.mxu0
        %v2058 = vadd.f32 0.0, %v2057
        %v2059 = vpop.f32.mrf.mxu0
        %v2060 = vadd.f32 0.0, %v2059
        %2061 = vdwg.mxu0
        %v2062 = vsel %vm2023, %v2058, -1e+30
        %v2063 = vsel %vm2024, %v2060, -1e+30
        %vm2064 = vcmask 130048
        %v2065 = vsel %vm2064, %v2062, -inf
        %2066 = vmax.xlane.f32.xlu0 %v2065
        %v2067 = vpop.xlane.xlu0 %2066
        %v2068 = vsel %vm2064, %v2063, -inf
        %2069 = vmax.xlane.f32.xlu0 %v2068
        %v2070 = vpop.xlane.xlu0 %2069
        %v2071 = vsub.f32 %v2062, %v2067
        %v2072 = vsub.f32 %v2063, %v2070
        %v2073 = vmul.f32 %v2071, 1.442695
        %v2074 = vpow.pop %v2073
        %v2075 = vmul.f32 %v2072, 1.442695
        %v2076 = vpow.pop %v2075
        %v2077 = vsel %vm2064, %v2074, 0.0
        %2078 = vadd.xlane.f32.xlu0 %v2077
        %v2079 = vpop.xlane.xlu0 %2078
        %v2080 = vsel %vm2064, %v2076, 0.0
        %2081 = vadd.xlane.f32.xlu0 %v2080
        %v2082 = vpop.xlane.xlu0 %2081
        %v2083 = vrcp.pop %v2079
        %v2084 = vrcp.pop %v2082
        %v2085 = vmul.f32 %v2074, %v2083
        %v2086 = vmul.f32 %v2076, %v2084
        %v2087 = vpack.c.bf16 %v2085, %v2085
        %v2088 = vpack.c.bf16 %v2086, %v2086
        %v2091 = vunpack.c.l.b16 %v2087
        %v2092 = vunpack.c.l.b16 %v2088
        %v2093 = vpack.c.b16 %v2092, %v2091
        %v2096 = vunpack.c.l.b16 %v2029
        %v2097 = vunpack.c.l.b16 %v2030
        %v2098 = vpack.c.b16 %v2097, %v2096
        %v2101 = vsel %vm2064, %v2093, 0
        %2103 = vmatpush.bf16.msra.mxu0 0
        %2104 = vmatpush.bf16.msra.mxu0 0
        %2105 = vmatpush.bf16.msra.mxu0 0
        %2106 = vmatpush.bf16.msra.mxu0 0
        %2107 = vmatpush.bf16.msra.mxu0 0
        %2108 = vmatpush.bf16.msra.mxu0 0
        %2109 = vmatpush.bf16.msra.mxu0 0
        %2110 = vmatpush.bf16.msra.mxu0 %v2098
        %2111 = vmatmul.bf16.gmra.mxu0 %v2101
        %v2112 = vpop.f32.mrf.mxu0
        %v2113 = vadd.f32 0.0, %v2112
        %v2114 = vpop.f32.mrf.mxu0
        %v2115 = vadd.f32 0.0, %v2114
        %2116 = vdwg.mxu0
        %v2117 = vld [vmem:[#allocation2] sm:$0xf]
        %v2118 = vld [vmem:[#allocation2 + $0x24] sm:$0xf]
        %v2119 = vld [vmem:[#allocation2 + $0xc] sm:$0xf]
        %v2120 = vld [vmem:[#allocation2 + $0x30] sm:$0xf]
        %v2121 = vld [vmem:[#allocation2 + $0x18] sm:$0xf]
        %v2122 = vld [vmem:[#allocation2 + $0x3c] sm:$0xf]
        %v2125 = vunpack.c.l.b16 %v2117
        %v2126 = vunpack.c.l.b16 %v2118
        %v2127 = vpack.c.b16 %v2126, %v2125
        %2128 = vrot.lane.b32.xlu0 %v2127, 64
        %v2129 = vpop.permute.xlu0 %2128
        %v2132 = vunpack.c.l.b16 %v2119
        %v2133 = vunpack.c.l.b16 %v2120
        %v2134 = vpack.c.b16 %v2133, %v2132
        %2135 = vrot.lane.b32.xlu0 %v2134, 64
        %v2136 = vpop.permute.xlu0 %2135
        %v2138 = vsel %vm2041, %v2129, 0
        %v2141 = vsel %vm2041, %v2136, 0
        %2143 = vmatpush.bf16.xpose.msra.mxu0 0
        %2144 = vmatpush.bf16.xpose.msra.mxu0 0
        %2145 = vmatpush.bf16.xpose.msra.mxu0 0
        %2146 = vmatpush.bf16.xpose.msra.mxu0 0
        %2147 = vmatpush.bf16.xpose.msra.mxu0 0
        %2148 = vmatpush.bf16.xpose.msra.mxu0 0
        %2149 = vmatpush.bf16.xpose.msra.mxu0 0
        %2150 = vmatpush.bf16.xpose.msra.mxu0 %v2141
        %2151 = vmatmul.bf16.gmra.mxu0 %v2138
        %v2152 = vpop.f32.mrf.mxu0
        %v2153 = vadd.f32 0.0, %v2152
        %v2154 = vpop.f32.mrf.mxu0
        %v2155 = vadd.f32 0.0, %v2154
        %2156 = vdwg.mxu0
        %v2157 = vsel %vm2023, %v2153, -1e+30
        %v2158 = vsel %vm2024, %v2155, -1e+30
        %v2159 = vsel %vm2064, %v2157, -inf
        %2160 = vmax.xlane.f32.xlu0 %v2159
        %v2161 = vpop.xlane.xlu0 %2160
        %v2162 = vsel %vm2064, %v2158, -inf
        %2163 = vmax.xlane.f32.xlu0 %v2162
        %v2164 = vpop.xlane.xlu0 %2163
        %v2165 = vsub.f32 %v2157, %v2161
        %v2166 = vsub.f32 %v2158, %v2164
        %v2167 = vmul.f32 %v2165, 1.442695
        %v2168 = vpow.pop %v2167
        %v2169 = vmul.f32 %v2166, 1.442695
        %v2170 = vpow.pop %v2169
        %v2171 = vsel %vm2064, %v2168, 0.0
        %2172 = vadd.xlane.f32.xlu0 %v2171
        %v2173 = vpop.xlane.xlu0 %2172
        %v2174 = vsel %vm2064, %v2170, 0.0
        %2175 = vadd.xlane.f32.xlu0 %v2174
        %v2176 = vpop.xlane.xlu0 %2175
        %v2177 = vrcp.pop %v2173
        %v2178 = vrcp.pop %v2176
        %v2179 = vmul.f32 %v2168, %v2177
        %v2180 = vmul.f32 %v2170, %v2178
        %v2181 = vpack.c.bf16 %v2179, %v2179
        %v2182 = vpack.c.bf16 %v2180, %v2180
        %v2185 = vunpack.c.l.b16 %v2181
        %v2186 = vunpack.c.l.b16 %v2182
        %v2187 = vpack.c.b16 %v2186, %v2185
        %v2190 = vunpack.c.l.b16 %v2121
        %v2191 = vunpack.c.l.b16 %v2122
        %v2192 = vpack.c.b16 %v2191, %v2190
        %2193 = vrot.lane.b32.xlu0 %v2192, 64
        %v2194 = vpop.permute.xlu0 %2193
        %v2197 = vsel %vm2064, %v2187, 0
        %2199 = vmatpush.bf16.msra.mxu0 0
        %2200 = vmatpush.bf16.msra.mxu0 0
        %2201 = vmatpush.bf16.msra.mxu0 0
        %2202 = vmatpush.bf16.msra.mxu0 0
        %2203 = vmatpush.bf16.msra.mxu0 0
        %2204 = vmatpush.bf16.msra.mxu0 0
        %2205 = vmatpush.bf16.msra.mxu0 0
        %2206 = vmatpush.bf16.msra.mxu0 %v2194
        %2207 = vmatmul.bf16.gmra.mxu0 %v2197
        %v2208 = vpop.f32.mrf.mxu0
        %v2209 = vadd.f32 0.0, %v2208
        %v2210 = vpop.f32.mrf.mxu0
        %v2211 = vadd.f32 0.0, %v2210
        %2212 = vdwg.mxu0
        %2215 = vrot.lane.b32.xlu0 %v2209, 64
        %v2216 = vpop.permute.xlu0 %2215
        %2217 = vrot.lane.b32.xlu0 %v2211, 64
        %v2218 = vpop.permute.xlu0 %2217
        %v2221 = vsel %vm2041, %v2113, %v2216
        %v2222 = vsel %vm2041, %v2115, %v2218
        %v2223 = vpack.c.bf16 %v2221, %v2221
        %v2224 = vpack.c.bf16 %v2222, %v2222
        %2225 = vst [vmem:[#allocation3] sm:$0xf] %v2223
        %2226 = vst [vmem:[#allocation3 + $0xc] sm:$0xf] %v2224
        %v2227 = vld [vmem:[#allocation2 + $0x4] sm:$0xf]
        %v2228 = vld [vmem:[#allocation2 + $0x28] sm:$0xf]
        %v2229 = vld [vmem:[#allocation2 + $0x10] sm:$0xf]
        %v2230 = vld [vmem:[#allocation2 + $0x34] sm:$0xf]
        %v2231 = vld [vmem:[#allocation2 + $0x1c] sm:$0xf]
        %v2232 = vld [vmem:[#allocation2 + $0x40] sm:$0xf]
        %v2235 = vunpack.c.l.b16 %v2227
        %v2236 = vunpack.c.l.b16 %v2228
        %v2237 = vpack.c.b16 %v2236, %v2235
        %v2240 = vunpack.c.l.b16 %v2229
        %v2241 = vunpack.c.l.b16 %v2230
        %v2242 = vpack.c.b16 %v2241, %v2240
        %v2244 = vsel %vm2041, %v2237, 0
        %v2247 = vsel %vm2041, %v2242, 0
        %2249 = vmatpush.bf16.xpose.msra.mxu0 0
        %2250 = vmatpush.bf16.xpose.msra.mxu0 0
        %2251 = vmatpush.bf16.xpose.msra.mxu0 0
        %2252 = vmatpush.bf16.xpose.msra.mxu0 0
        %2253 = vmatpush.bf16.xpose.msra.mxu0 0
        %2254 = vmatpush.bf16.xpose.msra.mxu0 0
        %2255 = vmatpush.bf16.xpose.msra.mxu0 0
        %2256 = vmatpush.bf16.xpose.msra.mxu0 %v2247
        %2257 = vmatmul.bf16.gmra.mxu0 %v2244
        %v2258 = vpop.f32.mrf.mxu0
        %v2259 = vadd.f32 0.0, %v2258
        %v2260 = vpop.f32.mrf.mxu0
        %v2261 = vadd.f32 0.0, %v2260
        %2262 = vdwg.mxu0
        %v2263 = vsel %vm2023, %v2259, -1e+30
        %v2264 = vsel %vm2024, %v2261, -1e+30
        %v2265 = vsel %vm2064, %v2263, -inf
        %2266 = vmax.xlane.f32.xlu0 %v2265
        %v2267 = vpop.xlane.xlu0 %2266
        %v2268 = vsel %vm2064, %v2264, -inf
        %2269 = vmax.xlane.f32.xlu0 %v2268
        %v2270 = vpop.xlane.xlu0 %2269
        %v2271 = vsub.f32 %v2263, %v2267
        %v2272 = vsub.f32 %v2264, %v2270
        %v2273 = vmul.f32 %v2271, 1.442695
        %v2274 = vpow.pop %v2273
        %v2275 = vmul.f32 %v2272, 1.442695
        %v2276 = vpow.pop %v2275
        %v2277 = vsel %vm2064, %v2274, 0.0
        %2278 = vadd.xlane.f32.xlu0 %v2277
        %v2279 = vpop.xlane.xlu0 %2278
        %v2280 = vsel %vm2064, %v2276, 0.0
        %2281 = vadd.xlane.f32.xlu0 %v2280
        %v2282 = vpop.xlane.xlu0 %2281
        %v2283 = vrcp.pop %v2279
        %v2284 = vrcp.pop %v2282
        %v2285 = vmul.f32 %v2274, %v2283
        %v2286 = vmul.f32 %v2276, %v2284
        %v2287 = vpack.c.bf16 %v2285, %v2285
        %v2288 = vpack.c.bf16 %v2286, %v2286
        %v2291 = vunpack.c.l.b16 %v2287
        %v2292 = vunpack.c.l.b16 %v2288
        %v2293 = vpack.c.b16 %v2292, %v2291
        %v2296 = vunpack.c.l.b16 %v2231
        %v2297 = vunpack.c.l.b16 %v2232
        %v2298 = vpack.c.b16 %v2297, %v2296
        %v2301 = vsel %vm2064, %v2293, 0
        %2303 = vmatpush.bf16.msra.mxu0 0
        %2304 = vmatpush.bf16.msra.mxu0 0
        %2305 = vmatpush.bf16.msra.mxu0 0
        %2306 = vmatpush.bf16.msra.mxu0 0
        %2307 = vmatpush.bf16.msra.mxu0 0
        %2308 = vmatpush.bf16.msra.mxu0 0
        %2309 = vmatpush.bf16.msra.mxu0 0
        %2310 = vmatpush.bf16.msra.mxu0 %v2298
        %2311 = vmatmul.bf16.gmra.mxu0 %v2301
        %v2312 = vpop.f32.mrf.mxu0
        %v2313 = vadd.f32 0.0, %v2312
        %v2314 = vpop.f32.mrf.mxu0
        %v2315 = vadd.f32 0.0, %v2314
        %2316 = vdwg.mxu0
        %v2317 = vld [vmem:[#allocation2 + $0x4] sm:$0xf]
        %v2318 = vld [vmem:[#allocation2 + $0x28] sm:$0xf]
        %v2319 = vld [vmem:[#allocation2 + $0x10] sm:$0xf]
        %v2320 = vld [vmem:[#allocation2 + $0x34] sm:$0xf]
        %v2321 = vld [vmem:[#allocation2 + $0x1c] sm:$0xf]
        %v2322 = vld [vmem:[#allocation2 + $0x40] sm:$0xf]
        %v2325 = vunpack.c.l.b16 %v2317
        %v2326 = vunpack.c.l.b16 %v2318
        %v2327 = vpack.c.b16 %v2326, %v2325
        %2328 = vrot.lane.b32.xlu0 %v2327, 64
        %v2329 = vpop.permute.xlu0 %2328
        %v2332 = vunpack.c.l.b16 %v2319
        %v2333 = vunpack.c.l.b16 %v2320
        %v2334 = vpack.c.b16 %v2333, %v2332
        %2335 = vrot.lane.b32.xlu0 %v2334, 64
        %v2336 = vpop.permute.xlu0 %2335
        %v2338 = vsel %vm2041, %v2329, 0
        %v2341 = vsel %vm2041, %v2336, 0
        %2343 = vmatpush.bf16.xpose.msra.mxu0 0
        %2344 = vmatpush.bf16.xpose.msra.mxu0 0
        %2345 = vmatpush.bf16.xpose.msra.mxu0 0
        %2346 = vmatpush.bf16.xpose.msra.mxu0 0
        %2347 = vmatpush.bf16.xpose.msra.mxu0 0
        %2348 = vmatpush.bf16.xpose.msra.mxu0 0
        %2349 = vmatpush.bf16.xpose.msra.mxu0 0
        %2350 = vmatpush.bf16.xpose.msra.mxu0 %v2341
        %2351 = vmatmul.bf16.gmra.mxu0 %v2338
        %v2352 = vpop.f32.mrf.mxu0
        %v2353 = vadd.f32 0.0, %v2352
        %v2354 = vpop.f32.mrf.mxu0
        %v2355 = vadd.f32 0.0, %v2354
        %2356 = vdwg.mxu0
        %v2357 = vsel %vm2023, %v2353, -1e+30
        %v2358 = vsel %vm2024, %v2355, -1e+30
        %v2359 = vsel %vm2064, %v2357, -inf
        %2360 = vmax.xlane.f32.xlu0 %v2359
        %v2361 = vpop.xlane.xlu0 %2360
        %v2362 = vsel %vm2064, %v2358, -inf
        %2363 = vmax.xlane.f32.xlu0 %v2362
        %v2364 = vpop.xlane.xlu0 %2363
        %v2365 = vsub.f32 %v2357, %v2361
        %v2366 = vsub.f32 %v2358, %v2364
        %v2367 = vmul.f32 %v2365, 1.442695
        %v2368 = vpow.pop %v2367
        %v2369 = vmul.f32 %v2366, 1.442695
        %v2370 = vpow.pop %v2369
        %v2371 = vsel %vm2064, %v2368, 0.0
        %2372 = vadd.xlane.f32.xlu0 %v2371
        %v2373 = vpop.xlane.xlu0 %2372
        %v2374 = vsel %vm2064, %v2370, 0.0
        %2375 = vadd.xlane.f32.xlu0 %v2374
        %v2376 = vpop.xlane.xlu0 %2375
        %v2377 = vrcp.pop %v2373
        %v2378 = vrcp.pop %v2376
        %v2379 = vmul.f32 %v2368, %v2377
        %v2380 = vmul.f32 %v2370, %v2378
        %v2381 = vpack.c.bf16 %v2379, %v2379
        %v2382 = vpack.c.bf16 %v2380, %v2380
        %v2385 = vunpack.c.l.b16 %v2381
        %v2386 = vunpack.c.l.b16 %v2382
        %v2387 = vpack.c.b16 %v2386, %v2385
        %v2390 = vunpack.c.l.b16 %v2321
        %v2391 = vunpack.c.l.b16 %v2322
        %v2392 = vpack.c.b16 %v2391, %v2390
        %2393 = vrot.lane.b32.xlu0 %v2392, 64
        %v2394 = vpop.permute.xlu0 %2393
        %v2397 = vsel %vm2064, %v2387, 0
        %2399 = vmatpush.bf16.msra.mxu0 0
        %2400 = vmatpush.bf16.msra.mxu0 0
        %2401 = vmatpush.bf16.msra.mxu0 0
        %2402 = vmatpush.bf16.msra.mxu0 0
        %2403 = vmatpush.bf16.msra.mxu0 0
        %2404 = vmatpush.bf16.msra.mxu0 0
        %2405 = vmatpush.bf16.msra.mxu0 0
        %2406 = vmatpush.bf16.msra.mxu0 %v2394
        %2407 = vmatmul.bf16.gmra.mxu0 %v2397
        %v2408 = vpop.f32.mrf.mxu0
        %v2409 = vadd.f32 0.0, %v2408
        %v2410 = vpop.f32.mrf.mxu0
        %v2411 = vadd.f32 0.0, %v2410
        %2412 = vdwg.mxu0
        %2415 = vrot.lane.b32.xlu0 %v2409, 64
        %v2416 = vpop.permute.xlu0 %2415
        %2417 = vrot.lane.b32.xlu0 %v2411, 64
        %v2418 = vpop.permute.xlu0 %2417
        %v2421 = vsel %vm2041, %v2313, %v2416
        %v2422 = vsel %vm2041, %v2315, %v2418
        %v2423 = vpack.c.bf16 %v2421, %v2421
        %v2424 = vpack.c.bf16 %v2422, %v2422
        %2425 = vst [vmem:[#allocation3 + $0x4] sm:$0xf] %v2423
        %2426 = vst [vmem:[#allocation3 + $0x10] sm:$0xf] %v2424
        %v2427 = vld [vmem:[#allocation2 + $0x8] sm:$0xf]
        %v2428 = vld [vmem:[#allocation2 + $0x2c] sm:$0xf]
        %v2429 = vld [vmem:[#allocation2 + $0x14] sm:$0xf]
        %v2430 = vld [vmem:[#allocation2 + $0x38] sm:$0xf]
        %v2431 = vld [vmem:[#allocation2 + $0x20] sm:$0xf]
        %v2432 = vld [vmem:[#allocation2 + $0x44] sm:$0xf]
        %v2435 = vunpack.c.l.b16 %v2427
        %v2436 = vunpack.c.l.b16 %v2428
        %v2437 = vpack.c.b16 %v2436, %v2435
        %v2440 = vunpack.c.l.b16 %v2429
        %v2441 = vunpack.c.l.b16 %v2430
        %v2442 = vpack.c.b16 %v2441, %v2440
        %v2444 = vsel %vm2041, %v2437, 0
        %v2447 = vsel %vm2041, %v2442, 0
        %2449 = vmatpush.bf16.xpose.msra.mxu0 0
        %2450 = vmatpush.bf16.xpose.msra.mxu0 0
        %2451 = vmatpush.bf16.xpose.msra.mxu0 0
        %2452 = vmatpush.bf16.xpose.msra.mxu0 0
        %2453 = vmatpush.bf16.xpose.msra.mxu0 0
        %2454 = vmatpush.bf16.xpose.msra.mxu0 0
        %2455 = vmatpush.bf16.xpose.msra.mxu0 0
        %2456 = vmatpush.bf16.xpose.msra.mxu0 %v2447
        %2457 = vmatmul.bf16.gmra.mxu0 %v2444
        %v2458 = vpop.f32.mrf.mxu0
        %v2459 = vadd.f32 0.0, %v2458
        %v2460 = vpop.f32.mrf.mxu0
        %v2461 = vadd.f32 0.0, %v2460
        %2462 = vdwg.mxu0
        %v2463 = vsel %vm2023, %v2459, -1e+30
        %v2464 = vsel %vm2024, %v2461, -1e+30
        %v2465 = vsel %vm2064, %v2463, -inf
        %2466 = vmax.xlane.f32.xlu0 %v2465
        %v2467 = vpop.xlane.xlu0 %2466
        %v2468 = vsel %vm2064, %v2464, -inf
        %2469 = vmax.xlane.f32.xlu0 %v2468
        %v2470 = vpop.xlane.xlu0 %2469
        %v2471 = vsub.f32 %v2463, %v2467
        %v2472 = vsub.f32 %v2464, %v2470
        %v2473 = vmul.f32 %v2471, 1.442695
        %v2474 = vpow.pop %v2473
        %v2475 = vmul.f32 %v2472, 1.442695
        %v2476 = vpow.pop %v2475
        %v2477 = vsel %vm2064, %v2474, 0.0
        %2478 = vadd.xlane.f32.xlu0 %v2477
        %v2479 = vpop.xlane.xlu0 %2478
        %v2480 = vsel %vm2064, %v2476, 0.0
        %2481 = vadd.xlane.f32.xlu0 %v2480
        %v2482 = vpop.xlane.xlu0 %2481
        %v2483 = vrcp.pop %v2479
        %v2484 = vrcp.pop %v2482
        %v2485 = vmul.f32 %v2474, %v2483
        %v2486 = vmul.f32 %v2476, %v2484
        %v2487 = vpack.c.bf16 %v2485, %v2485
        %v2488 = vpack.c.bf16 %v2486, %v2486
        %v2491 = vunpack.c.l.b16 %v2487
        %v2492 = vunpack.c.l.b16 %v2488
        %v2493 = vpack.c.b16 %v2492, %v2491
        %v2496 = vunpack.c.l.b16 %v2431
        %v2497 = vunpack.c.l.b16 %v2432
        %v2498 = vpack.c.b16 %v2497, %v2496
        %v2501 = vsel %vm2064, %v2493, 0
        %2503 = vmatpush.bf16.msra.mxu0 0
        %2504 = vmatpush.bf16.msra.mxu0 0
        %2505 = vmatpush.bf16.msra.mxu0 0
        %2506 = vmatpush.bf16.msra.mxu0 0
        %2507 = vmatpush.bf16.msra.mxu0 0
        %2508 = vmatpush.bf16.msra.mxu0 0
        %2509 = vmatpush.bf16.msra.mxu0 0
        %2510 = vmatpush.bf16.msra.mxu0 %v2498
        %2511 = vmatmul.bf16.gmra.mxu0 %v2501
        %v2512 = vpop.f32.mrf.mxu0
        %v2513 = vadd.f32 0.0, %v2512
        %v2514 = vpop.f32.mrf.mxu0
        %v2515 = vadd.f32 0.0, %v2514
        %2516 = vdwg.mxu0
        %v2517 = vld [vmem:[#allocation2 + $0x8] sm:$0xf]
        %v2518 = vld [vmem:[#allocation2 + $0x2c] sm:$0xf]
        %v2519 = vld [vmem:[#allocation2 + $0x14] sm:$0xf]
        %v2520 = vld [vmem:[#allocation2 + $0x38] sm:$0xf]
        %v2521 = vld [vmem:[#allocation2 + $0x20] sm:$0xf]
        %v2522 = vld [vmem:[#allocation2 + $0x44] sm:$0xf]
        %v2525 = vunpack.c.l.b16 %v2517
        %v2526 = vunpack.c.l.b16 %v2518
        %v2527 = vpack.c.b16 %v2526, %v2525
        %2528 = vrot.lane.b32.xlu0 %v2527, 64
        %v2529 = vpop.permute.xlu0 %2528
        %v2532 = vunpack.c.l.b16 %v2519
        %v2533 = vunpack.c.l.b16 %v2520
        %v2534 = vpack.c.b16 %v2533, %v2532
        %2535 = vrot.lane.b32.xlu0 %v2534, 64
        %v2536 = vpop.permute.xlu0 %2535
        %v2538 = vsel %vm2041, %v2529, 0
        %v2541 = vsel %vm2041, %v2536, 0
        %2543 = vmatpush.bf16.xpose.msra.mxu0 0
        %2544 = vmatpush.bf16.xpose.msra.mxu0 0
        %2545 = vmatpush.bf16.xpose.msra.mxu0 0
        %2546 = vmatpush.bf16.xpose.msra.mxu0 0
        %2547 = vmatpush.bf16.xpose.msra.mxu0 0
        %2548 = vmatpush.bf16.xpose.msra.mxu0 0
        %2549 = vmatpush.bf16.xpose.msra.mxu0 0
        %2550 = vmatpush.bf16.xpose.msra.mxu0 %v2541
        %2551 = vmatmul.bf16.gmra.mxu0 %v2538
        %v2552 = vpop.f32.mrf.mxu0
        %v2553 = vadd.f32 0.0, %v2552
        %v2554 = vpop.f32.mrf.mxu0
        %v2555 = vadd.f32 0.0, %v2554
        %2556 = vdwg.mxu0
        %v2557 = vsel %vm2023, %v2553, -1e+30
        %v2558 = vsel %vm2024, %v2555, -1e+30
        %v2559 = vsel %vm2064, %v2557, -inf
        %2560 = vmax.xlane.f32.xlu0 %v2559
        %v2561 = vpop.xlane.xlu0 %2560
        %v2562 = vsel %vm2064, %v2558, -inf
        %2563 = vmax.xlane.f32.xlu0 %v2562
        %v2564 = vpop.xlane.xlu0 %2563
        %v2565 = vsub.f32 %v2557, %v2561
        %v2566 = vsub.f32 %v2558, %v2564
        %v2567 = vmul.f32 %v2565, 1.442695
        %v2568 = vpow.pop %v2567
        %v2569 = vmul.f32 %v2566, 1.442695
        %v2570 = vpow.pop %v2569
        %v2571 = vsel %vm2064, %v2568, 0.0
        %2572 = vadd.xlane.f32.xlu0 %v2571
        %v2573 = vpop.xlane.xlu0 %2572
        %v2574 = vsel %vm2064, %v2570, 0.0
        %2575 = vadd.xlane.f32.xlu0 %v2574
        %v2576 = vpop.xlane.xlu0 %2575
        %v2577 = vrcp.pop %v2573
        %v2578 = vrcp.pop %v2576
        %v2579 = vmul.f32 %v2568, %v2577
        %v2580 = vmul.f32 %v2570, %v2578
        %v2581 = vpack.c.bf16 %v2579, %v2579
        %v2582 = vpack.c.bf16 %v2580, %v2580
        %v2585 = vunpack.c.l.b16 %v2581
        %v2586 = vunpack.c.l.b16 %v2582
        %v2587 = vpack.c.b16 %v2586, %v2585
        %v2590 = vunpack.c.l.b16 %v2521
        %v2591 = vunpack.c.l.b16 %v2522
        %v2592 = vpack.c.b16 %v2591, %v2590
        %2593 = vrot.lane.b32.xlu0 %v2592, 64
        %v2594 = vpop.permute.xlu0 %2593
        %v2597 = vsel %vm2064, %v2587, 0
        %2599 = vmatpush.bf16.msra.mxu0 0
        %2600 = vmatpush.bf16.msra.mxu0 0
        %2601 = vmatpush.bf16.msra.mxu0 0
        %2602 = vmatpush.bf16.msra.mxu0 0
        %2603 = vmatpush.bf16.msra.mxu0 0
        %2604 = vmatpush.bf16.msra.mxu0 0
        %2605 = vmatpush.bf16.msra.mxu0 0
        %2606 = vmatpush.bf16.msra.mxu0 %v2594
        %2607 = vmatmul.bf16.gmra.mxu0 %v2597
        %v2608 = vpop.f32.mrf.mxu0
        %v2609 = vadd.f32 0.0, %v2608
        %v2610 = vpop.f32.mrf.mxu0
        %v2611 = vadd.f32 0.0, %v2610
        %2612 = vdwg.mxu0
        %2615 = vrot.lane.b32.xlu0 %v2609, 64
        %v2616 = vpop.permute.xlu0 %2615
        %2617 = vrot.lane.b32.xlu0 %v2611, 64
        %v2618 = vpop.permute.xlu0 %2617
        %v2621 = vsel %vm2041, %v2513, %v2616
        %v2622 = vsel %vm2041, %v2515, %v2618
        %v2623 = vpack.c.bf16 %v2621, %v2621
        %v2624 = vpack.c.bf16 %v2622, %v2622
        %2625 = vst [vmem:[#allocation3 + $0x8] sm:$0xf] %v2623
        %2626 = vst [vmem:[#allocation3 + $0x14] sm:$0xf] %v2624
        %v2627 = vld [vmem:[#allocation3] sm:$0xff]
        %v2628 = vld [vmem:[#allocation3 + $0x8] sm:$0xf]
        %v2629 = vld [vmem:[#allocation3 + $0xc] sm:$0xff]
        %v2630 = vld [vmem:[#allocation3 + $0x14] sm:$0xf]
        %v2631 = vld [vmem:[#allocation9] sm:$0xff]
        %v2632 = vld [vmem:[#allocation9 + $0x8] sm:$0xf]
        %v2633 = vld [vmem:[#allocation9 + $0xc] sm:$0xff]
        %v2634 = vld [vmem:[#allocation9 + $0x14] sm:$0xf]
        %v2635 = vld [vmem:[#allocation9 + $0x18] sm:$0xff]
        %v2636 = vld [vmem:[#allocation9 + $0x20] sm:$0xf]
        %v2637 = vld [vmem:[#allocation9 + $0x24] sm:$0xff]
        %v2638 = vld [vmem:[#allocation9 + $0x2c] sm:$0xf]
        %v2639 = vld [vmem:[#allocation9 + $0x30] sm:$0xff]
        %v2640 = vld [vmem:[#allocation9 + $0x38] sm:$0xf]
        %v2641 = vld [vmem:[#allocation9 + $0x3c] sm:$0xff]
        %v2642 = vld [vmem:[#allocation9 + $0x44] sm:$0xf]
        %v2643 = vld [vmem:[#allocation9 + $0x48] sm:$0xff]
        %v2644 = vld [vmem:[#allocation9 + $0x50] sm:$0xf]
        %v2645 = vld [vmem:[#allocation9 + $0x54] sm:$0xff]
        %v2646 = vld [vmem:[#allocation9 + $0x5c] sm:$0xf]
        %v2647 = vld [vmem:[#allocation9 + $0x60] sm:$0xff]
        %v2648 = vld [vmem:[#allocation9 + $0x68] sm:$0xf]
        %v2649 = vld [vmem:[#allocation9 + $0x6c] sm:$0xff]
        %v2650 = vld [vmem:[#allocation9 + $0x74] sm:$0xf]
        %v2651 = vld [vmem:[#allocation9 + $0x78] sm:$0xff]
        %v2652 = vld [vmem:[#allocation9 + $0x80] sm:$0xf]
        %v2653 = vld [vmem:[#allocation9 + $0x84] sm:$0xff]
        %v2654 = vld [vmem:[#allocation9 + $0x8c] sm:$0xf]
        %v2655 = vld [vmem:[#allocation9 + $0x90] sm:$0xff]
        %v2656 = vld [vmem:[#allocation9 + $0x98] sm:$0xf]
        %v2657 = vld [vmem:[#allocation9 + $0x9c] sm:$0xff]
        %v2658 = vld [vmem:[#allocation9 + $0xa4] sm:$0xf]
        %v2659 = vld [vmem:[#allocation9 + $0xa8] sm:$0xff]
        %v2660 = vld [vmem:[#allocation9 + $0xb0] sm:$0xf]
        %v2661 = vld [vmem:[#allocation9 + $0xb4] sm:$0xff]
        %v2662 = vld [vmem:[#allocation9 + $0xbc] sm:$0xf]
        %v2663 = vld [vmem:[#allocation9 + $0xc0] sm:$0xff]
        %v2664 = vld [vmem:[#allocation9 + $0xc8] sm:$0xf]
        %v2665 = vld [vmem:[#allocation9 + $0xcc] sm:$0xff]
        %v2666 = vld [vmem:[#allocation9 + $0xd4] sm:$0xf]
        %v2667 = vld [vmem:[#allocation9 + $0xd8] sm:$0xff]
        %v2668 = vld [vmem:[#allocation9 + $0xe0] sm:$0xf]
        %v2669 = vld [vmem:[#allocation9 + $0xe4] sm:$0xff]
        %v2670 = vld [vmem:[#allocation9 + $0xec] sm:$0xf]
        %v2671 = vld [vmem:[#allocation9 + $0xf0] sm:$0xff]
        %v2672 = vld [vmem:[#allocation9 + $0xf8] sm:$0xf]
        %v2673 = vld [vmem:[#allocation9 + $0xfc] sm:$0xff]
        %v2674 = vld [vmem:[#allocation9 + $0x104] sm:$0xf]
        %v2675 = vld [vmem:[#allocation9 + $0x108] sm:$0xff]
        %v2676 = vld [vmem:[#allocation9 + $0x110] sm:$0xf]
        %v2677 = vld [vmem:[#allocation9 + $0x114] sm:$0xff]
        %v2678 = vld [vmem:[#allocation9 + $0x11c] sm:$0xf]
        %v2679 = vld [vmem:[#allocation9 + $0x120] sm:$0xff]
        %v2680 = vld [vmem:[#allocation9 + $0x128] sm:$0xf]
        %v2681 = vld [vmem:[#allocation9 + $0x12c] sm:$0xff]
        %v2682 = vld [vmem:[#allocation9 + $0x134] sm:$0xf]
        %v2683 = vld [vmem:[#allocation9 + $0x138] sm:$0xff]
        %v2684 = vld [vmem:[#allocation9 + $0x140] sm:$0xf]
        %v2685 = vld [vmem:[#allocation9 + $0x144] sm:$0xff]
        %v2686 = vld [vmem:[#allocation9 + $0x14c] sm:$0xf]
        %v2687 = vld [vmem:[#allocation9 + $0x150] sm:$0xff]
        %v2688 = vld [vmem:[#allocation9 + $0x158] sm:$0xf]
        %v2689 = vld [vmem:[#allocation9 + $0x15c] sm:$0xff]
        %v2690 = vld [vmem:[#allocation9 + $0x164] sm:$0xf]
        %v2691 = vld [vmem:[#allocation9 + $0x168] sm:$0xff]
        %v2692 = vld [vmem:[#allocation9 + $0x170] sm:$0xf]
        %v2693 = vld [vmem:[#allocation9 + $0x174] sm:$0xff]
        %v2694 = vld [vmem:[#allocation9 + $0x17c] sm:$0xf]
        %v2695 = vld [vmem:[#allocation9 + $0x180] sm:$0xff]
        %v2696 = vld [vmem:[#allocation9 + $0x188] sm:$0xf]
        %v2697 = vld [vmem:[#allocation9 + $0x18c] sm:$0xff]
        %v2698 = vld [vmem:[#allocation9 + $0x194] sm:$0xf]
        %v2699 = vld [vmem:[#allocation9 + $0x198] sm:$0xff]
        %v2700 = vld [vmem:[#allocation9 + $0x1a0] sm:$0xf]
        %v2701 = vld [vmem:[#allocation9 + $0x1a4] sm:$0xff]
        %v2702 = vld [vmem:[#allocation9 + $0x1ac] sm:$0xf]
        %v2703 = vld [vmem:[#allocation9 + $0x1b0] sm:$0xff]
        %v2704 = vld [vmem:[#allocation9 + $0x1b8] sm:$0xf]
        %v2705 = vld [vmem:[#allocation9 + $0x1bc] sm:$0xff]
        %v2706 = vld [vmem:[#allocation9 + $0x1c4] sm:$0xf]
        %v2707 = vld [vmem:[#allocation9 + $0x1c8] sm:$0xff]
        %v2708 = vld [vmem:[#allocation9 + $0x1d0] sm:$0xf]
        %v2709 = vld [vmem:[#allocation9 + $0x1d4] sm:$0xff]
        %v2710 = vld [vmem:[#allocation9 + $0x1dc] sm:$0xf]
        %v2711 = vld [vmem:[#allocation9 + $0x1e0] sm:$0xff]
        %v2712 = vld [vmem:[#allocation9 + $0x1e8] sm:$0xf]
        %v2713 = vld [vmem:[#allocation9 + $0x1ec] sm:$0xff]
        %v2714 = vld [vmem:[#allocation9 + $0x1f4] sm:$0xf]
        %v2715 = vld [vmem:[#allocation9 + $0x1f8] sm:$0xff]
        %v2716 = vld [vmem:[#allocation9 + $0x200] sm:$0xf]
        %v2717 = vld [vmem:[#allocation9 + $0x204] sm:$0xff]
        %v2718 = vld [vmem:[#allocation9 + $0x20c] sm:$0xf]
        %v2719 = vld [vmem:[#allocation9 + $0x210] sm:$0xff]
        %v2720 = vld [vmem:[#allocation9 + $0x218] sm:$0xf]
        %v2721 = vld [vmem:[#allocation9 + $0x21c] sm:$0xff]
        %v2722 = vld [vmem:[#allocation9 + $0x224] sm:$0xf]
        %v2723 = vld [vmem:[#allocation9 + $0x228] sm:$0xff]
        %v2724 = vld [vmem:[#allocation9 + $0x230] sm:$0xf]
        %v2725 = vld [vmem:[#allocation9 + $0x234] sm:$0xff]
        %v2726 = vld [vmem:[#allocation9 + $0x23c] sm:$0xf]
        %v2727 = vld [vmem:[#allocation10] sm:$0x7]
        %v2729 = vperm.slane %v2727, 0
        %v2730 = vperm.slane %v2727, 1
        %v2731 = vperm.slane %v2727, 2
        %v2739 = vunpack.c.l.b16 %v2627
        %v2740 = vunpack.c.h.b16 %v2627
        %v2741 = vunpack.c.l.b16 %v2628
        %v2742 = vunpack.c.l.b16 %v2629
        %v2743 = vunpack.c.h.b16 %v2629
        %v2744 = vunpack.c.l.b16 %v2630
        %v2745 = vpack.c.b16 %v2742, %v2739
        %v2746 = vpack.c.b16 %v2743, %v2740
        %v2747 = vpack.c.b16 %v2744, %v2741
        %v2847 = vunpack.c.l.b16 %v2631
        %v2848 = vunpack.c.h.b16 %v2631
        %v2849 = vunpack.c.l.b16 %v2632
        %v2850 = vunpack.c.l.b16 %v2633
        %v2851 = vunpack.c.h.b16 %v2633
        %v2852 = vunpack.c.l.b16 %v2634
        %v2853 = vunpack.c.l.b16 %v2635
        %v2854 = vunpack.c.h.b16 %v2635
        %v2855 = vunpack.c.l.b16 %v2636
        %v2856 = vunpack.c.l.b16 %v2637
        %v2857 = vunpack.c.h.b16 %v2637
        %v2858 = vunpack.c.l.b16 %v2638
        %v2859 = vunpack.c.l.b16 %v2639
        %v2860 = vunpack.c.h.b16 %v2639
        %v2861 = vunpack.c.l.b16 %v2640
        %v2862 = vunpack.c.l.b16 %v2641
        %v2863 = vunpack.c.h.b16 %v2641
        %v2864 = vunpack.c.l.b16 %v2642
        %v2865 = vunpack.c.l.b16 %v2643
        %v2866 = vunpack.c.h.b16 %v2643
        %v2867 = vunpack.c.l.b16 %v2644
        %v2868 = vunpack.c.l.b16 %v2645
        %v2869 = vunpack.c.h.b16 %v2645
        %v2870 = vunpack.c.l.b16 %v2646
        %v2871 = vunpack.c.l.b16 %v2647
        %v2872 = vunpack.c.h.b16 %v2647
        %v2873 = vunpack.c.l.b16 %v2648
        %v2874 = vunpack.c.l.b16 %v2649
        %v2875 = vunpack.c.h.b16 %v2649
        %v2876 = vunpack.c.l.b16 %v2650
        %v2877 = vunpack.c.l.b16 %v2651
        %v2878 = vunpack.c.h.b16 %v2651
        %v2879 = vunpack.c.l.b16 %v2652
        %v2880 = vunpack.c.l.b16 %v2653
        %v2881 = vunpack.c.h.b16 %v2653
        %v2882 = vunpack.c.l.b16 %v2654
        %v2883 = vunpack.c.l.b16 %v2655
        %v2884 = vunpack.c.h.b16 %v2655
        %v2885 = vunpack.c.l.b16 %v2656
        %v2886 = vunpack.c.l.b16 %v2657
        %v2887 = vunpack.c.h.b16 %v2657
        %v2888 = vunpack.c.l.b16 %v2658
        %v2889 = vunpack.c.l.b16 %v2659
        %v2890 = vunpack.c.h.b16 %v2659
        %v2891 = vunpack.c.l.b16 %v2660
        %v2892 = vunpack.c.l.b16 %v2661
        %v2893 = vunpack.c.h.b16 %v2661
        %v2894 = vunpack.c.l.b16 %v2662
        %v2895 = vunpack.c.l.b16 %v2663
        %v2896 = vunpack.c.h.b16 %v2663
        %v2897 = vunpack.c.l.b16 %v2664
        %v2898 = vunpack.c.l.b16 %v2665
        %v2899 = vunpack.c.h.b16 %v2665
        %v2900 = vunpack.c.l.b16 %v2666
        %v2901 = vunpack.c.l.b16 %v2667
        %v2902 = vunpack.c.h.b16 %v2667
        %v2903 = vunpack.c.l.b16 %v2668
        %v2904 = vunpack.c.l.b16 %v2669
        %v2905 = vunpack.c.h.b16 %v2669
        %v2906 = vunpack.c.l.b16 %v2670
        %v2907 = vunpack.c.l.b16 %v2671
        %v2908 = vunpack.c.h.b16 %v2671
        %v2909 = vunpack.c.l.b16 %v2672
        %v2910 = vunpack.c.l.b16 %v2673
        %v2911 = vunpack.c.h.b16 %v2673
        %v2912 = vunpack.c.l.b16 %v2674
        %v2913 = vunpack.c.l.b16 %v2675
        %v2914 = vunpack.c.h.b16 %v2675
        %v2915 = vunpack.c.l.b16 %v2676
        %v2916 = vunpack.c.l.b16 %v2677
        %v2917 = vunpack.c.h.b16 %v2677
        %v2918 = vunpack.c.l.b16 %v2678
        %v2919 = vunpack.c.l.b16 %v2679
        %v2920 = vunpack.c.h.b16 %v2679
        %v2921 = vunpack.c.l.b16 %v2680
        %v2922 = vunpack.c.l.b16 %v2681
        %v2923 = vunpack.c.h.b16 %v2681
        %v2924 = vunpack.c.l.b16 %v2682
        %v2925 = vunpack.c.l.b16 %v2683
        %v2926 = vunpack.c.h.b16 %v2683
        %v2927 = vunpack.c.l.b16 %v2684
        %v2928 = vunpack.c.l.b16 %v2685
        %v2929 = vunpack.c.h.b16 %v2685
        %v2930 = vunpack.c.l.b16 %v2686
        %v2931 = vunpack.c.l.b16 %v2687
        %v2932 = vunpack.c.h.b16 %v2687
        %v2933 = vunpack.c.l.b16 %v2688
        %v2934 = vunpack.c.l.b16 %v2689
        %v2935 = vunpack.c.h.b16 %v2689
        %v2936 = vunpack.c.l.b16 %v2690
        %v2937 = vunpack.c.l.b16 %v2691
        %v2938 = vunpack.c.h.b16 %v2691
        %v2939 = vunpack.c.l.b16 %v2692
        %v2940 = vunpack.c.l.b16 %v2693
        %v2941 = vunpack.c.h.b16 %v2693
        %v2942 = vunpack.c.l.b16 %v2694
        %v2943 = vunpack.c.l.b16 %v2695
        %v2944 = vunpack.c.h.b16 %v2695
        %v2945 = vunpack.c.l.b16 %v2696
        %v2946 = vunpack.c.l.b16 %v2697
        %v2947 = vunpack.c.h.b16 %v2697
        %v2948 = vunpack.c.l.b16 %v2698
        %v2949 = vunpack.c.l.b16 %v2699
        %v2950 = vunpack.c.h.b16 %v2699
        %v2951 = vunpack.c.l.b16 %v2700
        %v2952 = vunpack.c.l.b16 %v2701
        %v2953 = vunpack.c.h.b16 %v2701
        %v2954 = vunpack.c.l.b16 %v2702
        %v2955 = vunpack.c.l.b16 %v2703
        %v2956 = vunpack.c.h.b16 %v2703
        %v2957 = vunpack.c.l.b16 %v2704
        %v2958 = vunpack.c.l.b16 %v2705
        %v2959 = vunpack.c.h.b16 %v2705
        %v2960 = vunpack.c.l.b16 %v2706
        %v2961 = vunpack.c.l.b16 %v2707
        %v2962 = vunpack.c.h.b16 %v2707
        %v2963 = vunpack.c.l.b16 %v2708
        %v2964 = vunpack.c.l.b16 %v2709
        %v2965 = vunpack.c.h.b16 %v2709
        %v2966 = vunpack.c.l.b16 %v2710
        %v2967 = vunpack.c.l.b16 %v2711
        %v2968 = vunpack.c.h.b16 %v2711
        %v2969 = vunpack.c.l.b16 %v2712
        %v2970 = vunpack.c.l.b16 %v2713
        %v2971 = vunpack.c.h.b16 %v2713
        %v2972 = vunpack.c.l.b16 %v2714
        %v2973 = vunpack.c.l.b16 %v2715
        %v2974 = vunpack.c.h.b16 %v2715
        %v2975 = vunpack.c.l.b16 %v2716
        %v2976 = vunpack.c.l.b16 %v2717
        %v2977 = vunpack.c.h.b16 %v2717
        %v2978 = vunpack.c.l.b16 %v2718
        %v2979 = vunpack.c.l.b16 %v2719
        %v2980 = vunpack.c.h.b16 %v2719
        %v2981 = vunpack.c.l.b16 %v2720
        %v2982 = vunpack.c.l.b16 %v2721
        %v2983 = vunpack.c.h.b16 %v2721
        %v2984 = vunpack.c.l.b16 %v2722
        %v2985 = vunpack.c.l.b16 %v2723
        %v2986 = vunpack.c.h.b16 %v2723
        %v2987 = vunpack.c.l.b16 %v2724
        %v2988 = vunpack.c.l.b16 %v2725
        %v2989 = vunpack.c.h.b16 %v2725
        %v2990 = vunpack.c.l.b16 %v2726
        %v2991 = vpack.c.b16 %v2850, %v2847
        %v2992 = vpack.c.b16 %v2851, %v2848
        %v2993 = vpack.c.b16 %v2852, %v2849
        %v2994 = vpack.c.b16 %v2856, %v2853
        %v2995 = vpack.c.b16 %v2857, %v2854
        %v2996 = vpack.c.b16 %v2858, %v2855
        %v2997 = vpack.c.b16 %v2862, %v2859
        %v2998 = vpack.c.b16 %v2863, %v2860
        %v2999 = vpack.c.b16 %v2864, %v2861
        %v3000 = vpack.c.b16 %v2868, %v2865
        %v3001 = vpack.c.b16 %v2869, %v2866
        %v3002 = vpack.c.b16 %v2870, %v2867
        %v3003 = vpack.c.b16 %v2874, %v2871
        %v3004 = vpack.c.b16 %v2875, %v2872
        %v3005 = vpack.c.b16 %v2876, %v2873
        %v3006 = vpack.c.b16 %v2880, %v2877
        %v3007 = vpack.c.b16 %v2881, %v2878
        %v3008 = vpack.c.b16 %v2882, %v2879
        %v3009 = vpack.c.b16 %v2886, %v2883
        %v3010 = vpack.c.b16 %v2887, %v2884
        %v3011 = vpack.c.b16 %v2888, %v2885
        %v3012 = vpack.c.b16 %v2892, %v2889
        %v3013 = vpack.c.b16 %v2893, %v2890
        %v3014 = vpack.c.b16 %v2894, %v2891
        %v3015 = vpack.c.b16 %v2898, %v2895
        %v3016 = vpack.c.b16 %v2899, %v2896
        %v3017 = vpack.c.b16 %v2900, %v2897
        %v3018 = vpack.c.b16 %v2904, %v2901
        %v3019 = vpack.c.b16 %v2905, %v2902
        %v3020 = vpack.c.b16 %v2906, %v2903
        %v3021 = vpack.c.b16 %v2910, %v2907
        %v3022 = vpack.c.b16 %v2911, %v2908
        %v3023 = vpack.c.b16 %v2912, %v2909
        %v3024 = vpack.c.b16 %v2916, %v2913
        %v3025 = vpack.c.b16 %v2917, %v2914
        %v3026 = vpack.c.b16 %v2918, %v2915
        %v3027 = vpack.c.b16 %v2922, %v2919
        %v3028 = vpack.c.b16 %v2923, %v2920
        %v3029 = vpack.c.b16 %v2924, %v2921
        %v3030 = vpack.c.b16 %v2928, %v2925
        %v3031 = vpack.c.b16 %v2929, %v2926
        %v3032 = vpack.c.b16 %v2930, %v2927
        %v3033 = vpack.c.b16 %v2934, %v2931
        %v3034 = vpack.c.b16 %v2935, %v2932
        %v3035 = vpack.c.b16 %v2936, %v2933
        %v3036 = vpack.c.b16 %v2940, %v2937
        %v3037 = vpack.c.b16 %v2941, %v2938
        %v3038 = vpack.c.b16 %v2942, %v2939
        %v3039 = vpack.c.b16 %v2946, %v2943
        %v3040 = vpack.c.b16 %v2947, %v2944
        %v3041 = vpack.c.b16 %v2948, %v2945
        %v3042 = vpack.c.b16 %v2952, %v2949
        %v3043 = vpack.c.b16 %v2953, %v2950
        %v3044 = vpack.c.b16 %v2954, %v2951
        %v3045 = vpack.c.b16 %v2958, %v2955
        %v3046 = vpack.c.b16 %v2959, %v2956
        %v3047 = vpack.c.b16 %v2960, %v2957
        %v3048 = vpack.c.b16 %v2964, %v2961
        %v3049 = vpack.c.b16 %v2965, %v2962
        %v3050 = vpack.c.b16 %v2966, %v2963
        %v3051 = vpack.c.b16 %v2970, %v2967
        %v3052 = vpack.c.b16 %v2971, %v2968
        %v3053 = vpack.c.b16 %v2972, %v2969
        %v3054 = vpack.c.b16 %v2976, %v2973
        %v3055 = vpack.c.b16 %v2977, %v2974
        %v3056 = vpack.c.b16 %v2978, %v2975
        %v3057 = vpack.c.b16 %v2982, %v2979
        %v3058 = vpack.c.b16 %v2983, %v2980
        %v3059 = vpack.c.b16 %v2984, %v2981
        %v3060 = vpack.c.b16 %v2988, %v2985
        %v3061 = vpack.c.b16 %v2989, %v2986
        %v3062 = vpack.c.b16 %v2990, %v2987
        %3135 = vmatpush.bf16.msra.mxu0 %v3012
        %3136 = vmatpush.bf16.msra.mxu0 %v3009
        %3137 = vmatpush.bf16.msra.mxu0 %v3006
        %3138 = vmatpush.bf16.msra.mxu0 %v3003
        %3139 = vmatpush.bf16.msra.mxu0 %v3000
        %3140 = vmatpush.bf16.msra.mxu0 %v2997
        %3141 = vmatpush.bf16.msra.mxu0 %v2994
        %3142 = vmatpush.bf16.msra.mxu0 %v2991
        %3143 = vmatmul.bf16.gmra.mxu0 %v2745
        %v3144 = vpop.f32.mrf.mxu0
        %v3145 = vadd.f32 %v2729, %v3144
        %v3146 = vpop.f32.mrf.mxu0
        %v3147 = vadd.f32 %v2729, %v3146
        %3148 = vdwg.mxu0
        %3149 = vmatpush.bf16.msra.mxu0 %v3036
        %3150 = vmatpush.bf16.msra.mxu0 %v3033
        %3151 = vmatpush.bf16.msra.mxu0 %v3030
        %3152 = vmatpush.bf16.msra.mxu0 %v3027
        %3153 = vmatpush.bf16.msra.mxu0 %v3024
        %3154 = vmatpush.bf16.msra.mxu0 %v3021
        %3155 = vmatpush.bf16.msra.mxu0 %v3018
        %3156 = vmatpush.bf16.msra.mxu0 %v3015
        %3157 = vmatmul.bf16.gmra.mxu0 %v2746
        %v3158 = vpop.f32.mrf.mxu0
        %v3159 = vadd.f32 %v3145, %v3158
        %v3160 = vpop.f32.mrf.mxu0
        %v3161 = vadd.f32 %v3147, %v3160
        %3162 = vdwg.mxu0
        %3163 = vmatpush.bf16.msra.mxu0 %v3060
        %3164 = vmatpush.bf16.msra.mxu0 %v3057
        %3165 = vmatpush.bf16.msra.mxu0 %v3054
        %3166 = vmatpush.bf16.msra.mxu0 %v3051
        %3167 = vmatpush.bf16.msra.mxu0 %v3048
        %3168 = vmatpush.bf16.msra.mxu0 %v3045
        %3169 = vmatpush.bf16.msra.mxu0 %v3042
        %3170 = vmatpush.bf16.msra.mxu0 %v3039
        %3171 = vmatmul.bf16.gmra.mxu0 %v2747
        %v3172 = vpop.f32.mrf.mxu0
        %v3173 = vadd.f32 %v3159, %v3172
        %v3174 = vpop.f32.mrf.mxu0
        %v3175 = vadd.f32 %v3161, %v3174
        %3176 = vdwg.mxu0
        %3177 = vmatpush.bf16.msra.mxu0 %v3013
        %3178 = vmatpush.bf16.msra.mxu0 %v3010
        %3179 = vmatpush.bf16.msra.mxu0 %v3007
        %3180 = vmatpush.bf16.msra.mxu0 %v3004
        %3181 = vmatpush.bf16.msra.mxu0 %v3001
        %3182 = vmatpush.bf16.msra.mxu0 %v2998
        %3183 = vmatpush.bf16.msra.mxu0 %v2995
        %3184 = vmatpush.bf16.msra.mxu0 %v2992
        %3185 = vmatmul.bf16.gmra.mxu0 %v2745
        %v3186 = vpop.f32.mrf.mxu0
        %v3187 = vadd.f32 %v2730, %v3186
        %v3188 = vpop.f32.mrf.mxu0
        %v3189 = vadd.f32 %v2730, %v3188
        %3190 = vdwg.mxu0
        %3191 = vmatpush.bf16.msra.mxu0 %v3037
        %3192 = vmatpush.bf16.msra.mxu0 %v3034
        %3193 = vmatpush.bf16.msra.mxu0 %v3031
        %3194 = vmatpush.bf16.msra.mxu0 %v3028
        %3195 = vmatpush.bf16.msra.mxu0 %v3025
        %3196 = vmatpush.bf16.msra.mxu0 %v3022
        %3197 = vmatpush.bf16.msra.mxu0 %v3019
        %3198 = vmatpush.bf16.msra.mxu0 %v3016
        %3199 = vmatmul.bf16.gmra.mxu0 %v2746
        %v3200 = vpop.f32.mrf.mxu0
        %v3201 = vadd.f32 %v3187, %v3200
        %v3202 = vpop.f32.mrf.mxu0
        %v3203 = vadd.f32 %v3189, %v3202
        %3204 = vdwg.mxu0
        %3205 = vmatpush.bf16.msra.mxu0 %v3061
        %3206 = vmatpush.bf16.msra.mxu0 %v3058
        %3207 = vmatpush.bf16.msra.mxu0 %v3055
        %3208 = vmatpush.bf16.msra.mxu0 %v3052
        %3209 = vmatpush.bf16.msra.mxu0 %v3049
        %3210 = vmatpush.bf16.msra.mxu0 %v3046
        %3211 = vmatpush.bf16.msra.mxu0 %v3043
        %3212 = vmatpush.bf16.msra.mxu0 %v3040
        %3213 = vmatmul.bf16.gmra.mxu0 %v2747
        %v3214 = vpop.f32.mrf.mxu0
        %v3215 = vadd.f32 %v3201, %v3214
        %v3216 = vpop.f32.mrf.mxu0
        %v3217 = vadd.f32 %v3203, %v3216
        %3218 = vdwg.mxu0
        %3219 = vmatpush.bf16.msra.mxu0 %v3014
        %3220 = vmatpush.bf16.msra.mxu0 %v3011
        %3221 = vmatpush.bf16.msra.mxu0 %v3008
        %3222 = vmatpush.bf16.msra.mxu0 %v3005
        %3223 = vmatpush.bf16.msra.mxu0 %v3002
        %3224 = vmatpush.bf16.msra.mxu0 %v2999
        %3225 = vmatpush.bf16.msra.mxu0 %v2996
        %3226 = vmatpush.bf16.msra.mxu0 %v2993
        %3227 = vmatmul.bf16.gmra.mxu0 %v2745
        %v3228 = vpop.f32.mrf.mxu0
        %v3229 = vadd.f32 %v2731, %v3228
        %v3230 = vpop.f32.mrf.mxu0
        %v3231 = vadd.f32 %v2731, %v3230
        %3232 = vdwg.mxu0
        %3233 = vmatpush.bf16.msra.mxu0 %v3038
        %3234 = vmatpush.bf16.msra.mxu0 %v3035
        %3235 = vmatpush.bf16.msra.mxu0 %v3032
        %3236 = vmatpush.bf16.msra.mxu0 %v3029
        %3237 = vmatpush.bf16.msra.mxu0 %v3026
        %3238 = vmatpush.bf16.msra.mxu0 %v3023
        %3239 = vmatpush.bf16.msra.mxu0 %v3020
        %3240 = vmatpush.bf16.msra.mxu0 %v3017
        %3241 = vmatmul.bf16.gmra.mxu0 %v2746
        %v3242 = vpop.f32.mrf.mxu0
        %v3243 = vadd.f32 %v3229, %v3242
        %v3244 = vpop.f32.mrf.mxu0
        %v3245 = vadd.f32 %v3231, %v3244
        %3246 = vdwg.mxu0
        %3247 = vmatpush.bf16.msra.mxu0 %v3062
        %3248 = vmatpush.bf16.msra.mxu0 %v3059
        %3249 = vmatpush.bf16.msra.mxu0 %v3056
        %3250 = vmatpush.bf16.msra.mxu0 %v3053
        %3251 = vmatpush.bf16.msra.mxu0 %v3050
        %3252 = vmatpush.bf16.msra.mxu0 %v3047
        %3253 = vmatpush.bf16.msra.mxu0 %v3044
        %3254 = vmatpush.bf16.msra.mxu0 %v3041
        %3255 = vmatmul.bf16.gmra.mxu0 %v2747
        %v3256 = vpop.f32.mrf.mxu0
        %v3257 = vadd.f32 %v3243, %v3256
        %v3258 = vpop.f32.mrf.mxu0
        %v3259 = vadd.f32 %v3245, %v3258
        %3260 = vdwg.mxu0
        %3261 = vst [vmem:[%s265] sm:$0xff] %v3173
        %3262 = vst [vmem:[%s265 + $0x8] sm:$0xff] %v3215
        %3263 = vst [vmem:[%s265 + $0x10] sm:$0xff] %v3257
        %3264 = vst [vmem:[%s265 + $0x18] sm:$0xff] %v3175
        %3265 = vst [vmem:[%s265 + $0x20] sm:$0xff] %v3217
        %3266 = vst [vmem:[%s265 + $0x28] sm:$0xff] %v3259
        %s3267 = sand.u32 %s120, 1
        %s3268 = scalar_lea.sflag [#allocation6], %s3267
        %s3269 = sand.u32 %s120, 1
        %s3270 = smul.addr %s3269, 48
        %s3271 = scalar_lea.vmem [#allocation12], %s3270
        // Predicated region
        $region53: #{tpu_custom_call.1} parent=35 // pred_check
          %p3272 = pneg %p130
        $region54: #{tpu_custom_call.1} parent=35 // pred_check_branch
          %3274 = sbr.rel (%p3272) target = $region56
        $region55: #{tpu_custom_call.1} parent=35 // pred_region
          %3276 = vsyncadd %s3268, 0
          %s3277 = smul.addr %s23, 6
          %s3278 = smul.addr %s3277, 8
          %s3279 = scalar_lea.hbm %s4, %s3278
          %s3280 = sshll.u32 %s3271, 4
          %s3281 = int_to_ptr.vmem [resolvable:$true] %s3280
          %s3282 = sshll.u32 %s3279, 4
          %s3283 = int_to_ptr.hbm [resolvable:$true] %s3282
          %3288 = dma.vmem_to_hbm [thread:$0]  %s3281, 768, %s3283, %s3268, 384, 384, 24
        $region56: #{tpu_custom_call.1} parent=35 // pred_fallthru
          _
      $region36: #{tpu_custom_call.1} parent=5 // pred_fallthru
        _
      %p3289 = scmp.le.s32.totalorder 2, %s18
      // Predicated region
      $region57: #{tpu_custom_call.1} parent=5 // pred_check
        %p3290 = pneg %p3289
      $region58: #{tpu_custom_call.1} parent=5 // pred_check_branch
        %3292 = sbr.rel (%p3290) target = $region60
      $region59: #{tpu_custom_call.1} parent=5 // pred_region
        %s3293 = ssub.s32 %s18, 2
        // Predicated region
        $region61: #{tpu_custom_call.1} parent=59 // pred_check
          %p3294 = pneg %p136
        $region62: #{tpu_custom_call.1} parent=59 // pred_check_branch
          %3296 = sbr.rel (%p3294) target = $region64
        $region63: #{tpu_custom_call.1} parent=59 // pred_region
          %s3297 = sand.u32 %s121, 1
          %s3298 = scalar_lea.sflag [#allocation6], %s3297
          %s3299 = sand.u32 %s121, 1
          %s3300 = smul.addr %s3299, 48
          %s3301 = scalar_lea.vmem [#allocation12], %s3300
          %3303 = dma.done %s3298, 768
        $region64: #{tpu_custom_call.1} parent=59 // pred_fallthru
          _
      $region60: #{tpu_custom_call.1} parent=5 // pred_fallthru
        _
    $region6: #{tpu_custom_call.1} parent=1 // loop_footer
      %s22 = sadd.s32 1, %s18
    $region7: #{tpu_custom_call.1} parent=1 // loop_footer_branch
      %17 = sbr.rel target = $region3
    $region8: #{tpu_custom_call.1} parent=1 // loop_exit
      _
    %3304 = vsyncpa [#allocation5], 1
    %s3305 = scalar_lea.sflag [#allocation5], 1
    %3306 = vsyncpa %s3305, 1
    %3307 = vsyncpa [#allocation8], 1
    %3308 = vsyncpa [#allocation11], 1
    %3309 = vsyncpa [#allocation6], 1
    %s3310 = scalar_lea.sflag [#allocation6], 1
    %3311 = vsyncpa %s3310, 1

</llo_original>
